<compile_context>
chip_gen: v7x
topology: tpu7x:2x2x1
jax: 0.10.0
libtpu: 0.0.40
codegen_flags: <defaults>
</compile_context>

<pallas_src>
import functools
import math

import jax
import jax.numpy as jnp
import numpy as np
from jax.experimental import pallas as pl
from jax.experimental.pallas import tpu as pltpu


def _layernorm(v, gamma, beta, eps=1e-5):
    mu = jnp.mean(v, axis=-1, keepdims=True)
    var = jnp.mean((v - mu) ** 2, axis=-1, keepdims=True)   # biased var (PyTorch)
    return (v - mu) * jax.lax.rsqrt(var + eps) * gamma + beta


def encoder_layer_kernel(
    x_ref,          # (S, E)          input activations (batch dim squeezed)
    wqkv_ref,       # (E, 3E)         in_proj weight, pre-transposed
    bqkv_ref,       # (1, 3E)
    wo3_ref,        # (H, hd, E)      out_proj weight, pre-transposed+split
    bo_ref,         # (1, E)
    g1_ref, be1_ref,  # LayerNorm1 gamma/beta, (1, E)
    g2_ref, be2_ref,  # LayerNorm2 gamma/beta, (1, E)
    w1_ref,         # (E, TF)         FFN linear1 weight chunk (F-tiled)
    b1_ref,         # (1, TF)
    w2_ref,         # (TF, E)         FFN linear2 weight chunk (F-tiled)
    b2_ref,         # (1, E)
    out_ref,        # (S, E)
    x2_ref,         # VMEM scratch (S, E) f32 : LN2(x + attn)
    acc_ref,        # VMEM scratch (S, E) f32 : running output accumulator
    *, nhead, compute_dtype,
):
    f = pl.program_id(1)
    nf = pl.num_programs(1)

    if compute_dtype is None:
        cast = lambda t: t
    else:
        cast = lambda t: t.astype(compute_dtype)

    # ---------------- self-attention block: only on the first F-chunk -------
    @pl.when(f == 0)
    def _attention_block():
        x = x_ref[...].astype(jnp.float32)
        S, E = x.shape
        hd = E // nhead
        scale = 1.0 / math.sqrt(hd)

        x2 = _layernorm(x, g1_ref[...], be1_ref[...])
        qkv = (jnp.dot(cast(x2), cast(wqkv_ref[...]),
                       preferred_element_type=jnp.float32)
               + bqkv_ref[...])                                  # (S, 3E)

        # Head split (S, E) -> (H, S, hd).  Minor (lane) dim stays = hd; keep
        # hd a multiple of 128 in deployments for a clean relayout.
        def to_heads(t):
            return jnp.swapaxes(t.reshape(S, nhead, hd), 0, 1)

        q = to_heads(qkv[:, 0 * E:1 * E])
        k = to_heads(qkv[:, 1 * E:2 * E])
        v = to_heads(qkv[:, 2 * E:3 * E])

        # Batched scores for all heads; K-transpose folded into the contraction.
        s = jnp.einsum("hqd,hkd->hqk", cast(q), cast(k),
                       preferred_element_type=jnp.float32) * scale   # (H,S,S)
        m = jnp.max(s, axis=-1, keepdims=True)
        p = jnp.exp(s - m)
        row_sum = jnp.sum(p, axis=-1, keepdims=True)
        inv = pl.reciprocal(row_sum, approx=True)                    # EUP slot
        # Deferred normalization: scale the (S, hd) context, not the (S, S) p.
        ctx = jnp.einsum("hqk,hkd->hqd", cast(p), cast(v),
                         preferred_element_type=jnp.float32) * inv   # (H,S,hd)

        # Output projection accumulated per head (no lane concatenation).
        attn = jnp.zeros((S, E), jnp.float32) + bo_ref[...]
        for h in range(nhead):               # static unroll, nhead is small
            attn = attn + jnp.dot(cast(ctx[h]), cast(wo3_ref[h]),
                                  preferred_element_type=jnp.float32)

        x_mid = x + attn                                  # residual (dropout=id)
        x2_ref[...] = _layernorm(x_mid, g2_ref[...], be2_ref[...])
        acc_ref[...] = x_mid + b2_ref[...]                # residual + lin2 bias

    # ---------------- FFN chunk over F: every grid step ---------------------
    h1 = (jnp.dot(cast(x2_ref[...]), cast(w1_ref[...]),
                  preferred_element_type=jnp.float32) + b1_ref[...])
    h1 = jnp.maximum(h1, 0.0)
    acc_ref[...] += jnp.dot(cast(h1), cast(w2_ref[...]),
                            preferred_element_type=jnp.float32)

    @pl.when(f == nf - 1)
    def _store():
        out_ref[...] = acc_ref[...].astype(out_ref.dtype)


def encoder_layer(x, params, *, nhead, ffn_block=512, compute_dtype=None):
    B, S, E = x.shape
    F = params["w1_t"].shape[1]
    assert E % nhead == 0, "emb_size must be divisible by nhead"
    hd = E // nhead
    tf = ffn_block if F % ffn_block == 0 else F
    nf = F // tf

    # Host-side (free) reshape: per-head slices of the output projection.
    wo3 = params["wo_t"].reshape(nhead, hd, E)

    # Grid-invariant operands: constant index_map + single buffer (no double
    # buffering of large resident weights).
    def const_spec(shape):
        return pl.BlockSpec(shape, lambda b, f, _n=len(shape): (0,) * _n,
                            pipeline_mode=pl.Buffered(1))

    kernel = functools.partial(encoder_layer_kernel, nhead=nhead,
                               compute_dtype=compute_dtype)

    return pl.pallas_call(
        kernel,
        out_shape=jax.ShapeDtypeStruct((B, S, E), x.dtype),
        grid=(B, nf),
        in_specs=[
            # x: batch dim squeezed; same block across the F axis, prefetches
            # the next batch element with default double-buffering.
            pl.BlockSpec((None, S, E), lambda b, f: (b, 0, 0)),
            const_spec((E, 3 * E)),             # wqkv
            const_spec((1, 3 * E)),             # bqkv
            const_spec((nhead, hd, E)),         # wo (per-head)
            const_spec((1, E)),                 # bo
            const_spec((1, E)), const_spec((1, E)),   # ln1 gamma/beta
            const_spec((1, E)), const_spec((1, E)),   # ln2 gamma/beta
            # FFN weights tiled over F: only the active chunk is VMEM-resident
            # and chunks are pipelined (DMA overlapped with compute).
            pl.BlockSpec((E, tf), lambda b, f: (0, f)),   # w1 chunk
            pl.BlockSpec((1, tf), lambda b, f: (0, f)),   # b1 chunk
            pl.BlockSpec((tf, E), lambda b, f: (f, 0)),   # w2 chunk
            const_spec((1, E)),                 # b2
        ],
        out_specs=pl.BlockSpec((None, S, E), lambda b, f: (b, 0, 0)),
        scratch_shapes=[pltpu.VMEM((S, E), jnp.float32),   # LN2(x + attn)
                        pltpu.VMEM((S, E), jnp.float32)],  # output accumulator
        compiler_params=pltpu.CompilerParams(
            dimension_semantics=("parallel", "arbitrary"),
            vmem_limit_bytes=64 * 1024 * 1024),
    )(
        x,
        params["wqkv_t"], params["bqkv"],
        wo3, params["bo"],
        params["ln1_g"], params["ln1_b"],
        params["ln2_g"], params["ln2_b"],
        params["w1_t"], params["b1"],
        params["w2_t"], params["b2"],
    )


def encoder_layer_ref(x, params, *, nhead):
    """Pure-JAX reference (same math as the PyTorch module, no Pallas)."""
    B, S, E = x.shape
    hd = E // nhead
    scale = 1.0 / math.sqrt(hd)

    def ln(v, g, b):
        mu = jnp.mean(v, axis=-1, keepdims=True)
        var = jnp.mean((v - mu) ** 2, axis=-1, keepdims=True)
        return (v - mu) * jax.lax.rsqrt(var + 1e-5) * g + b

    x2 = ln(x, params["ln1_g"], params["ln1_b"])
    qkv = x2 @ params["wqkv_t"] + params["bqkv"]
    q, k, v = jnp.split(qkv, 3, axis=-1)
    q = q.reshape(B, S, nhead, hd).transpose(0, 2, 1, 3)
    k = k.reshape(B, S, nhead, hd).transpose(0, 2, 1, 3)
    v = v.reshape(B, S, nhead, hd).transpose(0, 2, 1, 3)
    s = jnp.einsum("bhqd,bhkd->bhqk", q, k) * scale
    p = jax.nn.softmax(s, axis=-1)
    a = jnp.einsum("bhqk,bhkd->bhqd", p, v).transpose(0, 2, 1, 3).reshape(B, S, E)
    a = a @ params["wo_t"] + params["bo"]
    x = x + a
    x2 = ln(x, params["ln2_g"], params["ln2_b"])
    h1 = jnp.maximum(x2 @ params["w1_t"] + params["b1"], 0.0)
    return x + (h1 @ params["w2_t"] + params["b2"])


def make_params(key, emb_size, nhead, dim_feedforward):
    E, F = emb_size, dim_feedforward
    ks = jax.random.split(key, 10)
    init = lambda k, shape: (0.05 * jax.random.normal(k, shape)).astype(jnp.float32)
    return {
        # MultiheadAttention: in_proj (3E, E) -> stored transposed (E, 3E)
        "wqkv_t": init(ks[0], (E, 3 * E)),
        "bqkv": init(ks[1], (1, 3 * E)),
        "wo_t": init(ks[2], (E, E)),
        "bo": init(ks[3], (1, E)),
        # LayerNorms (perturbed affine params to exercise gamma/beta paths)
        "ln1_g": (1.0 + 0.1 * jax.random.normal(ks[4], (1, E))).astype(jnp.float32),
        "ln1_b": init(ks[5], (1, E)),
        "ln2_g": (1.0 + 0.1 * jax.random.normal(ks[6], (1, E))).astype(jnp.float32),
        "ln2_b": init(ks[7], (1, E)),
        # FFN: Linear(E, F) then Linear(F, E), stored transposed
        "w1_t": init(ks[8], (E, F)),
        "b1": init(ks[9], (1, F)),
        "w2_t": init(jax.random.fold_in(key, 123), (F, E)),
        "b2": init(jax.random.fold_in(key, 456), (1, E)),
    }


if __name__ == "__main__":
    # Small but TPU-friendly shapes: E multiple of 128 (lane-dense stores),
    # head_dim = 128, and F split into 2 chunks to exercise the F-tiling path.
    B, S, E, nhead, F = 2, 16, 256, 2, 512
    key = jax.random.PRNGKey(0)
    kx, kp = jax.random.split(key)
    x = jax.random.normal(kx, (B, S, E), dtype=jnp.float32)
    params = make_params(kp, E, nhead, F)

    out = encoder_layer(x, params, nhead=nhead, ffn_block=256)
    out = jax.block_until_ready(out)

    ref = jax.block_until_ready(encoder_layer_ref(x, params, nhead=nhead))
    # Tolerance covers the approximate-reciprocal (EUP) softmax normalization;
    # everything else is f32 with f32 accumulation.
    np.testing.assert_allclose(np.asarray(out), np.asarray(ref),
                               rtol=1e-2, atol=1e-2)

    print("KERNEL_OK")
</pallas_src>

<mosaic_0001>
module attributes {stable_mosaic.version = 11 : i64} {
  func.func @encoder_layer_kernel(%arg0: i32, %arg1: i32, %arg2: memref<1x16x256xf32, #tpu.memory_space<vmem>>, %arg3: memref<256x768xf32, #tpu.memory_space<vmem>>, %arg4: memref<1x768xf32, #tpu.memory_space<vmem>>, %arg5: memref<2x128x256xf32, #tpu.memory_space<vmem>>, %arg6: memref<1x256xf32, #tpu.memory_space<vmem>>, %arg7: memref<1x256xf32, #tpu.memory_space<vmem>>, %arg8: memref<1x256xf32, #tpu.memory_space<vmem>>, %arg9: memref<1x256xf32, #tpu.memory_space<vmem>>, %arg10: memref<1x256xf32, #tpu.memory_space<vmem>>, %arg11: memref<256x256xf32, #tpu.memory_space<vmem>>, %arg12: memref<1x256xf32, #tpu.memory_space<vmem>>, %arg13: memref<256x256xf32, #tpu.memory_space<vmem>>, %arg14: memref<1x256xf32, #tpu.memory_space<vmem>>, %arg15: memref<1x16x256xf32, #tpu.memory_space<vmem>>, %arg16: memref<16x256xf32, #tpu.memory_space<vmem>>, %arg17: memref<16x256xf32, #tpu.memory_space<vmem>>) attributes {dimension_semantics = [#tpu.dimension_semantics<parallel>, #tpu.dimension_semantics<arbitrary>], iteration_bounds = array<i64: 2, 2>, scalar_prefetch = 0 : i64, scratch_operands = 2 : i64, tpu.core_type = #tpu.core_type<tc>, window_params = [{transform_indices = @transform_0, window_bounds = array<i64: 1, 16, 256>}, {pipeline_mode = #tpu.pipeline_mode<synchronous>, transform_indices = @transform_1, window_bounds = array<i64: 256, 768>}, {pipeline_mode = #tpu.pipeline_mode<synchronous>, transform_indices = @transform_2, window_bounds = array<i64: 1, 768>}, {pipeline_mode = #tpu.pipeline_mode<synchronous>, transform_indices = @transform_3, window_bounds = array<i64: 2, 128, 256>}, {pipeline_mode = #tpu.pipeline_mode<synchronous>, transform_indices = @transform_4, window_bounds = array<i64: 1, 256>}, {pipeline_mode = #tpu.pipeline_mode<synchronous>, transform_indices = @transform_5, window_bounds = array<i64: 1, 256>}, {pipeline_mode = #tpu.pipeline_mode<synchronous>, transform_indices = @transform_6, window_bounds = array<i64: 1, 256>}, {pipeline_mode = #tpu.pipeline_mode<synchronous>, transform_indices = @transform_7, window_bounds = array<i64: 1, 256>}, {pipeline_mode = #tpu.pipeline_mode<synchronous>, transform_indices = @transform_8, window_bounds = array<i64: 1, 256>}, {transform_indices = @transform_9, window_bounds = array<i64: 256, 256>}, {transform_indices = @transform_10, window_bounds = array<i64: 1, 256>}, {transform_indices = @transform_11, window_bounds = array<i64: 256, 256>}, {pipeline_mode = #tpu.pipeline_mode<synchronous>, transform_indices = @transform_12, window_bounds = array<i64: 1, 256>}, {transform_indices = @transform_13, window_bounds = array<i64: 1, 16, 256>}]} {
    %c0_i32 = arith.constant 0 : i32
    %0 = arith.cmpi eq, %arg1, %c0_i32 : i32
    %1 = arith.extui %0 : i1 to i32
    %c0_i32_0 = arith.constant 0 : i32
    %2 = arith.cmpi ne, %1, %c0_i32_0 : i32
    scf.if %2 {
      %c0_15 = arith.constant 0 : index
      %c0_16 = arith.constant 0 : index
      %c0_17 = arith.constant 0 : index
      %19 = vector.load %arg2[%c0_15, %c0_16, %c0_17] : memref<1x16x256xf32, #tpu.memory_space<vmem>>, vector<1x16x256xf32>
      %20 = vector.shape_cast %19 : vector<1x16x256xf32> to vector<16x256xf32>
      %c0_18 = arith.constant 0 : index
      %c0_19 = arith.constant 0 : index
      %21 = vector.load %arg7[%c0_18, %c0_19] : memref<1x256xf32, #tpu.memory_space<vmem>>, vector<1x256xf32>
      %c0_20 = arith.constant 0 : index
      %c0_21 = arith.constant 0 : index
      %22 = vector.load %arg8[%c0_20, %c0_21] : memref<1x256xf32, #tpu.memory_space<vmem>>, vector<1x256xf32>
      %cst_22 = arith.constant dense<0.000000e+00> : vector<16xf32>
      %23 = vector.multi_reduction <add>, %20, %cst_22 [1] : vector<16x256xf32> to vector<16xf32>
      %24 = vector.shape_cast %23 : vector<16xf32> to vector<16x1xf32>
      %cst_23 = arith.constant 2.560000e+02 : f32
      %25 = vector.broadcast %cst_23 : f32 to vector<16x1xf32>
      %26 = arith.divf %24, %25 : vector<16x1xf32>
      %27 = vector.broadcast %26 : vector<16x1xf32> to vector<16x256xf32>
      %28 = arith.subf %20, %27 : vector<16x256xf32>
      %29 = arith.mulf %28, %28 : vector<16x256xf32>
      %cst_24 = arith.constant dense<0.000000e+00> : vector<16xf32>
      %30 = vector.multi_reduction <add>, %29, %cst_24 [1] : vector<16x256xf32> to vector<16xf32>
      %31 = vector.shape_cast %30 : vector<16xf32> to vector<16x1xf32>
      %cst_25 = arith.constant 2.560000e+02 : f32
      %32 = vector.broadcast %cst_25 : f32 to vector<16x1xf32>
      %33 = arith.divf %31, %32 : vector<16x1xf32>
      %34 = vector.broadcast %26 : vector<16x1xf32> to vector<16x256xf32>
      %35 = arith.subf %20, %34 : vector<16x256xf32>
      %cst_26 = arith.constant 9.99999974E-6 : f32
      %36 = vector.broadcast %cst_26 : f32 to vector<16x1xf32>
      %37 = arith.addf %33, %36 : vector<16x1xf32>
      %38 = math.rsqrt %37 : vector<16x1xf32>
      %39 = vector.broadcast %38 : vector<16x1xf32> to vector<16x256xf32>
      %40 = arith.mulf %35, %39 : vector<16x256xf32>
      %41 = vector.broadcast %21 : vector<1x256xf32> to vector<16x256xf32>
      %42 = arith.mulf %40, %41 : vector<16x256xf32>
      %43 = vector.broadcast %22 : vector<1x256xf32> to vector<16x256xf32>
      %44 = arith.addf %42, %43 : vector<16x256xf32>
      %c0_27 = arith.constant 0 : index
      %c0_28 = arith.constant 0 : index
      %45 = vector.load %arg3[%c0_27, %c0_28] : memref<256x768xf32, #tpu.memory_space<vmem>>, vector<256x768xf32>
      %cst_29 = arith.constant dense<0.000000e+00> : vector<16x768xf32>
      %46 = tpu.matmul %44, %45, %cst_29 {dimension_numbers = #tpu.dot_dimension_numbers<[1], [0], [0], [1], [0, 0, 1, 1], [], []>} : vector<16x256xf32>, vector<256x768xf32>, vector<16x768xf32> -> vector<16x768xf32>
      %c0_30 = arith.constant 0 : index
      %c0_31 = arith.constant 0 : index
      %47 = vector.load %arg4[%c0_30, %c0_31] : memref<1x768xf32, #tpu.memory_space<vmem>>, vector<1x768xf32>
      %48 = vector.broadcast %47 : vector<1x768xf32> to vector<16x768xf32>
      %49 = arith.addf %46, %48 : vector<16x768xf32>
      %50 = vector.extract_strided_slice %49 {offsets = [0, 0], sizes = [16, 256], strides = [1, 1]} : vector<16x768xf32> to vector<16x256xf32>
      %51 = vector.shape_cast %50 : vector<16x256xf32> to vector<16x2x128xf32>
      %52 = tpu.transpose %51, [1, 0, 2] : vector<16x2x128xf32> -> vector<2x16x128xf32>
      %53 = vector.extract_strided_slice %49 {offsets = [0, 256], sizes = [16, 256], strides = [1, 1]} : vector<16x768xf32> to vector<16x256xf32>
      %54 = vector.shape_cast %53 : vector<16x256xf32> to vector<16x2x128xf32>
      %55 = tpu.transpose %54, [1, 0, 2] : vector<16x2x128xf32> -> vector<2x16x128xf32>
      %56 = vector.extract_strided_slice %49 {offsets = [0, 512], sizes = [16, 256], strides = [1, 1]} : vector<16x768xf32> to vector<16x256xf32>
      %57 = vector.shape_cast %56 : vector<16x256xf32> to vector<16x2x128xf32>
      %58 = tpu.transpose %57, [1, 0, 2] : vector<16x2x128xf32> -> vector<2x16x128xf32>
      "tpu.trace_start"() <{level = 10 : i32, message = "hqd,hkd->hqk"}> : () -> ()
      %cst_32 = arith.constant dense<0.000000e+00> : vector<2x16x16xf32>
      %59 = tpu.matmul %52, %55, %cst_32 {dimension_numbers = #tpu.dot_dimension_numbers<[2], [2], [1], [1], [0, 0, 0, 1, 1, 1], [0], [0]>} : vector<2x16x128xf32>, vector<2x16x128xf32>, vector<2x16x16xf32> -> vector<2x16x16xf32>
      "tpu.trace_stop"() : () -> ()
      %cst_33 = arith.constant 0.0883883461 : f32
      %60 = vector.broadcast %cst_33 : f32 to vector<2x16x16xf32>
      %61 = arith.mulf %59, %60 : vector<2x16x16xf32>
      %cst_34 = arith.constant dense<0xFF800000> : vector<2x16xf32>
      %62 = vector.multi_reduction <maximumf>, %61, %cst_34 [2] : vector<2x16x16xf32> to vector<2x16xf32>
      %63 = vector.shape_cast %62 : vector<2x16xf32> to vector<2x16x1xf32>
      %64 = vector.broadcast %63 : vector<2x16x1xf32> to vector<2x16x16xf32>
      %65 = arith.subf %61, %64 : vector<2x16x16xf32>
      %66 = math.exp %65 : vector<2x16x16xf32>
      %cst_35 = arith.constant dense<0.000000e+00> : vector<2x16xf32>
      %67 = vector.multi_reduction <add>, %66, %cst_35 [2] : vector<2x16x16xf32> to vector<2x16xf32>
      %68 = vector.shape_cast %67 : vector<2x16xf32> to vector<2x16x1xf32>
      %69 = tpu.reciprocal %68 {approx = true} : vector<2x16x1xf32> -> vector<2x16x1xf32>
      "tpu.trace_start"() <{level = 10 : i32, message = "hqk,hkd->hqd"}> : () -> ()
      %cst_36 = arith.constant dense<0.000000e+00> : vector<2x16x128xf32>
      %70 = tpu.matmul %66, %58, %cst_36 {dimension_numbers = #tpu.dot_dimension_numbers<[2], [1], [1], [2], [0, 0, 0, 1, 1, 2], [0], [0]>} : vector<2x16x16xf32>, vector<2x16x128xf32>, vector<2x16x128xf32> -> vector<2x16x128xf32>
      "tpu.trace_stop"() : () -> ()
      %71 = vector.broadcast %69 : vector<2x16x1xf32> to vector<2x16x128xf32>
      %72 = arith.mulf %70, %71 : vector<2x16x128xf32>
      %cst_37 = arith.constant 0.000000e+00 : f32
      %73 = vector.broadcast %cst_37 : f32 to vector<16x256xf32>
      %c0_38 = arith.constant 0 : index
      %c0_39 = arith.constant 0 : index
      %74 = vector.load %arg6[%c0_38, %c0_39] : memref<1x256xf32, #tpu.memory_space<vmem>>, vector<1x256xf32>
      %75 = vector.broadcast %74 : vector<1x256xf32> to vector<16x256xf32>
      %76 = arith.addf %73, %75 : vector<16x256xf32>
      %77 = vector.extract_strided_slice %72 {offsets = [0, 0, 0], sizes = [1, 16, 128], strides = [1, 1, 1]} : vector<2x16x128xf32> to vector<1x16x128xf32>
      %78 = vector.shape_cast %77 : vector<1x16x128xf32> to vector<16x128xf32>
      %c0_40 = arith.constant 0 : index
      %c0_41 = arith.constant 0 : index
      %c0_42 = arith.constant 0 : index
      %79 = vector.load %arg5[%c0_40, %c0_41, %c0_42] : memref<2x128x256xf32, #tpu.memory_space<vmem>>, vector<1x128x256xf32>
      %80 = vector.shape_cast %79 : vector<1x128x256xf32> to vector<128x256xf32>
      %cst_43 = arith.constant dense<0.000000e+00> : vector<16x256xf32>
      %81 = tpu.matmul %78, %80, %cst_43 {dimension_numbers = #tpu.dot_dimension_numbers<[1], [0], [0], [1], [0, 0, 1, 1], [], []>} : vector<16x128xf32>, vector<128x256xf32>, vector<16x256xf32> -> vector<16x256xf32>
      %82 = arith.addf %76, %81 : vector<16x256xf32>
      %83 = vector.extract_strided_slice %72 {offsets = [1, 0, 0], sizes = [1, 16, 128], strides = [1, 1, 1]} : vector<2x16x128xf32> to vector<1x16x128xf32>
      %84 = vector.shape_cast %83 : vector<1x16x128xf32> to vector<16x128xf32>
      %c1 = arith.constant 1 : index
      %c0_44 = arith.constant 0 : index
      %c0_45 = arith.constant 0 : index
      %85 = vector.load %arg5[%c1, %c0_44, %c0_45] : memref<2x128x256xf32, #tpu.memory_space<vmem>>, vector<1x128x256xf32>
      %86 = vector.shape_cast %85 : vector<1x128x256xf32> to vector<128x256xf32>
      %cst_46 = arith.constant dense<0.000000e+00> : vector<16x256xf32>
      %87 = tpu.matmul %84, %86, %cst_46 {dimension_numbers = #tpu.dot_dimension_numbers<[1], [0], [0], [1], [0, 0, 1, 1], [], []>} : vector<16x128xf32>, vector<128x256xf32>, vector<16x256xf32> -> vector<16x256xf32>
      %88 = arith.addf %82, %87 : vector<16x256xf32>
      %89 = arith.addf %20, %88 : vector<16x256xf32>
      %c0_47 = arith.constant 0 : index
      %c0_48 = arith.constant 0 : index
      %90 = vector.load %arg9[%c0_47, %c0_48] : memref<1x256xf32, #tpu.memory_space<vmem>>, vector<1x256xf32>
      %c0_49 = arith.constant 0 : index
      %c0_50 = arith.constant 0 : index
      %91 = vector.load %arg10[%c0_49, %c0_50] : memref<1x256xf32, #tpu.memory_space<vmem>>, vector<1x256xf32>
      %cst_51 = arith.constant dense<0.000000e+00> : vector<16xf32>
      %92 = vector.multi_reduction <add>, %89, %cst_51 [1] : vector<16x256xf32> to vector<16xf32>
      %93 = vector.shape_cast %92 : vector<16xf32> to vector<16x1xf32>
      %cst_52 = arith.constant 2.560000e+02 : f32
      %94 = vector.broadcast %cst_52 : f32 to vector<16x1xf32>
      %95 = arith.divf %93, %94 : vector<16x1xf32>
      %96 = vector.broadcast %95 : vector<16x1xf32> to vector<16x256xf32>
      %97 = arith.subf %89, %96 : vector<16x256xf32>
      %98 = arith.mulf %97, %97 : vector<16x256xf32>
      %cst_53 = arith.constant dense<0.000000e+00> : vector<16xf32>
      %99 = vector.multi_reduction <add>, %98, %cst_53 [1] : vector<16x256xf32> to vector<16xf32>
      %100 = vector.shape_cast %99 : vector<16xf32> to vector<16x1xf32>
      %cst_54 = arith.constant 2.560000e+02 : f32
      %101 = vector.broadcast %cst_54 : f32 to vector<16x1xf32>
      %102 = arith.divf %100, %101 : vector<16x1xf32>
      %103 = vector.broadcast %95 : vector<16x1xf32> to vector<16x256xf32>
      %104 = arith.subf %89, %103 : vector<16x256xf32>
      %cst_55 = arith.constant 9.99999974E-6 : f32
      %105 = vector.broadcast %cst_55 : f32 to vector<16x1xf32>
      %106 = arith.addf %102, %105 : vector<16x1xf32>
      %107 = math.rsqrt %106 : vector<16x1xf32>
      %108 = vector.broadcast %107 : vector<16x1xf32> to vector<16x256xf32>
      %109 = arith.mulf %104, %108 : vector<16x256xf32>
      %110 = vector.broadcast %90 : vector<1x256xf32> to vector<16x256xf32>
      %111 = arith.mulf %109, %110 : vector<16x256xf32>
      %112 = vector.broadcast %91 : vector<1x256xf32> to vector<16x256xf32>
      %113 = arith.addf %111, %112 : vector<16x256xf32>
      %c0_56 = arith.constant 0 : index
      %c0_57 = arith.constant 0 : index
      %114 = vector.load %arg16[%c0_56, %c0_57] : memref<16x256xf32, #tpu.memory_space<vmem>>, vector<16x256xf32>
      tpu.vector_store %arg16[%c0_56, %c0_57], %113 {strides = array<i32>} : memref<16x256xf32, #tpu.memory_space<vmem>>, vector<16x256xf32>,
      %c0_58 = arith.constant 0 : index
      %c0_59 = arith.constant 0 : index
      %115 = vector.load %arg14[%c0_58, %c0_59] : memref<1x256xf32, #tpu.memory_space<vmem>>, vector<1x256xf32>
      %116 = vector.broadcast %115 : vector<1x256xf32> to vector<16x256xf32>
      %117 = arith.addf %89, %116 : vector<16x256xf32>
      %c0_60 = arith.constant 0 : index
      %c0_61 = arith.constant 0 : index
      %118 = vector.load %arg17[%c0_60, %c0_61] : memref<16x256xf32, #tpu.memory_space<vmem>>, vector<16x256xf32>
      tpu.vector_store %arg17[%c0_60, %c0_61], %117 {strides = array<i32>} : memref<16x256xf32, #tpu.memory_space<vmem>>, vector<16x256xf32>,
    } else {
    }
    %c0 = arith.constant 0 : index
    %c0_1 = arith.constant 0 : index
    %3 = vector.load %arg16[%c0, %c0_1] : memref<16x256xf32, #tpu.memory_space<vmem>>, vector<16x256xf32>
    %c0_2 = arith.constant 0 : index
    %c0_3 = arith.constant 0 : index
    %4 = vector.load %arg11[%c0_2, %c0_3] : memref<256x256xf32, #tpu.memory_space<vmem>>, vector<256x256xf32>
    %cst = arith.constant dense<0.000000e+00> : vector<16x256xf32>
    %5 = tpu.matmul %3, %4, %cst {dimension_numbers = #tpu.dot_dimension_numbers<[1], [0], [0], [1], [0, 0, 1, 1], [], []>} : vector<16x256xf32>, vector<256x256xf32>, vector<16x256xf32> -> vector<16x256xf32>
    %c0_4 = arith.constant 0 : index
    %c0_5 = arith.constant 0 : index
    %6 = vector.load %arg12[%c0_4, %c0_5] : memref<1x256xf32, #tpu.memory_space<vmem>>, vector<1x256xf32>
    %7 = vector.broadcast %6 : vector<1x256xf32> to vector<16x256xf32>
    %8 = arith.addf %5, %7 : vector<16x256xf32>
    %cst_6 = arith.constant 0.000000e+00 : f32
    %9 = vector.broadcast %cst_6 : f32 to vector<16x256xf32>
    %10 = arith.maximumf %8, %9 : vector<16x256xf32>
    %c0_7 = arith.constant 0 : index
    %c0_8 = arith.constant 0 : index
    %11 = vector.load %arg17[%c0_7, %c0_8] : memref<16x256xf32, #tpu.memory_space<vmem>>, vector<16x256xf32>
    %c0_9 = arith.constant 0 : index
    %c0_10 = arith.constant 0 : index
    %12 = vector.load %arg13[%c0_9, %c0_10] : memref<256x256xf32, #tpu.memory_space<vmem>>, vector<256x256xf32>
    %cst_11 = arith.constant dense<0.000000e+00> : vector<16x256xf32>
    %13 = tpu.matmul %10, %12, %cst_11 {dimension_numbers = #tpu.dot_dimension_numbers<[1], [0], [0], [1], [0, 0, 1, 1], [], []>} : vector<16x256xf32>, vector<256x256xf32>, vector<16x256xf32> -> vector<16x256xf32>
    %14 = arith.addf %11, %13 : vector<16x256xf32>
    %c0_12 = arith.constant 0 : index
    %c0_13 = arith.constant 0 : index
    %15 = vector.load %arg17[%c0_12, %c0_13] : memref<16x256xf32, #tpu.memory_space<vmem>>, vector<16x256xf32>
    tpu.vector_store %arg17[%c0_12, %c0_13], %14 {strides = array<i32>} : memref<16x256xf32, #tpu.memory_space<vmem>>, vector<16x256xf32>,
    %c1_i32 = arith.constant 1 : i32
    %16 = arith.cmpi eq, %arg1, %c1_i32 : i32
    %17 = arith.extui %16 : i1 to i32
    %c0_i32_14 = arith.constant 0 : i32
    %18 = arith.cmpi ne, %17, %c0_i32_14 : i32
    scf.if %18 {
      %c0_15 = arith.constant 0 : index
      %c0_16 = arith.constant 0 : index
      %19 = vector.load %arg17[%c0_15, %c0_16] : memref<16x256xf32, #tpu.memory_space<vmem>>, vector<16x256xf32>
      %c0_17 = arith.constant 0 : index
      %c0_18 = arith.constant 0 : index
      %c0_19 = arith.constant 0 : index
      %20 = vector.load %arg15[%c0_17, %c0_18, %c0_19] : memref<1x16x256xf32, #tpu.memory_space<vmem>>, vector<1x16x256xf32>
      %21 = vector.shape_cast %20 : vector<1x16x256xf32> to vector<16x256xf32>
      %22 = vector.shape_cast %19 : vector<16x256xf32> to vector<1x16x256xf32>
      tpu.vector_store %arg15[%c0_17, %c0_18, %c0_19], %22 {strides = array<i32>} : memref<1x16x256xf32, #tpu.memory_space<vmem>>, vector<1x16x256xf32>,
    } else {
    }
    return
  }
  func.func @transform_0(%arg0: i32, %arg1: i32) -> (i32, i32, i32) {
    %c0_i32 = arith.constant 0 : i32
    %c0_i32_0 = arith.constant 0 : i32
    %c0_i32_1 = arith.constant 0 : i32
    return %arg0, %c0_i32, %c0_i32_0 : i32, i32, i32
  }
  func.func @transform_1(%arg0: i32, %arg1: i32) -> (i32, i32) {
    %c0_i32 = arith.constant 0 : i32
    %c0_i32_0 = arith.constant 0 : i32
    %c0_i32_1 = arith.constant 0 : i32
    return %c0_i32, %c0_i32_0 : i32, i32
  }
  func.func @transform_2(%arg0: i32, %arg1: i32) -> (i32, i32) {
    %c0_i32 = arith.constant 0 : i32
    %c0_i32_0 = arith.constant 0 : i32
    %c0_i32_1 = arith.constant 0 : i32
    return %c0_i32, %c0_i32_0 : i32, i32
  }
  func.func @transform_3(%arg0: i32, %arg1: i32) -> (i32, i32, i32) {
    %c0_i32 = arith.constant 0 : i32
    %c0_i32_0 = arith.constant 0 : i32
    %c0_i32_1 = arith.constant 0 : i32
    %c0_i32_2 = arith.constant 0 : i32
    return %c0_i32, %c0_i32_0, %c0_i32_1 : i32, i32, i32
  }
  func.func @transform_4(%arg0: i32, %arg1: i32) -> (i32, i32) {
    %c0_i32 = arith.constant 0 : i32
    %c0_i32_0 = arith.constant 0 : i32
    %c0_i32_1 = arith.constant 0 : i32
    return %c0_i32, %c0_i32_0 : i32, i32
  }
  func.func @transform_5(%arg0: i32, %arg1: i32) -> (i32, i32) {
    %c0_i32 = arith.constant 0 : i32
    %c0_i32_0 = arith.constant 0 : i32
    %c0_i32_1 = arith.constant 0 : i32
    return %c0_i32, %c0_i32_0 : i32, i32
  }
  func.func @transform_6(%arg0: i32, %arg1: i32) -> (i32, i32) {
    %c0_i32 = arith.constant 0 : i32
    %c0_i32_0 = arith.constant 0 : i32
    %c0_i32_1 = arith.constant 0 : i32
    return %c0_i32, %c0_i32_0 : i32, i32
  }
  func.func @transform_7(%arg0: i32, %arg1: i32) -> (i32, i32) {
    %c0_i32 = arith.constant 0 : i32
    %c0_i32_0 = arith.constant 0 : i32
    %c0_i32_1 = arith.constant 0 : i32
    return %c0_i32, %c0_i32_0 : i32, i32
  }
  func.func @transform_8(%arg0: i32, %arg1: i32) -> (i32, i32) {
    %c0_i32 = arith.constant 0 : i32
    %c0_i32_0 = arith.constant 0 : i32
    %c0_i32_1 = arith.constant 0 : i32
    return %c0_i32, %c0_i32_0 : i32, i32
  }
  func.func @transform_9(%arg0: i32, %arg1: i32) -> (i32, i32) {
    %c0_i32 = arith.constant 0 : i32
    %c0_i32_0 = arith.constant 0 : i32
    return %c0_i32, %arg1 : i32, i32
  }
  func.func @transform_10(%arg0: i32, %arg1: i32) -> (i32, i32) {
    %c0_i32 = arith.constant 0 : i32
    %c0_i32_0 = arith.constant 0 : i32
    return %c0_i32, %arg1 : i32, i32
  }
  func.func @transform_11(%arg0: i32, %arg1: i32) -> (i32, i32) {
    %c0_i32 = arith.constant 0 : i32
    %c0_i32_0 = arith.constant 0 : i32
    return %arg1, %c0_i32 : i32, i32
  }
  func.func @transform_12(%arg0: i32, %arg1: i32) -> (i32, i32) {
    %c0_i32 = arith.constant 0 : i32
    %c0_i32_0 = arith.constant 0 : i32
    %c0_i32_1 = arith.constant 0 : i32
    return %c0_i32, %c0_i32_0 : i32, i32
  }
  func.func @transform_13(%arg0: i32, %arg1: i32) -> (i32, i32, i32) {
    %c0_i32 = arith.constant 0 : i32
    %c0_i32_0 = arith.constant 0 : i32
    %c0_i32_1 = arith.constant 0 : i32
    return %arg0, %c0_i32, %c0_i32_0 : i32, i32, i32
  }
}

</mosaic_0001>

<llo_original>
// kernel: tpu_custom_call.1
$region0: #{tpu_custom_call.1}
  #allocation0 [shape = 'u32[]', space=smem, size = 0x4, offset = 0x4, fixed_abs, tag = 'smem constant byte address 0x4 - core index']
  #allocation1 [shape = 'u32[144,128]{1,0:T(1,128)}', space=vmem, size = 0x12000, scoped, tag = 'internal scratch']
  #allocation2 [shape = 'f32[16,256]{1,0:T(8,128)}', space=vmem, size = 0x4000, scoped, tag = 'scratch operand']
  #allocation3 [shape = 'f32[16,256]{1,0:T(8,128)}', space=vmem, size = 0x4000, scoped, tag = 'scratch operand']
  %s0 = inlined_call_operand.hbm [shape: f32[2,16,256], index: 0, kind: input, shape index: {}]
  %s1 = inlined_call_operand.hbm [shape: f32[256,768], index: 1, kind: input, shape index: {}]
  %s2 = inlined_call_operand.hbm [shape: f32[1,768], index: 2, kind: input, shape index: {}]
  %s3 = inlined_call_operand.hbm [shape: f32[2,128,256], index: 3, kind: input, shape index: {}]
  %s4 = inlined_call_operand.hbm [shape: f32[1,256], index: 4, kind: input, shape index: {}]
  %s5 = inlined_call_operand.hbm [shape: f32[1,256], index: 5, kind: input, shape index: {}]
  %s6 = inlined_call_operand.hbm [shape: f32[1,256], index: 6, kind: input, shape index: {}]
  %s7 = inlined_call_operand.hbm [shape: f32[1,256], index: 7, kind: input, shape index: {}]
  %s8 = inlined_call_operand.hbm [shape: f32[1,256], index: 8, kind: input, shape index: {}]
  %s9 = inlined_call_operand.hbm [shape: f32[256,512], index: 9, kind: input, shape index: {}]
  %s10 = inlined_call_operand.hbm [shape: f32[1,512], index: 10, kind: input, shape index: {}]
  %s11 = inlined_call_operand.hbm [shape: f32[512,256], index: 11, kind: input, shape index: {}]
  %s12 = inlined_call_operand.hbm [shape: f32[1,256], index: 12, kind: input, shape index: {}]
  %s13 = inlined_call_operand.hbm [shape: f32[2,16,256], index: 13, kind: output, shape index: {}]
  %s14 = sld [smem:[#allocation0]]
  $region145: #{tpu_custom_call.1} parent=0
    _
  %s16 = ssub.s32 1, %s14
  %s17 = scalar_select 0, %s16, %s14
  $region1: #{tpu_custom_call.1} parent=0
    #allocation4 [shape = 'u8[32768]{0}', space=vmem, size = 0x8000, scoped, tag = 'input window, operand 0']
    #allocation5 [shape = 's32[2]{0}', space=sflag, size = 0x8, scoped, tag = 'scoped memory for tpu_custom_call.1']
    #allocation6 [shape = 's32[2]{0}', space=sflag, size = 0x8, scoped, tag = 'scoped memory for tpu_custom_call.1']
    #allocation7 [shape = 'u8[786432]{0}', space=vmem, size = 0xc0000, scoped, tag = 'input window, operand 1, single buffered']
    #allocation8 [shape = 's32[1]{0}', space=sflag, size = 0x4, scoped, tag = 'scoped memory for tpu_custom_call.1']
    #allocation9 [shape = 'u8[3072]{0}', space=vmem, size = 0xc00, scoped, tag = 'input window, operand 2, single buffered']
    #allocation10 [shape = 'u8[262144]{0}', space=vmem, size = 0x40000, scoped, tag = 'input window, operand 3, single buffered']
    #allocation11 [shape = 's32[1]{0}', space=sflag, size = 0x4, scoped, tag = 'scoped memory for tpu_custom_call.1']
    #allocation12 [shape = 'u8[1024]{0}', space=vmem, size = 0x400, scoped, tag = 'input window, operand 4, single buffered']
    #allocation13 [shape = 'u8[1024]{0}', space=vmem, size = 0x400, scoped, tag = 'input window, operand 5, single buffered']
    #allocation14 [shape = 's32[1]{0}', space=sflag, size = 0x4, scoped, tag = 'scoped memory for tpu_custom_call.1']
    #allocation15 [shape = 'u8[1024]{0}', space=vmem, size = 0x400, scoped, tag = 'input window, operand 6, single buffered']
    #allocation16 [shape = 'u8[1024]{0}', space=vmem, size = 0x400, scoped, tag = 'input window, operand 7, single buffered']
    #allocation17 [shape = 's32[1]{0}', space=sflag, size = 0x4, scoped, tag = 'scoped memory for tpu_custom_call.1']
    #allocation18 [shape = 'u8[1024]{0}', space=vmem, size = 0x400, scoped, tag = 'input window, operand 8, single buffered']
    #allocation19 [shape = 'u8[524288]{0}', space=vmem, size = 0x80000, scoped, tag = 'input window, operand 9']
    #allocation20 [shape = 's32[2]{0}', space=sflag, size = 0x8, scoped, tag = 'scoped memory for tpu_custom_call.1']
    #allocation21 [shape = 'u8[2048]{0}', space=vmem, size = 0x800, scoped, tag = 'input window, operand 10']
    #allocation22 [shape = 'u8[524288]{0}', space=vmem, size = 0x80000, scoped, tag = 'input window, operand 11']
    #allocation23 [shape = 's32[2]{0}', space=sflag, size = 0x8, scoped, tag = 'scoped memory for tpu_custom_call.1']
    #allocation24 [shape = 'u8[1024]{0}', space=vmem, size = 0x400, scoped, tag = 'input window, operand 12, single buffered']
    #allocation25 [shape = 'u8[32768]{0}', space=vmem, size = 0x8000, scoped, tag = 'output window, operand 0']
    %18 = vsyncpa [#allocation5], 0
    %s19 = scalar_lea.sflag [#allocation5], 1
    %20 = vsyncpa %s19, 0
    %21 = vsyncpa [#allocation8], 0
    %22 = vsyncpa [#allocation11], 0
    %23 = vsyncpa [#allocation14], 0
    %24 = vsyncpa [#allocation17], 0
    %25 = vsyncpa [#allocation20], 0
    %s26 = scalar_lea.sflag [#allocation20], 1
    %27 = vsyncpa %s26, 0
    %28 = vsyncpa [#allocation23], 0
    %s29 = scalar_lea.sflag [#allocation23], 1
    %30 = vsyncpa %s29, 0
    %31 = vsyncpa [#allocation6], 0
    %s32 = scalar_lea.sflag [#allocation6], 1
    %33 = vsyncpa %s32, 0
    loop: start=0, step=1, limit=6
    $region2: #{tpu_custom_call.1} parent=1 // loop_pre_header
      _
    $region3: #{tpu_custom_call.1} parent=1 // loop_header
      %s35 = sphi 0, %s39
      %p36 = scmp.ge.s32.totalorder %s35, 6
      %s42 = sphi 0, %s54
      %s43 = sphi 0, %s50
      %s44 = sphi 0, %s42
      %s45 = sphi 0, %s43
      %s46 = sphi 0, %s44
      %s47 = sphi 0, %s45
      %s57 = sphi 0, %s59
      %s60 = sphi 0, %s57
      %s61 = sphi 0, %s60
      %s77 = sphi 0, %s61
      %s81 = sphi 0, %s81
      %s83 = sphi 0, %s81
      %s84 = sphi 0, %s83
      %s98 = sphi 0, %s84
      %s102 = sphi 0, %s102
      %s104 = sphi 0, %s102
      %s105 = sphi 0, %s104
      %s119 = sphi 0, %s105
      %s123 = sphi 0, %s123
      %s125 = sphi 0, %s123
      %s126 = sphi 0, %s125
      %s140 = sphi 0, %s126
      %s144 = sphi 0, %s144
      %s146 = sphi 0, %s144
      %s147 = sphi 0, %s146
      %s161 = sphi 0, %s147
      %s165 = sphi 0, %s165
      %s167 = sphi 0, %s165
      %s168 = sphi 0, %s167
      %s182 = sphi 0, %s168
      %s186 = sphi 0, %s186
      %s188 = sphi 0, %s186
      %s189 = sphi 0, %s188
      %s203 = sphi 0, %s189
      %s207 = sphi 0, %s207
      %s209 = sphi 0, %s207
      %s210 = sphi 0, %s209
      %s224 = sphi 0, %s210
      %s228 = sphi 0, %s228
      %s230 = sphi 0, %s228
      %s231 = sphi 0, %s230
      %s245 = sphi 0, %s231
      %s251 = sphi 0, %s253
      %s254 = sphi 0, %s251
      %s255 = sphi 0, %s254
      %s271 = sphi 0, %s255
      %s277 = sphi 0, %s279
      %s280 = sphi 0, %s277
      %s281 = sphi 0, %s280
      %s297 = sphi 0, %s281
      %s303 = sphi 0, %s305
      %s306 = sphi 0, %s303
      %s307 = sphi 0, %s306
      %s323 = sphi 0, %s307
      %s327 = sphi 0, %s327
      %s329 = sphi 0, %s327
      %s330 = sphi 0, %s329
      %s344 = sphi 0, %s330
      %s350 = sphi 0, %s352
      %s353 = sphi 0, %s350
      %s354 = sphi 0, %s353
      %s370 = sphi 0, %s354
    $region4: #{tpu_custom_call.1} parent=1 // loop_header_branch
      %38 = sbr.rel (%p36) target = $region8
    $region5: #{tpu_custom_call.1} parent=1 // loop_body
      %s40 = ssub.s32 %s35, 1
      %s41 = ssub.s32 %s35, 2
      %s48 = sadd.s32 1, %s43
      %p49 = scmp.ge.s32.totalorder %s48, 2
      %s50 = scalar_select %p49, 0, %s48
      %s51 = sadd.s32 1, %s42
      %s52 = scalar_select %p49, %s51, %s42
      %p53 = scmp.ge.s32.totalorder %s52, 2
      %s54 = scalar_select %p53, 0, %s52
      %s55 = ssub.s32 %s42, %s54
      %p56 = scmp.eq.s32.totalorder %s55, 0
      %s58 = sadd.s32 %s57, 1
      %s59 = scalar_select %p56, %s57, %s58
      %p62 = pneg %p56
      %p63 = scmp.eq.s32.totalorder %s35, 3
      %p64 = por %p62, %p63
      %p65 = scmp.ne.s32.totalorder %s57, %s60
      %p66 = scmp.eq.s32.totalorder %s35, 0
      %p67 = por %p65, %p66
      %p68 = scmp.ne.s32.totalorder %s57, %s60
      %p69 = scmp.eq.s32.totalorder %s40, 3
      %p70 = por %p68, %p69
      %p71 = scmp.ne.s32.totalorder %s60, %s61
      %p72 = scmp.eq.s32.totalorder %s40, 0
      %p73 = por %p71, %p72
      %p74 = scmp.ne.s32.totalorder %s60, %s61
      %p75 = scmp.eq.s32.totalorder %s41, 3
      %p76 = por %p74, %p75
      %p78 = scmp.ne.s32.totalorder %s61, %s77
      %p79 = scmp.eq.s32.totalorder %s41, 0
      %p80 = por %p78, %p79
      %s82 = sadd.s32 %s81, 1
      %p85 = scmp.eq.s32.totalorder %s35, 3
      %p86 = scmp.ne.s32.totalorder %s81, %s83
      %p87 = scmp.eq.s32.totalorder %s35, 0
      %p88 = por %p86, %p87
      %p89 = scmp.ne.s32.totalorder %s81, %s83
      %p90 = scmp.eq.s32.totalorder %s40, 3
      %p91 = por %p89, %p90
      %p92 = scmp.ne.s32.totalorder %s83, %s84
      %p93 = scmp.eq.s32.totalorder %s40, 0
      %p94 = por %p92, %p93
      %p95 = scmp.ne.s32.totalorder %s83, %s84
      %p96 = scmp.eq.s32.totalorder %s41, 3
      %p97 = por %p95, %p96
      %p99 = scmp.ne.s32.totalorder %s84, %s98
      %p100 = scmp.eq.s32.totalorder %s41, 0
      %p101 = por %p99, %p100
      %s103 = sadd.s32 %s102, 1
      %p106 = scmp.eq.s32.totalorder %s35, 3
      %p107 = scmp.ne.s32.totalorder %s102, %s104
      %p108 = scmp.eq.s32.totalorder %s35, 0
      %p109 = por %p107, %p108
      %p110 = scmp.ne.s32.totalorder %s102, %s104
      %p111 = scmp.eq.s32.totalorder %s40, 3
      %p112 = por %p110, %p111
      %p113 = scmp.ne.s32.totalorder %s104, %s105
      %p114 = scmp.eq.s32.totalorder %s40, 0
      %p115 = por %p113, %p114
      %p116 = scmp.ne.s32.totalorder %s104, %s105
      %p117 = scmp.eq.s32.totalorder %s41, 3
      %p118 = por %p116, %p117
      %p120 = scmp.ne.s32.totalorder %s105, %s119
      %p121 = scmp.eq.s32.totalorder %s41, 0
      %p122 = por %p120, %p121
      %s124 = sadd.s32 %s123, 1
      %p127 = scmp.eq.s32.totalorder %s35, 3
      %p128 = scmp.ne.s32.totalorder %s123, %s125
      %p129 = scmp.eq.s32.totalorder %s35, 0
      %p130 = por %p128, %p129
      %p131 = scmp.ne.s32.totalorder %s123, %s125
      %p132 = scmp.eq.s32.totalorder %s40, 3
      %p133 = por %p131, %p132
      %p134 = scmp.ne.s32.totalorder %s125, %s126
      %p135 = scmp.eq.s32.totalorder %s40, 0
      %p136 = por %p134, %p135
      %p137 = scmp.ne.s32.totalorder %s125, %s126
      %p138 = scmp.eq.s32.totalorder %s41, 3
      %p139 = por %p137, %p138
      %p141 = scmp.ne.s32.totalorder %s126, %s140
      %p142 = scmp.eq.s32.totalorder %s41, 0
      %p143 = por %p141, %p142
      %s145 = sadd.s32 %s144, 1
      %p148 = scmp.eq.s32.totalorder %s35, 3
      %p149 = scmp.ne.s32.totalorder %s144, %s146
      %p150 = scmp.eq.s32.totalorder %s35, 0
      %p151 = por %p149, %p150
      %p152 = scmp.ne.s32.totalorder %s144, %s146
      %p153 = scmp.eq.s32.totalorder %s40, 3
      %p154 = por %p152, %p153
      %p155 = scmp.ne.s32.totalorder %s146, %s147
      %p156 = scmp.eq.s32.totalorder %s40, 0
      %p157 = por %p155, %p156
      %p158 = scmp.ne.s32.totalorder %s146, %s147
      %p159 = scmp.eq.s32.totalorder %s41, 3
      %p160 = por %p158, %p159
      %p162 = scmp.ne.s32.totalorder %s147, %s161
      %p163 = scmp.eq.s32.totalorder %s41, 0
      %p164 = por %p162, %p163
      %s166 = sadd.s32 %s165, 1
      %p169 = scmp.eq.s32.totalorder %s35, 3
      %p170 = scmp.ne.s32.totalorder %s165, %s167
      %p171 = scmp.eq.s32.totalorder %s35, 0
      %p172 = por %p170, %p171
      %p173 = scmp.ne.s32.totalorder %s165, %s167
      %p174 = scmp.eq.s32.totalorder %s40, 3
      %p175 = por %p173, %p174
      %p176 = scmp.ne.s32.totalorder %s167, %s168
      %p177 = scmp.eq.s32.totalorder %s40, 0
      %p178 = por %p176, %p177
      %p179 = scmp.ne.s32.totalorder %s167, %s168
      %p180 = scmp.eq.s32.totalorder %s41, 3
      %p181 = por %p179, %p180
      %p183 = scmp.ne.s32.totalorder %s168, %s182
      %p184 = scmp.eq.s32.totalorder %s41, 0
      %p185 = por %p183, %p184
      %s187 = sadd.s32 %s186, 1
      %p190 = scmp.eq.s32.totalorder %s35, 3
      %p191 = scmp.ne.s32.totalorder %s186, %s188
      %p192 = scmp.eq.s32.totalorder %s35, 0
      %p193 = por %p191, %p192
      %p194 = scmp.ne.s32.totalorder %s186, %s188
      %p195 = scmp.eq.s32.totalorder %s40, 3
      %p196 = por %p194, %p195
      %p197 = scmp.ne.s32.totalorder %s188, %s189
      %p198 = scmp.eq.s32.totalorder %s40, 0
      %p199 = por %p197, %p198
      %p200 = scmp.ne.s32.totalorder %s188, %s189
      %p201 = scmp.eq.s32.totalorder %s41, 3
      %p202 = por %p200, %p201
      %p204 = scmp.ne.s32.totalorder %s189, %s203
      %p205 = scmp.eq.s32.totalorder %s41, 0
      %p206 = por %p204, %p205
      %s208 = sadd.s32 %s207, 1
      %p211 = scmp.eq.s32.totalorder %s35, 3
      %p212 = scmp.ne.s32.totalorder %s207, %s209
      %p213 = scmp.eq.s32.totalorder %s35, 0
      %p214 = por %p212, %p213
      %p215 = scmp.ne.s32.totalorder %s207, %s209
      %p216 = scmp.eq.s32.totalorder %s40, 3
      %p217 = por %p215, %p216
      %p218 = scmp.ne.s32.totalorder %s209, %s210
      %p219 = scmp.eq.s32.totalorder %s40, 0
      %p220 = por %p218, %p219
      %p221 = scmp.ne.s32.totalorder %s209, %s210
      %p222 = scmp.eq.s32.totalorder %s41, 3
      %p223 = por %p221, %p222
      %p225 = scmp.ne.s32.totalorder %s210, %s224
      %p226 = scmp.eq.s32.totalorder %s41, 0
      %p227 = por %p225, %p226
      %s229 = sadd.s32 %s228, 1
      %p232 = scmp.eq.s32.totalorder %s35, 3
      %p233 = scmp.ne.s32.totalorder %s228, %s230
      %p234 = scmp.eq.s32.totalorder %s35, 0
      %p235 = por %p233, %p234
      %p236 = scmp.ne.s32.totalorder %s228, %s230
      %p237 = scmp.eq.s32.totalorder %s40, 3
      %p238 = por %p236, %p237
      %p239 = scmp.ne.s32.totalorder %s230, %s231
      %p240 = scmp.eq.s32.totalorder %s40, 0
      %p241 = por %p239, %p240
      %p242 = scmp.ne.s32.totalorder %s230, %s231
      %p243 = scmp.eq.s32.totalorder %s41, 3
      %p244 = por %p242, %p243
      %p246 = scmp.ne.s32.totalorder %s231, %s245
      %p247 = scmp.eq.s32.totalorder %s41, 0
      %p248 = por %p246, %p247
      %s249 = ssub.s32 %s43, %s50
      %p250 = scmp.eq.s32.totalorder %s249, 0
      %s252 = sadd.s32 %s251, 1
      %s253 = scalar_select %p250, %s251, %s252
      %p256 = pneg %p250
      %p257 = scmp.eq.s32.totalorder %s35, 3
      %p258 = por %p256, %p257
      %p259 = scmp.ne.s32.totalorder %s251, %s254
      %p260 = scmp.eq.s32.totalorder %s35, 0
      %p261 = por %p259, %p260
      %p262 = scmp.ne.s32.totalorder %s251, %s254
      %p263 = scmp.eq.s32.totalorder %s40, 3
      %p264 = por %p262, %p263
      %p265 = scmp.ne.s32.totalorder %s254, %s255
      %p266 = scmp.eq.s32.totalorder %s40, 0
      %p267 = por %p265, %p266
      %p268 = scmp.ne.s32.totalorder %s254, %s255
      %p269 = scmp.eq.s32.totalorder %s41, 3
      %p270 = por %p268, %p269
      %p272 = scmp.ne.s32.totalorder %s255, %s271
      %p273 = scmp.eq.s32.totalorder %s41, 0
      %p274 = por %p272, %p273
      %s275 = ssub.s32 %s43, %s50
      %p276 = scmp.eq.s32.totalorder %s275, 0
      %s278 = sadd.s32 %s277, 1
      %s279 = scalar_select %p276, %s277, %s278
      %p282 = pneg %p276
      %p283 = scmp.eq.s32.totalorder %s35, 3
      %p284 = por %p282, %p283
      %p285 = scmp.ne.s32.totalorder %s277, %s280
      %p286 = scmp.eq.s32.totalorder %s35, 0
      %p287 = por %p285, %p286
      %p288 = scmp.ne.s32.totalorder %s277, %s280
      %p289 = scmp.eq.s32.totalorder %s40, 3
      %p290 = por %p288, %p289
      %p291 = scmp.ne.s32.totalorder %s280, %s281
      %p292 = scmp.eq.s32.totalorder %s40, 0
      %p293 = por %p291, %p292
      %p294 = scmp.ne.s32.totalorder %s280, %s281
      %p295 = scmp.eq.s32.totalorder %s41, 3
      %p296 = por %p294, %p295
      %p298 = scmp.ne.s32.totalorder %s281, %s297
      %p299 = scmp.eq.s32.totalorder %s41, 0
      %p300 = por %p298, %p299
      %s301 = ssub.s32 %s43, %s50
      %p302 = scmp.eq.s32.totalorder %s301, 0
      %s304 = sadd.s32 %s303, 1
      %s305 = scalar_select %p302, %s303, %s304
      %p308 = pneg %p302
      %p309 = scmp.eq.s32.totalorder %s35, 3
      %p310 = por %p308, %p309
      %p311 = scmp.ne.s32.totalorder %s303, %s306
      %p312 = scmp.eq.s32.totalorder %s35, 0
      %p313 = por %p311, %p312
      %p314 = scmp.ne.s32.totalorder %s303, %s306
      %p315 = scmp.eq.s32.totalorder %s40, 3
      %p316 = por %p314, %p315
      %p317 = scmp.ne.s32.totalorder %s306, %s307
      %p318 = scmp.eq.s32.totalorder %s40, 0
      %p319 = por %p317, %p318
      %p320 = scmp.ne.s32.totalorder %s306, %s307
      %p321 = scmp.eq.s32.totalorder %s41, 3
      %p322 = por %p320, %p321
      %p324 = scmp.ne.s32.totalorder %s307, %s323
      %p325 = scmp.eq.s32.totalorder %s41, 0
      %p326 = por %p324, %p325
      %s328 = sadd.s32 %s327, 1
      %p331 = scmp.eq.s32.totalorder %s35, 3
      %p332 = scmp.ne.s32.totalorder %s327, %s329
      %p333 = scmp.eq.s32.totalorder %s35, 0
      %p334 = por %p332, %p333
      %p335 = scmp.ne.s32.totalorder %s327, %s329
      %p336 = scmp.eq.s32.totalorder %s40, 3
      %p337 = por %p335, %p336
      %p338 = scmp.ne.s32.totalorder %s329, %s330
      %p339 = scmp.eq.s32.totalorder %s40, 0
      %p340 = por %p338, %p339
      %p341 = scmp.ne.s32.totalorder %s329, %s330
      %p342 = scmp.eq.s32.totalorder %s41, 3
      %p343 = por %p341, %p342
      %p345 = scmp.ne.s32.totalorder %s330, %s344
      %p346 = scmp.eq.s32.totalorder %s41, 0
      %p347 = por %p345, %p346
      %s348 = ssub.s32 %s42, %s54
      %p349 = scmp.eq.s32.totalorder %s348, 0
      %s351 = sadd.s32 %s350, 1
      %s352 = scalar_select %p349, %s350, %s351
      %p355 = pneg %p349
      %p356 = scmp.eq.s32.totalorder %s35, 3
      %p357 = por %p355, %p356
      %p358 = scmp.ne.s32.totalorder %s350, %s353
      %p359 = scmp.eq.s32.totalorder %s35, 0
      %p360 = por %p358, %p359
      %p361 = scmp.ne.s32.totalorder %s350, %s353
      %p362 = scmp.eq.s32.totalorder %s40, 3
      %p363 = por %p361, %p362
      %p364 = scmp.ne.s32.totalorder %s353, %s354
      %p365 = scmp.eq.s32.totalorder %s40, 0
      %p366 = por %p364, %p365
      %p367 = scmp.ne.s32.totalorder %s353, %s354
      %p368 = scmp.eq.s32.totalorder %s41, 3
      %p369 = por %p367, %p368
      %p371 = scmp.ne.s32.totalorder %s354, %s370
      %p372 = scmp.eq.s32.totalorder %s41, 0
      %p373 = por %p371, %p372
      %p374 = scmp.le.s32.totalorder 1, %s35
      %p375 = scmp.lt.s32.totalorder %s35, 5
      %p376 = pnand %p374, %p375
      %p377 = pneg %p376
      // Predicated region
      $region9: #{tpu_custom_call.1} parent=5 // pred_check
        _
      $region10: #{tpu_custom_call.1} parent=5 // pred_check_branch
        %379 = sbr.rel (%p376) target = $region12
      $region11: #{tpu_custom_call.1} parent=5 // pred_region
        %s380 = ssub.s32 %s35, 1
        // Predicated region
        $region13: #{tpu_custom_call.1} parent=11 // pred_check
          %p381 = pneg %p94
        $region14: #{tpu_custom_call.1} parent=11 // pred_check_branch
          %383 = sbr.rel (%p381) target = $region16
        $region15: #{tpu_custom_call.1} parent=11 // pred_region
          %s385 = ssub.s32 24576, 24576
          %386 = vsyncadd [#allocation8], %s385
          %s387 = sshll.u32 [#allocation7], 4
          %s388 = int_to_ptr.vmem [resolvable:$true] %s387
          %393 = dma.hbm_to_vmem [thread:$0]  %s1, 24576, %s388, [#allocation8], 768, 768, 48
        $region16: #{tpu_custom_call.1} parent=11 // pred_fallthru
          _
        // Predicated region
        $region17: #{tpu_custom_call.1} parent=11 // pred_check
          %p394 = pneg %p115
        $region18: #{tpu_custom_call.1} parent=11 // pred_check_branch
          %396 = sbr.rel (%p394) target = $region20
        $region19: #{tpu_custom_call.1} parent=11 // pred_region
          %s398 = ssub.s32 96, 96
          %399 = vsyncadd [#allocation8], %s398
          %s401 = sshll.u32 [#allocation9], 4
          %s402 = int_to_ptr.vmem [resolvable:$true] %s401
          %404 = dma.hbm_to_vmem [thread:$0]  %s2, 96, %s402, [#allocation8]
        $region20: #{tpu_custom_call.1} parent=11 // pred_fallthru
          _
        // Predicated region
        $region21: #{tpu_custom_call.1} parent=11 // pred_check
          %p405 = pneg %p136
        $region22: #{tpu_custom_call.1} parent=11 // pred_check_branch
          %407 = sbr.rel (%p405) target = $region24
        $region23: #{tpu_custom_call.1} parent=11 // pred_region
          %s409 = ssub.s32 8192, 8192
          %410 = vsyncadd [#allocation11], %s409
          %s411 = sshll.u32 [#allocation10], 4
          %s412 = int_to_ptr.vmem [resolvable:$true] %s411
          %417 = dma.hbm_to_vmem [thread:$0]  %s3, 8192, %s412, [#allocation11], 256, 256, 16
        $region24: #{tpu_custom_call.1} parent=11 // pred_fallthru
          _
        // Predicated region
        $region25: #{tpu_custom_call.1} parent=11 // pred_check
          %p418 = pneg %p157
        $region26: #{tpu_custom_call.1} parent=11 // pred_check_branch
          %420 = sbr.rel (%p418) target = $region28
        $region27: #{tpu_custom_call.1} parent=11 // pred_region
          %s422 = ssub.s32 32, 32
          %423 = vsyncadd [#allocation11], %s422
          %s425 = sshll.u32 [#allocation12], 4
          %s426 = int_to_ptr.vmem [resolvable:$true] %s425
          %428 = dma.hbm_to_vmem [thread:$0]  %s4, 32, %s426, [#allocation11]
        $region28: #{tpu_custom_call.1} parent=11 // pred_fallthru
          _
        // Predicated region
        $region29: #{tpu_custom_call.1} parent=11 // pred_check
          %p429 = pneg %p178
        $region30: #{tpu_custom_call.1} parent=11 // pred_check_branch
          %431 = sbr.rel (%p429) target = $region32
        $region31: #{tpu_custom_call.1} parent=11 // pred_region
          %s433 = ssub.s32 32, 32
          %434 = vsyncadd [#allocation14], %s433
          %s436 = sshll.u32 [#allocation13], 4
          %s437 = int_to_ptr.vmem [resolvable:$true] %s436
          %439 = dma.hbm_to_vmem [thread:$0]  %s5, 32, %s437, [#allocation14]
        $region32: #{tpu_custom_call.1} parent=11 // pred_fallthru
          _
        // Predicated region
        $region33: #{tpu_custom_call.1} parent=11 // pred_check
          %p440 = pneg %p199
        $region34: #{tpu_custom_call.1} parent=11 // pred_check_branch
          %442 = sbr.rel (%p440) target = $region36
        $region35: #{tpu_custom_call.1} parent=11 // pred_region
          %s444 = ssub.s32 32, 32
          %445 = vsyncadd [#allocation14], %s444
          %s447 = sshll.u32 [#allocation15], 4
          %s448 = int_to_ptr.vmem [resolvable:$true] %s447
          %450 = dma.hbm_to_vmem [thread:$0]  %s6, 32, %s448, [#allocation14]
        $region36: #{tpu_custom_call.1} parent=11 // pred_fallthru
          _
        // Predicated region
        $region37: #{tpu_custom_call.1} parent=11 // pred_check
          %p451 = pneg %p220
        $region38: #{tpu_custom_call.1} parent=11 // pred_check_branch
          %453 = sbr.rel (%p451) target = $region40
        $region39: #{tpu_custom_call.1} parent=11 // pred_region
          %s455 = ssub.s32 32, 32
          %456 = vsyncadd [#allocation17], %s455
          %s458 = sshll.u32 [#allocation16], 4
          %s459 = int_to_ptr.vmem [resolvable:$true] %s458
          %461 = dma.hbm_to_vmem [thread:$0]  %s7, 32, %s459, [#allocation17]
        $region40: #{tpu_custom_call.1} parent=11 // pred_fallthru
          _
        // Predicated region
        $region41: #{tpu_custom_call.1} parent=11 // pred_check
          %p462 = pneg %p241
        $region42: #{tpu_custom_call.1} parent=11 // pred_check_branch
          %464 = sbr.rel (%p462) target = $region44
        $region43: #{tpu_custom_call.1} parent=11 // pred_region
          %s466 = ssub.s32 32, 32
          %467 = vsyncadd [#allocation17], %s466
          %s469 = sshll.u32 [#allocation18], 4
          %s470 = int_to_ptr.vmem [resolvable:$true] %s469
          %472 = dma.hbm_to_vmem [thread:$0]  %s8, 32, %s470, [#allocation17]
        $region44: #{tpu_custom_call.1} parent=11 // pred_fallthru
          _
        // Predicated region
        $region45: #{tpu_custom_call.1} parent=11 // pred_check
          %p473 = pneg %p340
        $region46: #{tpu_custom_call.1} parent=11 // pred_check_branch
          %475 = sbr.rel (%p473) target = $region48
        $region47: #{tpu_custom_call.1} parent=11 // pred_region
          %s477 = ssub.s32 32, 32
          %478 = vsyncadd [#allocation23], %s477
          %s480 = sshll.u32 [#allocation24], 4
          %s481 = int_to_ptr.vmem [resolvable:$true] %s480
          %483 = dma.hbm_to_vmem [thread:$0]  %s12, 32, %s481, [#allocation23]
        $region48: #{tpu_custom_call.1} parent=11 // pred_fallthru
          _
      $region12: #{tpu_custom_call.1} parent=5 // pred_fallthru
        _
      %p484 = scmp.lt.s32.totalorder %s35, 4
      // Predicated region
      $region49: #{tpu_custom_call.1} parent=5 // pred_check
        %p485 = pneg %p484
      $region50: #{tpu_custom_call.1} parent=5 // pred_check_branch
        %487 = sbr.rel (%p485) target = $region52
      $region51: #{tpu_custom_call.1} parent=5 // pred_region
        // Predicated region
        $region53: #{tpu_custom_call.1} parent=51 // pred_check
          %p488 = pneg %p67
        $region54: #{tpu_custom_call.1} parent=51 // pred_check_branch
          %490 = sbr.rel (%p488) target = $region56
        $region55: #{tpu_custom_call.1} parent=51 // pred_region
          %s491 = sand.u32 %s57, 1
          %s492 = scalar_lea.sflag [#allocation5], %s491
          %s493 = sand.u32 %s57, 1
          %s494 = smul.addr %s493, 32
          %s495 = scalar_lea.vmem [#allocation4], %s494
          %s497 = ssub.s32 512, 512
          %498 = vsyncadd %s492, %s497
          %s499 = smul.addr %s42, 4
          %s500 = smul.addr %s499, 128
          %s501 = scalar_lea.hbm %s0, %s500
          %s502 = sshll.u32 %s495, 4
          %s503 = int_to_ptr.vmem [resolvable:$true] %s502
          %508 = dma.hbm_to_vmem [thread:$0]  %s501, 512, %s503, %s492, 256, 256, 16
        $region56: #{tpu_custom_call.1} parent=51 // pred_fallthru
          _
        // Predicated region
        $region57: #{tpu_custom_call.1} parent=51 // pred_check
          %p509 = pneg %p261
        $region58: #{tpu_custom_call.1} parent=51 // pred_check_branch
          %511 = sbr.rel (%p509) target = $region60
        $region59: #{tpu_custom_call.1} parent=51 // pred_region
          %s512 = sand.u32 %s35, 1
          %s513 = scalar_lea.sflag [#allocation20], %s512
          %s514 = sand.u32 %s251, 1
          %s515 = smul.addr %s514, 512
          %s516 = scalar_lea.vmem [#allocation19], %s515
          %s517 = smul.u32 2, %s43
          %s519 = ssub.s32 8192, 8192
          %520 = vsyncadd %s513, %s519
          %s521 = smul.addr %s517, 128
          %s522 = scalar_lea.hbm %s9, %s521
          %s523 = sshll.u32 %s516, 4
          %s524 = int_to_ptr.vmem [resolvable:$true] %s523
          %529 = dma.hbm_to_vmem [thread:$0]  %s522, 8192, %s524, %s513, 512, 256, 16
        $region60: #{tpu_custom_call.1} parent=51 // pred_fallthru
          _
        // Predicated region
        $region61: #{tpu_custom_call.1} parent=51 // pred_check
          %p530 = pneg %p287
        $region62: #{tpu_custom_call.1} parent=51 // pred_check_branch
          %532 = sbr.rel (%p530) target = $region64
        $region63: #{tpu_custom_call.1} parent=51 // pred_region
          %s533 = sand.u32 %s35, 1
          %s534 = scalar_lea.sflag [#allocation20], %s533
          %s535 = sand.u32 %s277, 1
          %s536 = smul.addr %s535, 2
          %s537 = scalar_lea.vmem [#allocation21], %s536
          %s538 = smul.u32 2, %s43
          %s540 = ssub.s32 32, 32
          %541 = vsyncadd %s534, %s540
          %s542 = smul.addr %s538, 16
          %s543 = scalar_lea.hbm %s10, %s542
          %s545 = sshll.u32 %s537, 4
          %s546 = int_to_ptr.vmem [resolvable:$true] %s545
          %548 = dma.hbm_to_vmem [thread:$0]  %s543, 32, %s546, %s534
        $region64: #{tpu_custom_call.1} parent=51 // pred_fallthru
          _
        // Predicated region
        $region65: #{tpu_custom_call.1} parent=51 // pred_check
          %p549 = pneg %p313
        $region66: #{tpu_custom_call.1} parent=51 // pred_check_branch
          %551 = sbr.rel (%p549) target = $region68
        $region67: #{tpu_custom_call.1} parent=51 // pred_region
          %s552 = sand.u32 %s35, 1
          %s553 = scalar_lea.sflag [#allocation23], %s552
          %s554 = sand.u32 %s303, 1
          %s555 = smul.addr %s554, 512
          %s556 = scalar_lea.vmem [#allocation22], %s555
          %s557 = smul.u32 32, %s43
          %s559 = ssub.s32 8192, 8192
          %560 = vsyncadd %s553, %s559
          %s561 = smul.addr %s557, 2
          %s562 = smul.addr %s561, 128
          %s563 = scalar_lea.hbm %s11, %s562
          %s564 = sshll.u32 %s556, 4
          %s565 = int_to_ptr.vmem [resolvable:$true] %s564
          %570 = dma.hbm_to_vmem [thread:$0]  %s563, 8192, %s565, %s553, 256, 256, 16
        $region68: #{tpu_custom_call.1} parent=51 // pred_fallthru
          _
      $region52: #{tpu_custom_call.1} parent=5 // pred_fallthru
        _
      %p571 = scmp.le.s32.totalorder 1, %s35
      %p572 = scmp.lt.s32.totalorder %s35, 5
      %p573 = pnand %p571, %p572
      %p574 = pneg %p573
      // Predicated region
      $region69: #{tpu_custom_call.1} parent=5 // pred_check
        _
      $region70: #{tpu_custom_call.1} parent=5 // pred_check_branch
        %576 = sbr.rel (%p573) target = $region72
      $region71: #{tpu_custom_call.1} parent=5 // pred_region
        %s577 = ssub.s32 %s35, 1
        %s578 = sand.u32 %s60, 1
        %s579 = scalar_lea.sflag [#allocation5], %s578
        %s580 = sand.u32 %s60, 1
        %s581 = smul.addr %s580, 32
        %s582 = scalar_lea.vmem [#allocation4], %s581
        // Predicated region
        $region73: #{tpu_custom_call.1} parent=71 // pred_check
          %p583 = pneg %p73
        $region74: #{tpu_custom_call.1} parent=71 // pred_check_branch
          %585 = sbr.rel (%p583) target = $region76
        $region75: #{tpu_custom_call.1} parent=71 // pred_region
          %586 = dma.done %s579, 512
        $region76: #{tpu_custom_call.1} parent=71 // pred_fallthru
          _
        // Predicated region
        $region77: #{tpu_custom_call.1} parent=71 // pred_check
          %p587 = pneg %p94
        $region78: #{tpu_custom_call.1} parent=71 // pred_check_branch
          %589 = sbr.rel (%p587) target = $region80
        $region79: #{tpu_custom_call.1} parent=71 // pred_region
          %590 = dma.done [#allocation8], 24576
        $region80: #{tpu_custom_call.1} parent=71 // pred_fallthru
          _
        // Predicated region
        $region81: #{tpu_custom_call.1} parent=71 // pred_check
          %p591 = pneg %p115
        $region82: #{tpu_custom_call.1} parent=71 // pred_check_branch
          %593 = sbr.rel (%p591) target = $region84
        $region83: #{tpu_custom_call.1} parent=71 // pred_region
          %594 = dma.done [#allocation8], 96
        $region84: #{tpu_custom_call.1} parent=71 // pred_fallthru
          _
        // Predicated region
        $region85: #{tpu_custom_call.1} parent=71 // pred_check
          %p595 = pneg %p136
        $region86: #{tpu_custom_call.1} parent=71 // pred_check_branch
          %597 = sbr.rel (%p595) target = $region88
        $region87: #{tpu_custom_call.1} parent=71 // pred_region
          %598 = dma.done [#allocation11], 8192
        $region88: #{tpu_custom_call.1} parent=71 // pred_fallthru
          _
        // Predicated region
        $region89: #{tpu_custom_call.1} parent=71 // pred_check
          %p599 = pneg %p157
        $region90: #{tpu_custom_call.1} parent=71 // pred_check_branch
          %601 = sbr.rel (%p599) target = $region92
        $region91: #{tpu_custom_call.1} parent=71 // pred_region
          %602 = dma.done [#allocation11], 32
        $region92: #{tpu_custom_call.1} parent=71 // pred_fallthru
          _
        // Predicated region
        $region93: #{tpu_custom_call.1} parent=71 // pred_check
          %p603 = pneg %p178
        $region94: #{tpu_custom_call.1} parent=71 // pred_check_branch
          %605 = sbr.rel (%p603) target = $region96
        $region95: #{tpu_custom_call.1} parent=71 // pred_region
          %606 = dma.done [#allocation14], 32
        $region96: #{tpu_custom_call.1} parent=71 // pred_fallthru
          _
        // Predicated region
        $region97: #{tpu_custom_call.1} parent=71 // pred_check
          %p607 = pneg %p199
        $region98: #{tpu_custom_call.1} parent=71 // pred_check_branch
          %609 = sbr.rel (%p607) target = $region100
        $region99: #{tpu_custom_call.1} parent=71 // pred_region
          %610 = dma.done [#allocation14], 32
        $region100: #{tpu_custom_call.1} parent=71 // pred_fallthru
          _
        // Predicated region
        $region101: #{tpu_custom_call.1} parent=71 // pred_check
          %p611 = pneg %p220
        $region102: #{tpu_custom_call.1} parent=71 // pred_check_branch
          %613 = sbr.rel (%p611) target = $region104
        $region103: #{tpu_custom_call.1} parent=71 // pred_region
          %614 = dma.done [#allocation17], 32
        $region104: #{tpu_custom_call.1} parent=71 // pred_fallthru
          _
        // Predicated region
        $region105: #{tpu_custom_call.1} parent=71 // pred_check
          %p615 = pneg %p241
        $region106: #{tpu_custom_call.1} parent=71 // pred_check_branch
          %617 = sbr.rel (%p615) target = $region108
        $region107: #{tpu_custom_call.1} parent=71 // pred_region
          %618 = dma.done [#allocation17], 32
        $region108: #{tpu_custom_call.1} parent=71 // pred_fallthru
          _
        %s619 = sand.u32 %s40, 1
        %s620 = scalar_lea.sflag [#allocation20], %s619
        %s621 = sand.u32 %s254, 1
        %s622 = smul.addr %s621, 512
        %s623 = scalar_lea.vmem [#allocation19], %s622
        // Predicated region
        $region109: #{tpu_custom_call.1} parent=71 // pred_check
          %p624 = pneg %p267
        $region110: #{tpu_custom_call.1} parent=71 // pred_check_branch
          %626 = sbr.rel (%p624) target = $region112
        $region111: #{tpu_custom_call.1} parent=71 // pred_region
          %627 = dma.done %s620, 8192
        $region112: #{tpu_custom_call.1} parent=71 // pred_fallthru
          _
        %s628 = sand.u32 %s40, 1
        %s629 = scalar_lea.sflag [#allocation20], %s628
        %s630 = sand.u32 %s280, 1
        %s631 = smul.addr %s630, 2
        %s632 = scalar_lea.vmem [#allocation21], %s631
        // Predicated region
        $region113: #{tpu_custom_call.1} parent=71 // pred_check
          %p633 = pneg %p293
        $region114: #{tpu_custom_call.1} parent=71 // pred_check_branch
          %635 = sbr.rel (%p633) target = $region116
        $region115: #{tpu_custom_call.1} parent=71 // pred_region
          %636 = dma.done %s629, 32
        $region116: #{tpu_custom_call.1} parent=71 // pred_fallthru
          _
        %s637 = sand.u32 %s40, 1
        %s638 = scalar_lea.sflag [#allocation23], %s637
        %s639 = sand.u32 %s306, 1
        %s640 = smul.addr %s639, 512
        %s641 = scalar_lea.vmem [#allocation22], %s640
        // Predicated region
        $region117: #{tpu_custom_call.1} parent=71 // pred_check
          %p642 = pneg %p319
        $region118: #{tpu_custom_call.1} parent=71 // pred_check_branch
          %644 = sbr.rel (%p642) target = $region120
        $region119: #{tpu_custom_call.1} parent=71 // pred_region
          %645 = dma.done %s638, 8192
        $region120: #{tpu_custom_call.1} parent=71 // pred_fallthru
          _
        // Predicated region
        $region121: #{tpu_custom_call.1} parent=71 // pred_check
          %p646 = pneg %p340
        $region122: #{tpu_custom_call.1} parent=71 // pred_check_branch
          %648 = sbr.rel (%p646) target = $region124
        $region123: #{tpu_custom_call.1} parent=71 // pred_region
          %649 = dma.done [#allocation23], 32
        $region124: #{tpu_custom_call.1} parent=71 // pred_fallthru
          _
        %s650 = sand.u32 %s60, 1
        %s651 = scalar_lea.sflag [#allocation5], %s650
        %s652 = sand.u32 %s60, 1
        %s653 = smul.addr %s652, 32
        %s654 = scalar_lea.vmem [#allocation4], %s653
        %p655 = pneg %p73
        %p656 = pneg %p70
        %p657 = pneg %p94
        %p658 = pneg %p91
        %p659 = pneg %p115
        %p660 = pneg %p112
        %p661 = pneg %p136
        %p662 = pneg %p133
        %p663 = pneg %p157
        %p664 = pneg %p154
        %p665 = pneg %p178
        %p666 = pneg %p175
        %p667 = pneg %p199
        %p668 = pneg %p196
        %p669 = pneg %p220
        %p670 = pneg %p217
        %p671 = pneg %p241
        %p672 = pneg %p238
        %s673 = sand.u32 %s40, 1
        %s674 = scalar_lea.sflag [#allocation20], %s673
        %s675 = sand.u32 %s254, 1
        %s676 = smul.addr %s675, 512
        %s677 = scalar_lea.vmem [#allocation19], %s676
        %p678 = pneg %p267
        %p679 = pneg %p264
        %s680 = sand.u32 %s40, 1
        %s681 = scalar_lea.sflag [#allocation20], %s680
        %s682 = sand.u32 %s280, 1
        %s683 = smul.addr %s682, 2
        %s684 = scalar_lea.vmem [#allocation21], %s683
        %p685 = pneg %p293
        %p686 = pneg %p290
        %s687 = sand.u32 %s40, 1
        %s688 = scalar_lea.sflag [#allocation23], %s687
        %s689 = sand.u32 %s306, 1
        %s690 = smul.addr %s689, 512
        %s691 = scalar_lea.vmem [#allocation22], %s690
        %p692 = pneg %p319
        %p693 = pneg %p316
        %p694 = pneg %p340
        %p695 = pneg %p337
        %p696 = pneg %p366
        %p697 = pneg %p363
        %s698 = sand.u32 %s353, 1
        %s699 = scalar_lea.sflag [#allocation6], %s698
        %s700 = sand.u32 %s353, 1
        %s701 = smul.addr %s700, 32
        %s702 = scalar_lea.vmem [#allocation25], %s701
        %s703 = smul.u32 2, %s45
        %s704 = smul.u32 2, %s45
        %s705 = smul.u32 32, %s45
        %p706 = scmp.eq.s32.totalorder %s45, 0
        // Predicated region
        $region125: #{tpu_custom_call.1} parent=71 // pred_check
          %p707 = pneg %p706
        $region126: #{tpu_custom_call.1} parent=71 // pred_check_branch
          %709 = sbr.rel (%p707) target = $region128
        $region127: #{tpu_custom_call.1} parent=71 // pred_region
          %v710 = vld [vmem:[%s582] sm:$0xff]
          %v711 = vld [vmem:[%s582 + $0x8] sm:$0xff]
          %v712 = vld [vmem:[%s582 + $0x10] sm:$0xff]
          %v713 = vld [vmem:[%s582 + $0x18] sm:$0xff]
          %v714 = vld [vmem:[#allocation13] sm:$0x3]
          %v715 = vld [vmem:[#allocation15] sm:$0x3]
          %v716 = vadd.f32 %v710, %v711
          %717 = vadd.xlane.f32.xlu0 %v716
          %v718 = vpop.xlane.xlu0 %717
          %v719 = vadd.f32 %v712, %v713
          %720 = vadd.xlane.f32.xlu0 %v719
          %v721 = vpop.xlane.xlu0 %720
          %v722 = vrcp.pop 256.0
          %v723 = vmul.f32 %v718, %v722
          %v724 = vmul.f32 %v721, %v722
          %v725 = vsub.f32 %v710, %v723
          %v726 = vsub.f32 %v711, %v723
          %v727 = vsub.f32 %v712, %v724
          %v728 = vsub.f32 %v713, %v724
          %v729 = vmul.f32 %v725, %v725
          %v730 = vmul.f32 %v726, %v726
          %v731 = vmul.f32 %v727, %v727
          %v732 = vmul.f32 %v728, %v728
          %v733 = vadd.f32 %v729, %v730
          %734 = vadd.xlane.f32.xlu0 %v733
          %v735 = vpop.xlane.xlu0 %734
          %v736 = vadd.f32 %v731, %v732
          %737 = vadd.xlane.f32.xlu0 %v736
          %v738 = vpop.xlane.xlu0 %737
          %v739 = vmul.f32 %v735, %v722
          %v740 = vmul.f32 %v738, %v722
          %v741 = vadd.f32 %v739, 1e-05
          %v742 = vadd.f32 %v740, 1e-05
          %v743 = vrsqrt.pop %v741
          %v744 = vrsqrt.pop %v742
          %v745 = vmul.f32 %v725, %v743
          %v746 = vmul.f32 %v726, %v743
          %v747 = vmul.f32 %v727, %v744
          %v748 = vmul.f32 %v728, %v744
          %v750 = vlaneseq
          %v751 = vshrl.u32 %v750, 7
          %v752 = vsub.s32 0, %v751
          %v753 = vrot.slane %v714, %v752
          %v754 = vlaneseq
          %v755 = vshrl.u32 %v754, 7
          %v756 = vsub.s32 1, %v755
          %v757 = vrot.slane %v714, %v756
          %v760 = vmul.f32 %v745, %v753
          %v761 = vmul.f32 %v746, %v757
          %v762 = vmul.f32 %v747, %v753
          %v763 = vmul.f32 %v748, %v757
          %v765 = vlaneseq
          %v766 = vshrl.u32 %v765, 7
          %v767 = vsub.s32 0, %v766
          %v768 = vrot.slane %v715, %v767
          %v769 = vlaneseq
          %v770 = vshrl.u32 %v769, 7
          %v771 = vsub.s32 1, %v770
          %v772 = vrot.slane %v715, %v771
          %v775 = vadd.f32 %v760, %v768
          %v776 = vadd.f32 %v761, %v772
          %v777 = vadd.f32 %v762, %v768
          %v778 = vadd.f32 %v763, %v772
          %v779 = vld [vmem:[#allocation7] sm:$0xff]
          %v780 = vld [vmem:[#allocation7 + $0x8] sm:$0xff]
          %v781 = vld [vmem:[#allocation7 + $0x10] sm:$0xff]
          %v782 = vld [vmem:[#allocation7 + $0x18] sm:$0xff]
          %v783 = vld [vmem:[#allocation7 + $0x20] sm:$0xff]
          %v784 = vld [vmem:[#allocation7 + $0x28] sm:$0xff]
          %v785 = vld [vmem:[#allocation7 + $0x30] sm:$0xff]
          %v786 = vld [vmem:[#allocation7 + $0x38] sm:$0xff]
          %v787 = vld [vmem:[#allocation7 + $0x40] sm:$0xff]
          %v788 = vld [vmem:[#allocation7 + $0x48] sm:$0xff]
          %v789 = vld [vmem:[#allocation7 + $0x50] sm:$0xff]
          %v790 = vld [vmem:[#allocation7 + $0x58] sm:$0xff]
          %v791 = vld [vmem:[#allocation7 + $0x60] sm:$0xff]
          %v792 = vld [vmem:[#allocation7 + $0x68] sm:$0xff]
          %v793 = vld [vmem:[#allocation7 + $0x70] sm:$0xff]
          %v794 = vld [vmem:[#allocation7 + $0x78] sm:$0xff]
          %v795 = vld [vmem:[#allocation7 + $0x80] sm:$0xff]
          %v796 = vld [vmem:[#allocation7 + $0x88] sm:$0xff]
          %v797 = vld [vmem:[#allocation7 + $0x90] sm:$0xff]
          %v798 = vld [vmem:[#allocation7 + $0x98] sm:$0xff]
          %v799 = vld [vmem:[#allocation7 + $0xa0] sm:$0xff]
          %v800 = vld [vmem:[#allocation7 + $0xa8] sm:$0xff]
          %v801 = vld [vmem:[#allocation7 + $0xb0] sm:$0xff]
          %v802 = vld [vmem:[#allocation7 + $0xb8] sm:$0xff]
          %v803 = vld [vmem:[#allocation7 + $0xc0] sm:$0xff]
          %v804 = vld [vmem:[#allocation7 + $0xc8] sm:$0xff]
          %v805 = vld [vmem:[#allocation7 + $0xd0] sm:$0xff]
          %v806 = vld [vmem:[#allocation7 + $0xd8] sm:$0xff]
          %v807 = vld [vmem:[#allocation7 + $0xe0] sm:$0xff]
          %v808 = vld [vmem:[#allocation7 + $0xe8] sm:$0xff]
          %v809 = vld [vmem:[#allocation7 + $0xf0] sm:$0xff]
          %v810 = vld [vmem:[#allocation7 + $0xf8] sm:$0xff]
          %v811 = vld [vmem:[#allocation7 + $0x100] sm:$0xff]
          %v812 = vld [vmem:[#allocation7 + $0x108] sm:$0xff]
          %v813 = vld [vmem:[#allocation7 + $0x110] sm:$0xff]
          %v814 = vld [vmem:[#allocation7 + $0x118] sm:$0xff]
          %v815 = vld [vmem:[#allocation7 + $0x120] sm:$0xff]
          %v816 = vld [vmem:[#allocation7 + $0x128] sm:$0xff]
          %v817 = vld [vmem:[#allocation7 + $0x130] sm:$0xff]
          %v818 = vld [vmem:[#allocation7 + $0x138] sm:$0xff]
          %v819 = vld [vmem:[#allocation7 + $0x140] sm:$0xff]
          %v820 = vld [vmem:[#allocation7 + $0x148] sm:$0xff]
          %v821 = vld [vmem:[#allocation7 + $0x150] sm:$0xff]
          %v822 = vld [vmem:[#allocation7 + $0x158] sm:$0xff]
          %v823 = vld [vmem:[#allocation7 + $0x160] sm:$0xff]
          %v824 = vld [vmem:[#allocation7 + $0x168] sm:$0xff]
          %v825 = vld [vmem:[#allocation7 + $0x170] sm:$0xff]
          %v826 = vld [vmem:[#allocation7 + $0x178] sm:$0xff]
          %v827 = vld [vmem:[#allocation7 + $0x180] sm:$0xff]
          %v828 = vld [vmem:[#allocation7 + $0x188] sm:$0xff]
          %v829 = vld [vmem:[#allocation7 + $0x190] sm:$0xff]
          %v830 = vld [vmem:[#allocation7 + $0x198] sm:$0xff]
          %v831 = vld [vmem:[#allocation7 + $0x1a0] sm:$0xff]
          %v832 = vld [vmem:[#allocation7 + $0x1a8] sm:$0xff]
          %v833 = vld [vmem:[#allocation7 + $0x1b0] sm:$0xff]
          %v834 = vld [vmem:[#allocation7 + $0x1b8] sm:$0xff]
          %v835 = vld [vmem:[#allocation7 + $0x1c0] sm:$0xff]
          %v836 = vld [vmem:[#allocation7 + $0x1c8] sm:$0xff]
          %v837 = vld [vmem:[#allocation7 + $0x1d0] sm:$0xff]
          %v838 = vld [vmem:[#allocation7 + $0x1d8] sm:$0xff]
          %v839 = vld [vmem:[#allocation7 + $0x1e0] sm:$0xff]
          %v840 = vld [vmem:[#allocation7 + $0x1e8] sm:$0xff]
          %v841 = vld [vmem:[#allocation7 + $0x1f0] sm:$0xff]
          %v842 = vld [vmem:[#allocation7 + $0x1f8] sm:$0xff]
          %v843 = vld [vmem:[#allocation7 + $0x200] sm:$0xff]
          %v844 = vld [vmem:[#allocation7 + $0x208] sm:$0xff]
          %v845 = vld [vmem:[#allocation7 + $0x210] sm:$0xff]
          %v846 = vld [vmem:[#allocation7 + $0x218] sm:$0xff]
          %v847 = vld [vmem:[#allocation7 + $0x220] sm:$0xff]
          %v848 = vld [vmem:[#allocation7 + $0x228] sm:$0xff]
          %v849 = vld [vmem:[#allocation7 + $0x230] sm:$0xff]
          %v850 = vld [vmem:[#allocation7 + $0x238] sm:$0xff]
          %v851 = vld [vmem:[#allocation7 + $0x240] sm:$0xff]
          %v852 = vld [vmem:[#allocation7 + $0x248] sm:$0xff]
          %v853 = vld [vmem:[#allocation7 + $0x250] sm:$0xff]
          %v854 = vld [vmem:[#allocation7 + $0x258] sm:$0xff]
          %v855 = vld [vmem:[#allocation7 + $0x260] sm:$0xff]
          %v856 = vld [vmem:[#allocation7 + $0x268] sm:$0xff]
          %v857 = vld [vmem:[#allocation7 + $0x270] sm:$0xff]
          %v858 = vld [vmem:[#allocation7 + $0x278] sm:$0xff]
          %v859 = vld [vmem:[#allocation7 + $0x280] sm:$0xff]
          %v860 = vld [vmem:[#allocation7 + $0x288] sm:$0xff]
          %v861 = vld [vmem:[#allocation7 + $0x290] sm:$0xff]
          %v862 = vld [vmem:[#allocation7 + $0x298] sm:$0xff]
          %v863 = vld [vmem:[#allocation7 + $0x2a0] sm:$0xff]
          %v864 = vld [vmem:[#allocation7 + $0x2a8] sm:$0xff]
          %v865 = vld [vmem:[#allocation7 + $0x2b0] sm:$0xff]
          %v866 = vld [vmem:[#allocation7 + $0x2b8] sm:$0xff]
          %v867 = vld [vmem:[#allocation7 + $0x2c0] sm:$0xff]
          %v868 = vld [vmem:[#allocation7 + $0x2c8] sm:$0xff]
          %v869 = vld [vmem:[#allocation7 + $0x2d0] sm:$0xff]
          %v870 = vld [vmem:[#allocation7 + $0x2d8] sm:$0xff]
          %v871 = vld [vmem:[#allocation7 + $0x2e0] sm:$0xff]
          %v872 = vld [vmem:[#allocation7 + $0x2e8] sm:$0xff]
          %v873 = vld [vmem:[#allocation7 + $0x2f0] sm:$0xff]
          %v874 = vld [vmem:[#allocation7 + $0x2f8] sm:$0xff]
          %v875 = vld [vmem:[#allocation7 + $0x300] sm:$0xff]
          %v876 = vld [vmem:[#allocation7 + $0x308] sm:$0xff]
          %v877 = vld [vmem:[#allocation7 + $0x310] sm:$0xff]
          %v878 = vld [vmem:[#allocation7 + $0x318] sm:$0xff]
          %v879 = vld [vmem:[#allocation7 + $0x320] sm:$0xff]
          %v880 = vld [vmem:[#allocation7 + $0x328] sm:$0xff]
          %v881 = vld [vmem:[#allocation7 + $0x330] sm:$0xff]
          %v882 = vld [vmem:[#allocation7 + $0x338] sm:$0xff]
          %v883 = vld [vmem:[#allocation7 + $0x340] sm:$0xff]
          %v884 = vld [vmem:[#allocation7 + $0x348] sm:$0xff]
          %v885 = vld [vmem:[#allocation7 + $0x350] sm:$0xff]
          %v886 = vld [vmem:[#allocation7 + $0x358] sm:$0xff]
          %v887 = vld [vmem:[#allocation7 + $0x360] sm:$0xff]
          %v888 = vld [vmem:[#allocation7 + $0x368] sm:$0xff]
          %v889 = vld [vmem:[#allocation7 + $0x370] sm:$0xff]
          %v890 = vld [vmem:[#allocation7 + $0x378] sm:$0xff]
          %v891 = vld [vmem:[#allocation7 + $0x380] sm:$0xff]
          %v892 = vld [vmem:[#allocation7 + $0x388] sm:$0xff]
          %v893 = vld [vmem:[#allocation7 + $0x390] sm:$0xff]
          %v894 = vld [vmem:[#allocation7 + $0x398] sm:$0xff]
          %v895 = vld [vmem:[#allocation7 + $0x3a0] sm:$0xff]
          %v896 = vld [vmem:[#allocation7 + $0x3a8] sm:$0xff]
          %v897 = vld [vmem:[#allocation7 + $0x3b0] sm:$0xff]
          %v898 = vld [vmem:[#allocation7 + $0x3b8] sm:$0xff]
          %v899 = vld [vmem:[#allocation7 + $0x3c0] sm:$0xff]
          %v900 = vld [vmem:[#allocation7 + $0x3c8] sm:$0xff]
          %v901 = vld [vmem:[#allocation7 + $0x3d0] sm:$0xff]
          %v902 = vld [vmem:[#allocation7 + $0x3d8] sm:$0xff]
          %v903 = vld [vmem:[#allocation7 + $0x3e0] sm:$0xff]
          %v904 = vld [vmem:[#allocation7 + $0x3e8] sm:$0xff]
          %v905 = vld [vmem:[#allocation7 + $0x3f0] sm:$0xff]
          %v906 = vld [vmem:[#allocation7 + $0x3f8] sm:$0xff]
          %v907 = vld [vmem:[#allocation7 + $0x400] sm:$0xff]
          %v908 = vld [vmem:[#allocation7 + $0x408] sm:$0xff]
          %v909 = vld [vmem:[#allocation7 + $0x410] sm:$0xff]
          %v910 = vld [vmem:[#allocation7 + $0x418] sm:$0xff]
          %v911 = vld [vmem:[#allocation7 + $0x420] sm:$0xff]
          %v912 = vld [vmem:[#allocation7 + $0x428] sm:$0xff]
          %v913 = vld [vmem:[#allocation7 + $0x430] sm:$0xff]
          %v914 = vld [vmem:[#allocation7 + $0x438] sm:$0xff]
          %v915 = vld [vmem:[#allocation7 + $0x440] sm:$0xff]
          %v916 = vld [vmem:[#allocation7 + $0x448] sm:$0xff]
          %v917 = vld [vmem:[#allocation7 + $0x450] sm:$0xff]
          %v918 = vld [vmem:[#allocation7 + $0x458] sm:$0xff]
          %v919 = vld [vmem:[#allocation7 + $0x460] sm:$0xff]
          %v920 = vld [vmem:[#allocation7 + $0x468] sm:$0xff]
          %v921 = vld [vmem:[#allocation7 + $0x470] sm:$0xff]
          %v922 = vld [vmem:[#allocation7 + $0x478] sm:$0xff]
          %v923 = vld [vmem:[#allocation7 + $0x480] sm:$0xff]
          %v924 = vld [vmem:[#allocation7 + $0x488] sm:$0xff]
          %v925 = vld [vmem:[#allocation7 + $0x490] sm:$0xff]
          %v926 = vld [vmem:[#allocation7 + $0x498] sm:$0xff]
          %v927 = vld [vmem:[#allocation7 + $0x4a0] sm:$0xff]
          %v928 = vld [vmem:[#allocation7 + $0x4a8] sm:$0xff]
          %v929 = vld [vmem:[#allocation7 + $0x4b0] sm:$0xff]
          %v930 = vld [vmem:[#allocation7 + $0x4b8] sm:$0xff]
          %v931 = vld [vmem:[#allocation7 + $0x4c0] sm:$0xff]
          %v932 = vld [vmem:[#allocation7 + $0x4c8] sm:$0xff]
          %v933 = vld [vmem:[#allocation7 + $0x4d0] sm:$0xff]
          %v934 = vld [vmem:[#allocation7 + $0x4d8] sm:$0xff]
          %v935 = vld [vmem:[#allocation7 + $0x4e0] sm:$0xff]
          %v936 = vld [vmem:[#allocation7 + $0x4e8] sm:$0xff]
          %v937 = vld [vmem:[#allocation7 + $0x4f0] sm:$0xff]
          %v938 = vld [vmem:[#allocation7 + $0x4f8] sm:$0xff]
          %v939 = vld [vmem:[#allocation7 + $0x500] sm:$0xff]
          %v940 = vld [vmem:[#allocation7 + $0x508] sm:$0xff]
          %v941 = vld [vmem:[#allocation7 + $0x510] sm:$0xff]
          %v942 = vld [vmem:[#allocation7 + $0x518] sm:$0xff]
          %v943 = vld [vmem:[#allocation7 + $0x520] sm:$0xff]
          %v944 = vld [vmem:[#allocation7 + $0x528] sm:$0xff]
          %v945 = vld [vmem:[#allocation7 + $0x530] sm:$0xff]
          %v946 = vld [vmem:[#allocation7 + $0x538] sm:$0xff]
          %v947 = vld [vmem:[#allocation7 + $0x540] sm:$0xff]
          %v948 = vld [vmem:[#allocation7 + $0x548] sm:$0xff]
          %v949 = vld [vmem:[#allocation7 + $0x550] sm:$0xff]
          %v950 = vld [vmem:[#allocation7 + $0x558] sm:$0xff]
          %v951 = vld [vmem:[#allocation7 + $0x560] sm:$0xff]
          %v952 = vld [vmem:[#allocation7 + $0x568] sm:$0xff]
          %v953 = vld [vmem:[#allocation7 + $0x570] sm:$0xff]
          %v954 = vld [vmem:[#allocation7 + $0x578] sm:$0xff]
          %v955 = vld [vmem:[#allocation7 + $0x580] sm:$0xff]
          %v956 = vld [vmem:[#allocation7 + $0x588] sm:$0xff]
          %v957 = vld [vmem:[#allocation7 + $0x590] sm:$0xff]
          %v958 = vld [vmem:[#allocation7 + $0x598] sm:$0xff]
          %v959 = vld [vmem:[#allocation7 + $0x5a0] sm:$0xff]
          %v960 = vld [vmem:[#allocation7 + $0x5a8] sm:$0xff]
          %v961 = vld [vmem:[#allocation7 + $0x5b0] sm:$0xff]
          %v962 = vld [vmem:[#allocation7 + $0x5b8] sm:$0xff]
          %v963 = vld [vmem:[#allocation7 + $0x5c0] sm:$0xff]
          %v964 = vld [vmem:[#allocation7 + $0x5c8] sm:$0xff]
          %v965 = vld [vmem:[#allocation7 + $0x5d0] sm:$0xff]
          %v966 = vld [vmem:[#allocation7 + $0x5d8] sm:$0xff]
          %v967 = vld [vmem:[#allocation7 + $0x5e0] sm:$0xff]
          %v968 = vld [vmem:[#allocation7 + $0x5e8] sm:$0xff]
          %v969 = vld [vmem:[#allocation7 + $0x5f0] sm:$0xff]
          %v970 = vld [vmem:[#allocation7 + $0x5f8] sm:$0xff]
          %v971 = vld [vmem:[#allocation9] sm:$0x3f]
          %v973 = vlaneseq
          %v974 = vshrl.u32 %v973, 7
          %v975 = vsub.s32 0, %v974
          %v976 = vrot.slane %v971, %v975
          %v977 = vlaneseq
          %v978 = vshrl.u32 %v977, 7
          %v979 = vsub.s32 1, %v978
          %v980 = vrot.slane %v971, %v979
          %v981 = vlaneseq
          %v982 = vshrl.u32 %v981, 7
          %v983 = vsub.s32 2, %v982
          %v984 = vrot.slane %v971, %v983
          %v985 = vlaneseq
          %v986 = vshrl.u32 %v985, 7
          %v987 = vsub.s32 3, %v986
          %v988 = vrot.slane %v971, %v987
          %v989 = vlaneseq
          %v990 = vshrl.u32 %v989, 7
          %v991 = vsub.s32 4, %v990
          %v992 = vrot.slane %v971, %v991
          %v993 = vlaneseq
          %v994 = vshrl.u32 %v993, 7
          %v995 = vsub.s32 5, %v994
          %v996 = vrot.slane %v971, %v995
          %1003 = vmatprep.subr.mxu0 %v780
          %1004 = vmatpush1.msra.mxu0 %v779
          %1005 = vmatprep.subr.mxu0 %v786
          %1006 = vmatpush1.msra.mxu0 %v785
          %1007 = vmatprep.subr.mxu0 %v792
          %1008 = vmatpush1.msra.mxu0 %v791
          %1009 = vmatprep.subr.mxu0 %v798
          %1010 = vmatpush1.msra.mxu0 %v797
          %1011 = vmatprep.subr.mxu0 %v804
          %1012 = vmatpush1.msra.mxu0 %v803
          %1013 = vmatprep.subr.mxu0 %v810
          %1014 = vmatpush1.msra.mxu0 %v809
          %1015 = vmatprep.subr.mxu0 %v816
          %1016 = vmatpush1.msra.mxu0 %v815
          %1017 = vmatprep.subr.mxu0 %v822
          %1018 = vmatpush1.msra.mxu0 %v821
          %1019 = vmatprep.subr.mxu0 %v828
          %1020 = vmatpush1.msra.mxu0 %v827
          %1021 = vmatprep.subr.mxu0 %v834
          %1022 = vmatpush1.msra.mxu0 %v833
          %1023 = vmatprep.subr.mxu0 %v840
          %1024 = vmatpush1.msra.mxu0 %v839
          %1025 = vmatprep.subr.mxu0 %v846
          %1026 = vmatpush1.msra.mxu0 %v845
          %1027 = vmatprep.subr.mxu0 %v852
          %1028 = vmatpush1.msra.mxu0 %v851
          %1029 = vmatprep.subr.mxu0 %v858
          %1030 = vmatpush1.msra.mxu0 %v857
          %1031 = vmatprep.subr.mxu0 %v864
          %1032 = vmatpush1.msra.mxu0 %v863
          %1033 = vmatprep.subr.mxu0 %v870
          %1034 = vmatpush1.msra.mxu0 %v869
          %1035 = vmatprep.subr.mxu0 %v876
          %1036 = vmatpush1.msra.mxu0 %v875
          %1037 = vmatprep.subr.mxu0 %v882
          %1038 = vmatpush1.msra.mxu0 %v881
          %1039 = vmatprep.subr.mxu0 %v888
          %1040 = vmatpush1.msra.mxu0 %v887
          %1041 = vmatprep.subr.mxu0 %v894
          %1042 = vmatpush1.msra.mxu0 %v893
          %1043 = vmatprep.subr.mxu0 %v900
          %1044 = vmatpush1.msra.mxu0 %v899
          %1045 = vmatprep.subr.mxu0 %v906
          %1046 = vmatpush1.msra.mxu0 %v905
          %1047 = vmatprep.subr.mxu0 %v912
          %1048 = vmatpush1.msra.mxu0 %v911
          %1049 = vmatprep.subr.mxu0 %v918
          %1050 = vmatpush1.msra.mxu0 %v917
          %1051 = vmatprep.subr.mxu0 %v924
          %1052 = vmatpush1.msra.mxu0 %v923
          %1053 = vmatprep.subr.mxu0 %v930
          %1054 = vmatpush1.msra.mxu0 %v929
          %1055 = vmatprep.subr.mxu0 %v936
          %1056 = vmatpush1.msra.mxu0 %v935
          %1057 = vmatprep.subr.mxu0 %v942
          %1058 = vmatpush1.msra.mxu0 %v941
          %1059 = vmatprep.subr.mxu0 %v948
          %1060 = vmatpush1.msra.mxu0 %v947
          %1061 = vmatprep.subr.mxu0 %v954
          %1062 = vmatpush1.msra.mxu0 %v953
          %1063 = vmatprep.subr.mxu0 %v960
          %1064 = vmatpush1.msra.mxu0 %v959
          %1065 = vmatprep.subr.mxu0 %v966
          %1066 = vmatpush1.msra.mxu0 %v965
          %1067 = vmatprep.mubr.f32.mxu0 %v776
          %1068 = vmatmul.mubr.f32.gmra.mrb[0].mxu0 %v775
          %v1069 = vpop.f32.mrb[0].mxu0
          %v1070 = vadd.f32 %v976, %v1069
          %v1071 = vpop.f32.mrb[0].mxu0
          %v1072 = vadd.f32 %v980, %v1071
          %1073 = vmatprep.mubr.f32.mxu0 %v778
          %1074 = vmatmul.mubr.f32.gmra.mrb[0].mxu0 %v777
          %v1075 = vpop.f32.mrb[0].mxu0
          %v1076 = vadd.f32 %v976, %v1075
          %v1077 = vpop.f32.mrb[0].mxu0
          %v1078 = vadd.f32 %v980, %v1077
          %1079 = vdwg.mxu0
          %1080 = vmatprep.subr.mxu0 %v782
          %1081 = vmatpush1.msra.mxu0 %v781
          %1082 = vmatprep.subr.mxu0 %v788
          %1083 = vmatpush1.msra.mxu0 %v787
          %1084 = vmatprep.subr.mxu0 %v794
          %1085 = vmatpush1.msra.mxu0 %v793
          %1086 = vmatprep.subr.mxu0 %v800
          %1087 = vmatpush1.msra.mxu0 %v799
          %1088 = vmatprep.subr.mxu0 %v806
          %1089 = vmatpush1.msra.mxu0 %v805
          %1090 = vmatprep.subr.mxu0 %v812
          %1091 = vmatpush1.msra.mxu0 %v811
          %1092 = vmatprep.subr.mxu0 %v818
          %1093 = vmatpush1.msra.mxu0 %v817
          %1094 = vmatprep.subr.mxu0 %v824
          %1095 = vmatpush1.msra.mxu0 %v823
          %1096 = vmatprep.subr.mxu0 %v830
          %1097 = vmatpush1.msra.mxu0 %v829
          %1098 = vmatprep.subr.mxu0 %v836
          %1099 = vmatpush1.msra.mxu0 %v835
          %1100 = vmatprep.subr.mxu0 %v842
          %1101 = vmatpush1.msra.mxu0 %v841
          %1102 = vmatprep.subr.mxu0 %v848
          %1103 = vmatpush1.msra.mxu0 %v847
          %1104 = vmatprep.subr.mxu0 %v854
          %1105 = vmatpush1.msra.mxu0 %v853
          %1106 = vmatprep.subr.mxu0 %v860
          %1107 = vmatpush1.msra.mxu0 %v859
          %1108 = vmatprep.subr.mxu0 %v866
          %1109 = vmatpush1.msra.mxu0 %v865
          %1110 = vmatprep.subr.mxu0 %v872
          %1111 = vmatpush1.msra.mxu0 %v871
          %1112 = vmatprep.subr.mxu0 %v878
          %1113 = vmatpush1.msra.mxu0 %v877
          %1114 = vmatprep.subr.mxu0 %v884
          %1115 = vmatpush1.msra.mxu0 %v883
          %1116 = vmatprep.subr.mxu0 %v890
          %1117 = vmatpush1.msra.mxu0 %v889
          %1118 = vmatprep.subr.mxu0 %v896
          %1119 = vmatpush1.msra.mxu0 %v895
          %1120 = vmatprep.subr.mxu0 %v902
          %1121 = vmatpush1.msra.mxu0 %v901
          %1122 = vmatprep.subr.mxu0 %v908
          %1123 = vmatpush1.msra.mxu0 %v907
          %1124 = vmatprep.subr.mxu0 %v914
          %1125 = vmatpush1.msra.mxu0 %v913
          %1126 = vmatprep.subr.mxu0 %v920
          %1127 = vmatpush1.msra.mxu0 %v919
          %1128 = vmatprep.subr.mxu0 %v926
          %1129 = vmatpush1.msra.mxu0 %v925
          %1130 = vmatprep.subr.mxu0 %v932
          %1131 = vmatpush1.msra.mxu0 %v931
          %1132 = vmatprep.subr.mxu0 %v938
          %1133 = vmatpush1.msra.mxu0 %v937
          %1134 = vmatprep.subr.mxu0 %v944
          %1135 = vmatpush1.msra.mxu0 %v943
          %1136 = vmatprep.subr.mxu0 %v950
          %1137 = vmatpush1.msra.mxu0 %v949
          %1138 = vmatprep.subr.mxu0 %v956
          %1139 = vmatpush1.msra.mxu0 %v955
          %1140 = vmatprep.subr.mxu0 %v962
          %1141 = vmatpush1.msra.mxu0 %v961
          %1142 = vmatprep.subr.mxu0 %v968
          %1143 = vmatpush1.msra.mxu0 %v967
          %1144 = vmatprep.mubr.f32.mxu0 %v776
          %1145 = vmatmul.mubr.f32.gmra.mrb[0].mxu0 %v775
          %v1146 = vpop.f32.mrb[0].mxu0
          %v1147 = vadd.f32 %v984, %v1146
          %v1148 = vpop.f32.mrb[0].mxu0
          %v1149 = vadd.f32 %v988, %v1148
          %1150 = vmatprep.mubr.f32.mxu0 %v778
          %1151 = vmatmul.mubr.f32.gmra.mrb[0].mxu0 %v777
          %v1152 = vpop.f32.mrb[0].mxu0
          %v1153 = vadd.f32 %v984, %v1152
          %v1154 = vpop.f32.mrb[0].mxu0
          %v1155 = vadd.f32 %v988, %v1154
          %1156 = vdwg.mxu0
          %1157 = vmatprep.subr.mxu0 %v784
          %1158 = vmatpush1.msra.mxu0 %v783
          %1159 = vmatprep.subr.mxu0 %v790
          %1160 = vmatpush1.msra.mxu0 %v789
          %1161 = vmatprep.subr.mxu0 %v796
          %1162 = vmatpush1.msra.mxu0 %v795
          %1163 = vmatprep.subr.mxu0 %v802
          %1164 = vmatpush1.msra.mxu0 %v801
          %1165 = vmatprep.subr.mxu0 %v808
          %1166 = vmatpush1.msra.mxu0 %v807
          %1167 = vmatprep.subr.mxu0 %v814
          %1168 = vmatpush1.msra.mxu0 %v813
          %1169 = vmatprep.subr.mxu0 %v820
          %1170 = vmatpush1.msra.mxu0 %v819
          %1171 = vmatprep.subr.mxu0 %v826
          %1172 = vmatpush1.msra.mxu0 %v825
          %1173 = vmatprep.subr.mxu0 %v832
          %1174 = vmatpush1.msra.mxu0 %v831
          %1175 = vmatprep.subr.mxu0 %v838
          %1176 = vmatpush1.msra.mxu0 %v837
          %1177 = vmatprep.subr.mxu0 %v844
          %1178 = vmatpush1.msra.mxu0 %v843
          %1179 = vmatprep.subr.mxu0 %v850
          %1180 = vmatpush1.msra.mxu0 %v849
          %1181 = vmatprep.subr.mxu0 %v856
          %1182 = vmatpush1.msra.mxu0 %v855
          %1183 = vmatprep.subr.mxu0 %v862
          %1184 = vmatpush1.msra.mxu0 %v861
          %1185 = vmatprep.subr.mxu0 %v868
          %1186 = vmatpush1.msra.mxu0 %v867
          %1187 = vmatprep.subr.mxu0 %v874
          %1188 = vmatpush1.msra.mxu0 %v873
          %1189 = vmatprep.subr.mxu0 %v880
          %1190 = vmatpush1.msra.mxu0 %v879
          %1191 = vmatprep.subr.mxu0 %v886
          %1192 = vmatpush1.msra.mxu0 %v885
          %1193 = vmatprep.subr.mxu0 %v892
          %1194 = vmatpush1.msra.mxu0 %v891
          %1195 = vmatprep.subr.mxu0 %v898
          %1196 = vmatpush1.msra.mxu0 %v897
          %1197 = vmatprep.subr.mxu0 %v904
          %1198 = vmatpush1.msra.mxu0 %v903
          %1199 = vmatprep.subr.mxu0 %v910
          %1200 = vmatpush1.msra.mxu0 %v909
          %1201 = vmatprep.subr.mxu0 %v916
          %1202 = vmatpush1.msra.mxu0 %v915
          %1203 = vmatprep.subr.mxu0 %v922
          %1204 = vmatpush1.msra.mxu0 %v921
          %1205 = vmatprep.subr.mxu0 %v928
          %1206 = vmatpush1.msra.mxu0 %v927
          %1207 = vmatprep.subr.mxu0 %v934
          %1208 = vmatpush1.msra.mxu0 %v933
          %1209 = vmatprep.subr.mxu0 %v940
          %1210 = vmatpush1.msra.mxu0 %v939
          %1211 = vmatprep.subr.mxu0 %v946
          %1212 = vmatpush1.msra.mxu0 %v945
          %1213 = vmatprep.subr.mxu0 %v952
          %1214 = vmatpush1.msra.mxu0 %v951
          %1215 = vmatprep.subr.mxu0 %v958
          %1216 = vmatpush1.msra.mxu0 %v957
          %1217 = vmatprep.subr.mxu0 %v964
          %1218 = vmatpush1.msra.mxu0 %v963
          %1219 = vmatprep.subr.mxu0 %v970
          %1220 = vmatpush1.msra.mxu0 %v969
          %1221 = vmatprep.mubr.f32.mxu0 %v776
          %1222 = vmatmul.mubr.f32.gmra.mrb[0].mxu0 %v775
          %v1223 = vpop.f32.mrb[0].mxu0
          %v1224 = vadd.f32 %v992, %v1223
          %v1225 = vpop.f32.mrb[0].mxu0
          %v1226 = vadd.f32 %v996, %v1225
          %1227 = vmatprep.mubr.f32.mxu0 %v778
          %1228 = vmatmul.mubr.f32.gmra.mrb[0].mxu0 %v777
          %v1229 = vpop.f32.mrb[0].mxu0
          %v1230 = vadd.f32 %v992, %v1229
          %v1231 = vpop.f32.mrb[0].mxu0
          %v1232 = vadd.f32 %v996, %v1231
          %1233 = vdwg.mxu0
          %v1234 = vcombine.high %v1070, 0.0
          %v1236 = vunpack.c.l.s4 1983009808
          %v1237 = vunpack.c.0.s8 %v1236
          %v1238 = vlaneseq
          %v1239 = vshrl.u32 %v1238, 7
          %v1240 = vsub.s32 %v1237, %v1239
          %v1241 = vrot.slane %v1070, %v1240
          %v1243 = vunpack.c.l.s4 1983009808
          %v1244 = vunpack.c.0.s8 %v1243
          %v1245 = vlaneseq
          %v1246 = vshrl.u32 %v1245, 7
          %v1247 = vsub.s32 %v1244, %v1246
          %v1248 = vrot.slane %v1234, %v1247
          %v1249 = vcombine.high %v1072, 0.0
          %v1251 = vunpack.c.l.s4 1983009808
          %v1252 = vunpack.c.0.s8 %v1251
          %v1253 = vlaneseq
          %v1254 = vshrl.u32 %v1253, 7
          %v1255 = vsub.s32 %v1252, %v1254
          %v1256 = vrot.slane %v1072, %v1255
          %v1258 = vunpack.c.l.s4 1983009808
          %v1259 = vunpack.c.0.s8 %v1258
          %v1260 = vlaneseq
          %v1261 = vshrl.u32 %v1260, 7
          %v1262 = vsub.s32 %v1259, %v1261
          %v1263 = vrot.slane %v1249, %v1262
          %v1264 = vcombine.low %v1241, %v1256
          %v1265 = vcombine.high %v1241, %v1256
          %v1267 = vunpack.c.l.s4 1934713408
          %v1268 = vunpack.c.0.s8 %v1267
          %v1269 = vlaneseq
          %v1270 = vshrl.u32 %v1269, 7
          %v1271 = vsub.s32 %v1268, %v1270
          %v1272 = vrot.slane %v1264, %v1271
          %v1274 = vunpack.c.l.s4 1934713408
          %v1275 = vunpack.c.0.s8 %v1274
          %v1276 = vlaneseq
          %v1277 = vshrl.u32 %v1276, 7
          %v1278 = vsub.s32 %v1275, %v1277
          %v1279 = vrot.slane %v1265, %v1278
          %v1280 = vcombine.low %v1248, %v1263
          %v1281 = vcombine.high %v1248, %v1263
          %v1283 = vunpack.c.l.s4 1934713408
          %v1284 = vunpack.c.0.s8 %v1283
          %v1285 = vlaneseq
          %v1286 = vshrl.u32 %v1285, 7
          %v1287 = vsub.s32 %v1284, %v1286
          %v1288 = vrot.slane %v1280, %v1287
          %v1290 = vunpack.c.l.s4 1934713408
          %v1291 = vunpack.c.0.s8 %v1290
          %v1292 = vlaneseq
          %v1293 = vshrl.u32 %v1292, 7
          %v1294 = vsub.s32 %v1291, %v1293
          %v1295 = vrot.slane %v1281, %v1294
          %v1296 = vcombine.high %v1272, 0.0
          %v1297 = vcombine.high %v1279, 0.0
          %v1298 = vcombine.high %v1288, 0.0
          %v1299 = vcombine.high %v1295, 0.0
          %v1300 = vcombine.high %v1076, 0.0
          %v1302 = vunpack.c.l.s4 1983009808
          %v1303 = vunpack.c.0.s8 %v1302
          %v1304 = vlaneseq
          %v1305 = vshrl.u32 %v1304, 7
          %v1306 = vsub.s32 %v1303, %v1305
          %v1307 = vrot.slane %v1076, %v1306
          %v1309 = vunpack.c.l.s4 1983009808
          %v1310 = vunpack.c.0.s8 %v1309
          %v1311 = vlaneseq
          %v1312 = vshrl.u32 %v1311, 7
          %v1313 = vsub.s32 %v1310, %v1312
          %v1314 = vrot.slane %v1300, %v1313
          %v1315 = vcombine.high %v1078, 0.0
          %v1317 = vunpack.c.l.s4 1983009808
          %v1318 = vunpack.c.0.s8 %v1317
          %v1319 = vlaneseq
          %v1320 = vshrl.u32 %v1319, 7
          %v1321 = vsub.s32 %v1318, %v1320
          %v1322 = vrot.slane %v1078, %v1321
          %v1324 = vunpack.c.l.s4 1983009808
          %v1325 = vunpack.c.0.s8 %v1324
          %v1326 = vlaneseq
          %v1327 = vshrl.u32 %v1326, 7
          %v1328 = vsub.s32 %v1325, %v1327
          %v1329 = vrot.slane %v1315, %v1328
          %v1330 = vcombine.low %v1307, %v1322
          %v1331 = vcombine.high %v1307, %v1322
          %v1333 = vunpack.c.l.s4 1934713408
          %v1334 = vunpack.c.0.s8 %v1333
          %v1335 = vlaneseq
          %v1336 = vshrl.u32 %v1335, 7
          %v1337 = vsub.s32 %v1334, %v1336
          %v1338 = vrot.slane %v1330, %v1337
          %v1340 = vunpack.c.l.s4 1934713408
          %v1341 = vunpack.c.0.s8 %v1340
          %v1342 = vlaneseq
          %v1343 = vshrl.u32 %v1342, 7
          %v1344 = vsub.s32 %v1341, %v1343
          %v1345 = vrot.slane %v1331, %v1344
          %v1346 = vcombine.low %v1314, %v1329
          %v1347 = vcombine.high %v1314, %v1329
          %v1349 = vunpack.c.l.s4 1934713408
          %v1350 = vunpack.c.0.s8 %v1349
          %v1351 = vlaneseq
          %v1352 = vshrl.u32 %v1351, 7
          %v1353 = vsub.s32 %v1350, %v1352
          %v1354 = vrot.slane %v1346, %v1353
          %v1356 = vunpack.c.l.s4 1934713408
          %v1357 = vunpack.c.0.s8 %v1356
          %v1358 = vlaneseq
          %v1359 = vshrl.u32 %v1358, 7
          %v1360 = vsub.s32 %v1357, %v1359
          %v1361 = vrot.slane %v1347, %v1360
          %v1362 = vcombine.high %v1338, 0.0
          %v1363 = vcombine.high %v1345, 0.0
          %v1364 = vcombine.high %v1354, 0.0
          %v1365 = vcombine.high %v1361, 0.0
          %v1366 = vcombine.low %v1272, %v1279
          %v1368 = vunpack.c.l.s4 1983009808
          %v1369 = vunpack.c.0.s8 %v1368
          %v1370 = vlaneseq
          %v1371 = vshrl.u32 %v1370, 7
          %v1372 = vsub.s32 %v1369, %v1371
          %v1373 = vrot.slane %v1366, %v1372
          %v1374 = vcombine.low %v1296, %v1297
          %v1376 = vunpack.c.l.s4 1983009808
          %v1377 = vunpack.c.0.s8 %v1376
          %v1378 = vlaneseq
          %v1379 = vshrl.u32 %v1378, 7
          %v1380 = vsub.s32 %v1377, %v1379
          %v1381 = vrot.slane %v1374, %v1380
          %v1382 = vcombine.low %v1288, %v1295
          %v1384 = vunpack.c.l.s4 1983009808
          %v1385 = vunpack.c.0.s8 %v1384
          %v1386 = vlaneseq
          %v1387 = vshrl.u32 %v1386, 7
          %v1388 = vsub.s32 %v1385, %v1387
          %v1389 = vrot.slane %v1382, %v1388
          %v1390 = vcombine.low %v1298, %v1299
          %v1392 = vunpack.c.l.s4 1983009808
          %v1393 = vunpack.c.0.s8 %v1392
          %v1394 = vlaneseq
          %v1395 = vshrl.u32 %v1394, 7
          %v1396 = vsub.s32 %v1393, %v1395
          %v1397 = vrot.slane %v1390, %v1396
          %v1398 = vcombine.low %v1373, %v1381
          %v1400 = vunpack.c.l.s4 1934713408
          %v1401 = vunpack.c.0.s8 %v1400
          %v1402 = vlaneseq
          %v1403 = vshrl.u32 %v1402, 7
          %v1404 = vsub.s32 %v1401, %v1403
          %v1405 = vrot.slane %v1398, %v1404
          %v1406 = vcombine.low %v1389, %v1397
          %v1408 = vunpack.c.l.s4 1934713408
          %v1409 = vunpack.c.0.s8 %v1408
          %v1410 = vlaneseq
          %v1411 = vshrl.u32 %v1410, 7
          %v1412 = vsub.s32 %v1409, %v1411
          %v1413 = vrot.slane %v1406, %v1412
          %v1414 = vcombine.low %v1405, %v1413
          %v1415 = vcombine.high %v1405, %v1413
          %v1416 = vcombine.low %v1338, %v1345
          %v1418 = vunpack.c.l.s4 1983009808
          %v1419 = vunpack.c.0.s8 %v1418
          %v1420 = vlaneseq
          %v1421 = vshrl.u32 %v1420, 7
          %v1422 = vsub.s32 %v1419, %v1421
          %v1423 = vrot.slane %v1416, %v1422
          %v1424 = vcombine.low %v1362, %v1363
          %v1426 = vunpack.c.l.s4 1983009808
          %v1427 = vunpack.c.0.s8 %v1426
          %v1428 = vlaneseq
          %v1429 = vshrl.u32 %v1428, 7
          %v1430 = vsub.s32 %v1427, %v1429
          %v1431 = vrot.slane %v1424, %v1430
          %v1432 = vcombine.low %v1354, %v1361
          %v1434 = vunpack.c.l.s4 1983009808
          %v1435 = vunpack.c.0.s8 %v1434
          %v1436 = vlaneseq
          %v1437 = vshrl.u32 %v1436, 7
          %v1438 = vsub.s32 %v1435, %v1437
          %v1439 = vrot.slane %v1432, %v1438
          %v1440 = vcombine.low %v1364, %v1365
          %v1442 = vunpack.c.l.s4 1983009808
          %v1443 = vunpack.c.0.s8 %v1442
          %v1444 = vlaneseq
          %v1445 = vshrl.u32 %v1444, 7
          %v1446 = vsub.s32 %v1443, %v1445
          %v1447 = vrot.slane %v1440, %v1446
          %v1448 = vcombine.low %v1423, %v1431
          %v1450 = vunpack.c.l.s4 1934713408
          %v1451 = vunpack.c.0.s8 %v1450
          %v1452 = vlaneseq
          %v1453 = vshrl.u32 %v1452, 7
          %v1454 = vsub.s32 %v1451, %v1453
          %v1455 = vrot.slane %v1448, %v1454
          %v1456 = vcombine.low %v1439, %v1447
          %v1458 = vunpack.c.l.s4 1934713408
          %v1459 = vunpack.c.0.s8 %v1458
          %v1460 = vlaneseq
          %v1461 = vshrl.u32 %v1460, 7
          %v1462 = vsub.s32 %v1459, %v1461
          %v1463 = vrot.slane %v1456, %v1462
          %v1464 = vcombine.low %v1455, %v1463
          %v1465 = vcombine.high %v1455, %v1463
          %v1466 = vcombine.high %v1147, 0.0
          %v1468 = vunpack.c.l.s4 1983009808
          %v1469 = vunpack.c.0.s8 %v1468
          %v1470 = vlaneseq
          %v1471 = vshrl.u32 %v1470, 7
          %v1472 = vsub.s32 %v1469, %v1471
          %v1473 = vrot.slane %v1147, %v1472
          %v1475 = vunpack.c.l.s4 1983009808
          %v1476 = vunpack.c.0.s8 %v1475
          %v1477 = vlaneseq
          %v1478 = vshrl.u32 %v1477, 7
          %v1479 = vsub.s32 %v1476, %v1478
          %v1480 = vrot.slane %v1466, %v1479
          %v1481 = vcombine.high %v1149, 0.0
          %v1483 = vunpack.c.l.s4 1983009808
          %v1484 = vunpack.c.0.s8 %v1483
          %v1485 = vlaneseq
          %v1486 = vshrl.u32 %v1485, 7
          %v1487 = vsub.s32 %v1484, %v1486
          %v1488 = vrot.slane %v1149, %v1487
          %v1490 = vunpack.c.l.s4 1983009808
          %v1491 = vunpack.c.0.s8 %v1490
          %v1492 = vlaneseq
          %v1493 = vshrl.u32 %v1492, 7
          %v1494 = vsub.s32 %v1491, %v1493
          %v1495 = vrot.slane %v1481, %v1494
          %v1496 = vcombine.low %v1473, %v1488
          %v1497 = vcombine.high %v1473, %v1488
          %v1499 = vunpack.c.l.s4 1934713408
          %v1500 = vunpack.c.0.s8 %v1499
          %v1501 = vlaneseq
          %v1502 = vshrl.u32 %v1501, 7
          %v1503 = vsub.s32 %v1500, %v1502
          %v1504 = vrot.slane %v1496, %v1503
          %v1506 = vunpack.c.l.s4 1934713408
          %v1507 = vunpack.c.0.s8 %v1506
          %v1508 = vlaneseq
          %v1509 = vshrl.u32 %v1508, 7
          %v1510 = vsub.s32 %v1507, %v1509
          %v1511 = vrot.slane %v1497, %v1510
          %v1512 = vcombine.low %v1480, %v1495
          %v1513 = vcombine.high %v1480, %v1495
          %v1515 = vunpack.c.l.s4 1934713408
          %v1516 = vunpack.c.0.s8 %v1515
          %v1517 = vlaneseq
          %v1518 = vshrl.u32 %v1517, 7
          %v1519 = vsub.s32 %v1516, %v1518
          %v1520 = vrot.slane %v1512, %v1519
          %v1522 = vunpack.c.l.s4 1934713408
          %v1523 = vunpack.c.0.s8 %v1522
          %v1524 = vlaneseq
          %v1525 = vshrl.u32 %v1524, 7
          %v1526 = vsub.s32 %v1523, %v1525
          %v1527 = vrot.slane %v1513, %v1526
          %v1528 = vcombine.high %v1504, 0.0
          %v1529 = vcombine.high %v1511, 0.0
          %v1530 = vcombine.high %v1520, 0.0
          %v1531 = vcombine.high %v1527, 0.0
          %v1532 = vcombine.high %v1153, 0.0
          %v1534 = vunpack.c.l.s4 1983009808
          %v1535 = vunpack.c.0.s8 %v1534
          %v1536 = vlaneseq
          %v1537 = vshrl.u32 %v1536, 7
          %v1538 = vsub.s32 %v1535, %v1537
          %v1539 = vrot.slane %v1153, %v1538
          %v1541 = vunpack.c.l.s4 1983009808
          %v1542 = vunpack.c.0.s8 %v1541
          %v1543 = vlaneseq
          %v1544 = vshrl.u32 %v1543, 7
          %v1545 = vsub.s32 %v1542, %v1544
          %v1546 = vrot.slane %v1532, %v1545
          %v1547 = vcombine.high %v1155, 0.0
          %v1549 = vunpack.c.l.s4 1983009808
          %v1550 = vunpack.c.0.s8 %v1549
          %v1551 = vlaneseq
          %v1552 = vshrl.u32 %v1551, 7
          %v1553 = vsub.s32 %v1550, %v1552
          %v1554 = vrot.slane %v1155, %v1553
          %v1556 = vunpack.c.l.s4 1983009808
          %v1557 = vunpack.c.0.s8 %v1556
          %v1558 = vlaneseq
          %v1559 = vshrl.u32 %v1558, 7
          %v1560 = vsub.s32 %v1557, %v1559
          %v1561 = vrot.slane %v1547, %v1560
          %v1562 = vcombine.low %v1539, %v1554
          %v1563 = vcombine.high %v1539, %v1554
          %v1565 = vunpack.c.l.s4 1934713408
          %v1566 = vunpack.c.0.s8 %v1565
          %v1567 = vlaneseq
          %v1568 = vshrl.u32 %v1567, 7
          %v1569 = vsub.s32 %v1566, %v1568
          %v1570 = vrot.slane %v1562, %v1569
          %v1572 = vunpack.c.l.s4 1934713408
          %v1573 = vunpack.c.0.s8 %v1572
          %v1574 = vlaneseq
          %v1575 = vshrl.u32 %v1574, 7
          %v1576 = vsub.s32 %v1573, %v1575
          %v1577 = vrot.slane %v1563, %v1576
          %v1578 = vcombine.low %v1546, %v1561
          %v1579 = vcombine.high %v1546, %v1561
          %v1581 = vunpack.c.l.s4 1934713408
          %v1582 = vunpack.c.0.s8 %v1581
          %v1583 = vlaneseq
          %v1584 = vshrl.u32 %v1583, 7
          %v1585 = vsub.s32 %v1582, %v1584
          %v1586 = vrot.slane %v1578, %v1585
          %v1588 = vunpack.c.l.s4 1934713408
          %v1589 = vunpack.c.0.s8 %v1588
          %v1590 = vlaneseq
          %v1591 = vshrl.u32 %v1590, 7
          %v1592 = vsub.s32 %v1589, %v1591
          %v1593 = vrot.slane %v1579, %v1592
          %v1594 = vcombine.high %v1570, 0.0
          %v1595 = vcombine.high %v1577, 0.0
          %v1596 = vcombine.high %v1586, 0.0
          %v1597 = vcombine.high %v1593, 0.0
          %v1598 = vcombine.low %v1504, %v1511
          %v1600 = vunpack.c.l.s4 1983009808
          %v1601 = vunpack.c.0.s8 %v1600
          %v1602 = vlaneseq
          %v1603 = vshrl.u32 %v1602, 7
          %v1604 = vsub.s32 %v1601, %v1603
          %v1605 = vrot.slane %v1598, %v1604
          %v1606 = vcombine.low %v1528, %v1529
          %v1608 = vunpack.c.l.s4 1983009808
          %v1609 = vunpack.c.0.s8 %v1608
          %v1610 = vlaneseq
          %v1611 = vshrl.u32 %v1610, 7
          %v1612 = vsub.s32 %v1609, %v1611
          %v1613 = vrot.slane %v1606, %v1612
          %v1614 = vcombine.low %v1520, %v1527
          %v1616 = vunpack.c.l.s4 1983009808
          %v1617 = vunpack.c.0.s8 %v1616
          %v1618 = vlaneseq
          %v1619 = vshrl.u32 %v1618, 7
          %v1620 = vsub.s32 %v1617, %v1619
          %v1621 = vrot.slane %v1614, %v1620
          %v1622 = vcombine.low %v1530, %v1531
          %v1624 = vunpack.c.l.s4 1983009808
          %v1625 = vunpack.c.0.s8 %v1624
          %v1626 = vlaneseq
          %v1627 = vshrl.u32 %v1626, 7
          %v1628 = vsub.s32 %v1625, %v1627
          %v1629 = vrot.slane %v1622, %v1628
          %v1630 = vcombine.low %v1605, %v1613
          %v1632 = vunpack.c.l.s4 1934713408
          %v1633 = vunpack.c.0.s8 %v1632
          %v1634 = vlaneseq
          %v1635 = vshrl.u32 %v1634, 7
          %v1636 = vsub.s32 %v1633, %v1635
          %v1637 = vrot.slane %v1630, %v1636
          %v1638 = vcombine.low %v1621, %v1629
          %v1640 = vunpack.c.l.s4 1934713408
          %v1641 = vunpack.c.0.s8 %v1640
          %v1642 = vlaneseq
          %v1643 = vshrl.u32 %v1642, 7
          %v1644 = vsub.s32 %v1641, %v1643
          %v1645 = vrot.slane %v1638, %v1644
          %v1646 = vcombine.low %v1637, %v1645
          %v1647 = vcombine.high %v1637, %v1645
          %v1648 = vcombine.low %v1570, %v1577
          %v1650 = vunpack.c.l.s4 1983009808
          %v1651 = vunpack.c.0.s8 %v1650
          %v1652 = vlaneseq
          %v1653 = vshrl.u32 %v1652, 7
          %v1654 = vsub.s32 %v1651, %v1653
          %v1655 = vrot.slane %v1648, %v1654
          %v1656 = vcombine.low %v1594, %v1595
          %v1658 = vunpack.c.l.s4 1983009808
          %v1659 = vunpack.c.0.s8 %v1658
          %v1660 = vlaneseq
          %v1661 = vshrl.u32 %v1660, 7
          %v1662 = vsub.s32 %v1659, %v1661
          %v1663 = vrot.slane %v1656, %v1662
          %v1664 = vcombine.low %v1586, %v1593
          %v1666 = vunpack.c.l.s4 1983009808
          %v1667 = vunpack.c.0.s8 %v1666
          %v1668 = vlaneseq
          %v1669 = vshrl.u32 %v1668, 7
          %v1670 = vsub.s32 %v1667, %v1669
          %v1671 = vrot.slane %v1664, %v1670
          %v1672 = vcombine.low %v1596, %v1597
          %v1674 = vunpack.c.l.s4 1983009808
          %v1675 = vunpack.c.0.s8 %v1674
          %v1676 = vlaneseq
          %v1677 = vshrl.u32 %v1676, 7
          %v1678 = vsub.s32 %v1675, %v1677
          %v1679 = vrot.slane %v1672, %v1678
          %v1680 = vcombine.low %v1655, %v1663
          %v1682 = vunpack.c.l.s4 1934713408
          %v1683 = vunpack.c.0.s8 %v1682
          %v1684 = vlaneseq
          %v1685 = vshrl.u32 %v1684, 7
          %v1686 = vsub.s32 %v1683, %v1685
          %v1687 = vrot.slane %v1680, %v1686
          %v1688 = vcombine.low %v1671, %v1679
          %v1690 = vunpack.c.l.s4 1934713408
          %v1691 = vunpack.c.0.s8 %v1690
          %v1692 = vlaneseq
          %v1693 = vshrl.u32 %v1692, 7
          %v1694 = vsub.s32 %v1691, %v1693
          %v1695 = vrot.slane %v1688, %v1694
          %v1696 = vcombine.low %v1687, %v1695
          %v1697 = vcombine.high %v1687, %v1695
          %v1698 = vcombine.high %v1224, 0.0
          %v1700 = vunpack.c.l.s4 1983009808
          %v1701 = vunpack.c.0.s8 %v1700
          %v1702 = vlaneseq
          %v1703 = vshrl.u32 %v1702, 7
          %v1704 = vsub.s32 %v1701, %v1703
          %v1705 = vrot.slane %v1224, %v1704
          %v1707 = vunpack.c.l.s4 1983009808
          %v1708 = vunpack.c.0.s8 %v1707
          %v1709 = vlaneseq
          %v1710 = vshrl.u32 %v1709, 7
          %v1711 = vsub.s32 %v1708, %v1710
          %v1712 = vrot.slane %v1698, %v1711
          %v1713 = vcombine.high %v1226, 0.0
          %v1715 = vunpack.c.l.s4 1983009808
          %v1716 = vunpack.c.0.s8 %v1715
          %v1717 = vlaneseq
          %v1718 = vshrl.u32 %v1717, 7
          %v1719 = vsub.s32 %v1716, %v1718
          %v1720 = vrot.slane %v1226, %v1719
          %v1722 = vunpack.c.l.s4 1983009808
          %v1723 = vunpack.c.0.s8 %v1722
          %v1724 = vlaneseq
          %v1725 = vshrl.u32 %v1724, 7
          %v1726 = vsub.s32 %v1723, %v1725
          %v1727 = vrot.slane %v1713, %v1726
          %v1728 = vcombine.low %v1705, %v1720
          %v1729 = vcombine.high %v1705, %v1720
          %v1731 = vunpack.c.l.s4 1934713408
          %v1732 = vunpack.c.0.s8 %v1731
          %v1733 = vlaneseq
          %v1734 = vshrl.u32 %v1733, 7
          %v1735 = vsub.s32 %v1732, %v1734
          %v1736 = vrot.slane %v1728, %v1735
          %v1738 = vunpack.c.l.s4 1934713408
          %v1739 = vunpack.c.0.s8 %v1738
          %v1740 = vlaneseq
          %v1741 = vshrl.u32 %v1740, 7
          %v1742 = vsub.s32 %v1739, %v1741
          %v1743 = vrot.slane %v1729, %v1742
          %v1744 = vcombine.low %v1712, %v1727
          %v1745 = vcombine.high %v1712, %v1727
          %v1747 = vunpack.c.l.s4 1934713408
          %v1748 = vunpack.c.0.s8 %v1747
          %v1749 = vlaneseq
          %v1750 = vshrl.u32 %v1749, 7
          %v1751 = vsub.s32 %v1748, %v1750
          %v1752 = vrot.slane %v1744, %v1751
          %v1754 = vunpack.c.l.s4 1934713408
          %v1755 = vunpack.c.0.s8 %v1754
          %v1756 = vlaneseq
          %v1757 = vshrl.u32 %v1756, 7
          %v1758 = vsub.s32 %v1755, %v1757
          %v1759 = vrot.slane %v1745, %v1758
          %v1760 = vcombine.high %v1736, 0.0
          %v1761 = vcombine.high %v1743, 0.0
          %v1762 = vcombine.high %v1752, 0.0
          %v1763 = vcombine.high %v1759, 0.0
          %v1764 = vcombine.high %v1230, 0.0
          %v1766 = vunpack.c.l.s4 1983009808
          %v1767 = vunpack.c.0.s8 %v1766
          %v1768 = vlaneseq
          %v1769 = vshrl.u32 %v1768, 7
          %v1770 = vsub.s32 %v1767, %v1769
          %v1771 = vrot.slane %v1230, %v1770
          %v1773 = vunpack.c.l.s4 1983009808
          %v1774 = vunpack.c.0.s8 %v1773
          %v1775 = vlaneseq
          %v1776 = vshrl.u32 %v1775, 7
          %v1777 = vsub.s32 %v1774, %v1776
          %v1778 = vrot.slane %v1764, %v1777
          %v1779 = vcombine.high %v1232, 0.0
          %v1781 = vunpack.c.l.s4 1983009808
          %v1782 = vunpack.c.0.s8 %v1781
          %v1783 = vlaneseq
          %v1784 = vshrl.u32 %v1783, 7
          %v1785 = vsub.s32 %v1782, %v1784
          %v1786 = vrot.slane %v1232, %v1785
          %v1788 = vunpack.c.l.s4 1983009808
          %v1789 = vunpack.c.0.s8 %v1788
          %v1790 = vlaneseq
          %v1791 = vshrl.u32 %v1790, 7
          %v1792 = vsub.s32 %v1789, %v1791
          %v1793 = vrot.slane %v1779, %v1792
          %v1794 = vcombine.low %v1771, %v1786
          %v1795 = vcombine.high %v1771, %v1786
          %v1797 = vunpack.c.l.s4 1934713408
          %v1798 = vunpack.c.0.s8 %v1797
          %v1799 = vlaneseq
          %v1800 = vshrl.u32 %v1799, 7
          %v1801 = vsub.s32 %v1798, %v1800
          %v1802 = vrot.slane %v1794, %v1801
          %v1804 = vunpack.c.l.s4 1934713408
          %v1805 = vunpack.c.0.s8 %v1804
          %v1806 = vlaneseq
          %v1807 = vshrl.u32 %v1806, 7
          %v1808 = vsub.s32 %v1805, %v1807
          %v1809 = vrot.slane %v1795, %v1808
          %v1810 = vcombine.low %v1778, %v1793
          %v1811 = vcombine.high %v1778, %v1793
          %v1813 = vunpack.c.l.s4 1934713408
          %v1814 = vunpack.c.0.s8 %v1813
          %v1815 = vlaneseq
          %v1816 = vshrl.u32 %v1815, 7
          %v1817 = vsub.s32 %v1814, %v1816
          %v1818 = vrot.slane %v1810, %v1817
          %v1820 = vunpack.c.l.s4 1934713408
          %v1821 = vunpack.c.0.s8 %v1820
          %v1822 = vlaneseq
          %v1823 = vshrl.u32 %v1822, 7
          %v1824 = vsub.s32 %v1821, %v1823
          %v1825 = vrot.slane %v1811, %v1824
          %v1826 = vcombine.high %v1802, 0.0
          %v1827 = vcombine.high %v1809, 0.0
          %v1828 = vcombine.high %v1818, 0.0
          %v1829 = vcombine.high %v1825, 0.0
          %v1830 = vcombine.low %v1736, %v1743
          %v1832 = vunpack.c.l.s4 1983009808
          %v1833 = vunpack.c.0.s8 %v1832
          %v1834 = vlaneseq
          %v1835 = vshrl.u32 %v1834, 7
          %v1836 = vsub.s32 %v1833, %v1835
          %v1837 = vrot.slane %v1830, %v1836
          %v1838 = vcombine.low %v1760, %v1761
          %v1840 = vunpack.c.l.s4 1983009808
          %v1841 = vunpack.c.0.s8 %v1840
          %v1842 = vlaneseq
          %v1843 = vshrl.u32 %v1842, 7
          %v1844 = vsub.s32 %v1841, %v1843
          %v1845 = vrot.slane %v1838, %v1844
          %v1846 = vcombine.low %v1752, %v1759
          %v1848 = vunpack.c.l.s4 1983009808
          %v1849 = vunpack.c.0.s8 %v1848
          %v1850 = vlaneseq
          %v1851 = vshrl.u32 %v1850, 7
          %v1852 = vsub.s32 %v1849, %v1851
          %v1853 = vrot.slane %v1846, %v1852
          %v1854 = vcombine.low %v1762, %v1763
          %v1856 = vunpack.c.l.s4 1983009808
          %v1857 = vunpack.c.0.s8 %v1856
          %v1858 = vlaneseq
          %v1859 = vshrl.u32 %v1858, 7
          %v1860 = vsub.s32 %v1857, %v1859
          %v1861 = vrot.slane %v1854, %v1860
          %v1862 = vcombine.low %v1837, %v1845
          %v1864 = vunpack.c.l.s4 1934713408
          %v1865 = vunpack.c.0.s8 %v1864
          %v1866 = vlaneseq
          %v1867 = vshrl.u32 %v1866, 7
          %v1868 = vsub.s32 %v1865, %v1867
          %v1869 = vrot.slane %v1862, %v1868
          %v1870 = vcombine.low %v1853, %v1861
          %v1872 = vunpack.c.l.s4 1934713408
          %v1873 = vunpack.c.0.s8 %v1872
          %v1874 = vlaneseq
          %v1875 = vshrl.u32 %v1874, 7
          %v1876 = vsub.s32 %v1873, %v1875
          %v1877 = vrot.slane %v1870, %v1876
          %v1878 = vcombine.low %v1869, %v1877
          %v1879 = vcombine.high %v1869, %v1877
          %v1880 = vcombine.low %v1802, %v1809
          %v1882 = vunpack.c.l.s4 1983009808
          %v1883 = vunpack.c.0.s8 %v1882
          %v1884 = vlaneseq
          %v1885 = vshrl.u32 %v1884, 7
          %v1886 = vsub.s32 %v1883, %v1885
          %v1887 = vrot.slane %v1880, %v1886
          %v1888 = vcombine.low %v1826, %v1827
          %v1890 = vunpack.c.l.s4 1983009808
          %v1891 = vunpack.c.0.s8 %v1890
          %v1892 = vlaneseq
          %v1893 = vshrl.u32 %v1892, 7
          %v1894 = vsub.s32 %v1891, %v1893
          %v1895 = vrot.slane %v1888, %v1894
          %v1896 = vcombine.low %v1818, %v1825
          %v1898 = vunpack.c.l.s4 1983009808
          %v1899 = vunpack.c.0.s8 %v1898
          %v1900 = vlaneseq
          %v1901 = vshrl.u32 %v1900, 7
          %v1902 = vsub.s32 %v1899, %v1901
          %v1903 = vrot.slane %v1896, %v1902
          %v1904 = vcombine.low %v1828, %v1829
          %v1906 = vunpack.c.l.s4 1983009808
          %v1907 = vunpack.c.0.s8 %v1906
          %v1908 = vlaneseq
          %v1909 = vshrl.u32 %v1908, 7
          %v1910 = vsub.s32 %v1907, %v1909
          %v1911 = vrot.slane %v1904, %v1910
          %v1912 = vcombine.low %v1887, %v1895
          %v1914 = vunpack.c.l.s4 1934713408
          %v1915 = vunpack.c.0.s8 %v1914
          %v1916 = vlaneseq
          %v1917 = vshrl.u32 %v1916, 7
          %v1918 = vsub.s32 %v1915, %v1917
          %v1919 = vrot.slane %v1912, %v1918
          %v1920 = vcombine.low %v1903, %v1911
          %v1922 = vunpack.c.l.s4 1934713408
          %v1923 = vunpack.c.0.s8 %v1922
          %v1924 = vlaneseq
          %v1925 = vshrl.u32 %v1924, 7
          %v1926 = vsub.s32 %v1923, %v1925
          %v1927 = vrot.slane %v1920, %v1926
          %v1928 = vcombine.low %v1919, %v1927
          %v1929 = vcombine.high %v1919, %v1927
          %1930 = vmatprep.subr.mxu0 0.0
          %1931 = vmatpush1.xpose.msra.mxu0 %v1646
          %1932 = vmatprep.subr.mxu0 0.0
          %1933 = vmatpush1.xpose.msra.mxu0 %v1696
          %1934 = vmatprep.subr.mxu0 0.0
          %1935 = vmatpush1.xpose.msra.mxu0 0.0
          %1936 = vmatprep.subr.mxu0 0.0
          %1937 = vmatpush1.xpose.msra.mxu0 0.0
          %1938 = vmatprep.subr.mxu0 0.0
          %1939 = vmatpush1.xpose.msra.mxu0 0.0
          %1940 = vmatprep.subr.mxu0 0.0
          %1941 = vmatpush1.xpose.msra.mxu0 0.0
          %1942 = vmatprep.subr.mxu0 0.0
          %1943 = vmatpush1.xpose.msra.mxu0 0.0
          %1944 = vmatprep.subr.mxu0 0.0
          %1945 = vmatpush1.xpose.msra.mxu0 0.0
          %1946 = vmatprep.subr.mxu0 0.0
          %1947 = vmatpush1.xpose.msra.mxu0 0.0
          %1948 = vmatprep.subr.mxu0 0.0
          %1949 = vmatpush1.xpose.msra.mxu0 0.0
          %1950 = vmatprep.subr.mxu0 0.0
          %1951 = vmatpush1.xpose.msra.mxu0 0.0
          %1952 = vmatprep.subr.mxu0 0.0
          %1953 = vmatpush1.xpose.msra.mxu0 0.0
          %1954 = vmatprep.subr.mxu0 0.0
          %1955 = vmatpush1.xpose.msra.mxu0 0.0
          %1956 = vmatprep.subr.mxu0 0.0
          %1957 = vmatpush1.xpose.msra.mxu0 0.0
          %1958 = vmatprep.subr.mxu0 0.0
          %1959 = vmatpush1.xpose.msra.mxu0 0.0
          %1960 = vmatprep.subr.mxu0 0.0
          %1961 = vmatpush1.xpose.msra.mxu0 0.0
          %1962 = vmatprep.subr.mxu0 0.0
          %1963 = vmatpush1.xpose.msra.mxu0 0.0
          %1964 = vmatprep.subr.mxu0 0.0
          %1965 = vmatpush1.xpose.msra.mxu0 0.0
          %1966 = vmatprep.subr.mxu0 0.0
          %1967 = vmatpush1.xpose.msra.mxu0 0.0
          %1968 = vmatprep.subr.mxu0 0.0
          %1969 = vmatpush1.xpose.msra.mxu0 0.0
          %1970 = vmatprep.subr.mxu0 0.0
          %1971 = vmatpush1.xpose.msra.mxu0 0.0
          %1972 = vmatprep.subr.mxu0 0.0
          %1973 = vmatpush1.xpose.msra.mxu0 0.0
          %1974 = vmatprep.subr.mxu0 0.0
          %1975 = vmatpush1.xpose.msra.mxu0 0.0
          %1976 = vmatprep.subr.mxu0 0.0
          %1977 = vmatpush1.xpose.msra.mxu0 0.0
          %1978 = vmatprep.subr.mxu0 0.0
          %1979 = vmatpush1.xpose.msra.mxu0 0.0
          %1980 = vmatprep.subr.mxu0 0.0
          %1981 = vmatpush1.xpose.msra.mxu0 0.0
          %1982 = vmatprep.subr.mxu0 0.0
          %1983 = vmatpush1.xpose.msra.mxu0 0.0
          %1984 = vmatprep.subr.mxu0 0.0
          %1985 = vmatpush1.xpose.msra.mxu0 0.0
          %1986 = vmatprep.subr.mxu0 0.0
          %1987 = vmatpush1.xpose.msra.mxu0 0.0
          %1988 = vmatprep.subr.mxu0 0.0
          %1989 = vmatpush1.xpose.msra.mxu0 0.0
          %1990 = vmatprep.subr.mxu0 0.0
          %1991 = vmatpush1.xpose.msra.mxu0 0.0
          %1992 = vmatprep.subr.mxu0 0.0
          %1993 = vmatpush1.xpose.msra.mxu0 0.0
          %1994 = vmatprep.mubr.f32.mxu0 0.0
          %1995 = vmatmul.mubr.f32.gmra.mrb[0].mxu0 %v1414
          %v1996 = vpop.f32.mrb[0].mxu0
          %v1997 = vadd.f32 0.0, %v1996
          %v1998 = vpop.f32.mrb[0].mxu0
          %1999 = vmatprep.mubr.f32.mxu0 0.0
          %2000 = vmatmul.mubr.f32.gmra.mrb[0].mxu0 %v1464
          %v2001 = vpop.f32.mrb[0].mxu0
          %v2002 = vadd.f32 0.0, %v2001
          %v2003 = vpop.f32.mrb[0].mxu0
          %2004 = vdwg.mxu0
          %2005 = vmatprep.subr.mxu0 0.0
          %2006 = vmatpush1.xpose.msra.mxu0 %v1647
          %2007 = vmatprep.subr.mxu0 0.0
          %2008 = vmatpush1.xpose.msra.mxu0 %v1697
          %2009 = vmatprep.subr.mxu0 0.0
          %2010 = vmatpush1.xpose.msra.mxu0 0.0
          %2011 = vmatprep.subr.mxu0 0.0
          %2012 = vmatpush1.xpose.msra.mxu0 0.0
          %2013 = vmatprep.subr.mxu0 0.0
          %2014 = vmatpush1.xpose.msra.mxu0 0.0
          %2015 = vmatprep.subr.mxu0 0.0
          %2016 = vmatpush1.xpose.msra.mxu0 0.0
          %2017 = vmatprep.subr.mxu0 0.0
          %2018 = vmatpush1.xpose.msra.mxu0 0.0
          %2019 = vmatprep.subr.mxu0 0.0
          %2020 = vmatpush1.xpose.msra.mxu0 0.0
          %2021 = vmatprep.subr.mxu0 0.0
          %2022 = vmatpush1.xpose.msra.mxu0 0.0
          %2023 = vmatprep.subr.mxu0 0.0
          %2024 = vmatpush1.xpose.msra.mxu0 0.0
          %2025 = vmatprep.subr.mxu0 0.0
          %2026 = vmatpush1.xpose.msra.mxu0 0.0
          %2027 = vmatprep.subr.mxu0 0.0
          %2028 = vmatpush1.xpose.msra.mxu0 0.0
          %2029 = vmatprep.subr.mxu0 0.0
          %2030 = vmatpush1.xpose.msra.mxu0 0.0
          %2031 = vmatprep.subr.mxu0 0.0
          %2032 = vmatpush1.xpose.msra.mxu0 0.0
          %2033 = vmatprep.subr.mxu0 0.0
          %2034 = vmatpush1.xpose.msra.mxu0 0.0
          %2035 = vmatprep.subr.mxu0 0.0
          %2036 = vmatpush1.xpose.msra.mxu0 0.0
          %2037 = vmatprep.subr.mxu0 0.0
          %2038 = vmatpush1.xpose.msra.mxu0 0.0
          %2039 = vmatprep.subr.mxu0 0.0
          %2040 = vmatpush1.xpose.msra.mxu0 0.0
          %2041 = vmatprep.subr.mxu0 0.0
          %2042 = vmatpush1.xpose.msra.mxu0 0.0
          %2043 = vmatprep.subr.mxu0 0.0
          %2044 = vmatpush1.xpose.msra.mxu0 0.0
          %2045 = vmatprep.subr.mxu0 0.0
          %2046 = vmatpush1.xpose.msra.mxu0 0.0
          %2047 = vmatprep.subr.mxu0 0.0
          %2048 = vmatpush1.xpose.msra.mxu0 0.0
          %2049 = vmatprep.subr.mxu0 0.0
          %2050 = vmatpush1.xpose.msra.mxu0 0.0
          %2051 = vmatprep.subr.mxu0 0.0
          %2052 = vmatpush1.xpose.msra.mxu0 0.0
          %2053 = vmatprep.subr.mxu0 0.0
          %2054 = vmatpush1.xpose.msra.mxu0 0.0
          %2055 = vmatprep.subr.mxu0 0.0
          %2056 = vmatpush1.xpose.msra.mxu0 0.0
          %2057 = vmatprep.subr.mxu0 0.0
          %2058 = vmatpush1.xpose.msra.mxu0 0.0
          %2059 = vmatprep.subr.mxu0 0.0
          %2060 = vmatpush1.xpose.msra.mxu0 0.0
          %2061 = vmatprep.subr.mxu0 0.0
          %2062 = vmatpush1.xpose.msra.mxu0 0.0
          %2063 = vmatprep.subr.mxu0 0.0
          %2064 = vmatpush1.xpose.msra.mxu0 0.0
          %2065 = vmatprep.subr.mxu0 0.0
          %2066 = vmatpush1.xpose.msra.mxu0 0.0
          %2067 = vmatprep.subr.mxu0 0.0
          %2068 = vmatpush1.xpose.msra.mxu0 0.0
          %2069 = vmatprep.mubr.f32.mxu0 0.0
          %2070 = vmatmul.mubr.f32.gmra.mrb[0].mxu0 %v1415
          %v2071 = vpop.f32.mrb[0].mxu0
          %v2072 = vadd.f32 0.0, %v2071
          %v2073 = vpop.f32.mrb[0].mxu0
          %2074 = vmatprep.mubr.f32.mxu0 0.0
          %2075 = vmatmul.mubr.f32.gmra.mrb[0].mxu0 %v1465
          %v2076 = vpop.f32.mrb[0].mxu0
          %v2077 = vadd.f32 0.0, %v2076
          %v2078 = vpop.f32.mrb[0].mxu0
          %2079 = vdwg.mxu0
          %v2080 = vmul.f32 %v1997, 0.088388346
          %v2081 = vmul.f32 %v2002, 0.088388346
          %v2082 = vmul.f32 %v2072, 0.088388346
          %v2083 = vmul.f32 %v2077, 0.088388346
          %vm2084 = vcmask 130048
          %v2085 = vsel %vm2084, %v2080, -inf
          %2086 = vmax.xlane.f32.xlu0 %v2085
          %v2087 = vpop.xlane.xlu0 %2086
          %v2088 = vsel %vm2084, %v2081, -inf
          %2089 = vmax.xlane.f32.xlu0 %v2088
          %v2090 = vpop.xlane.xlu0 %2089
          %v2091 = vsel %vm2084, %v2082, -inf
          %2092 = vmax.xlane.f32.xlu0 %v2091
          %v2093 = vpop.xlane.xlu0 %2092
          %v2094 = vsel %vm2084, %v2083, -inf
          %2095 = vmax.xlane.f32.xlu0 %v2094
          %v2096 = vpop.xlane.xlu0 %2095
          %v2097 = vsub.f32 %v2080, %v2087
          %v2098 = vsub.f32 %v2081, %v2090
          %v2099 = vsub.f32 %v2082, %v2093
          %v2100 = vsub.f32 %v2083, %v2096
          %v2101 = vmul.f32 %v2097, 1.442695
          %v2102 = vpow.pop %v2101
          %v2103 = vmul.f32 %v2098, 1.442695
          %v2104 = vpow.pop %v2103
          %v2105 = vmul.f32 %v2099, 1.442695
          %v2106 = vpow.pop %v2105
          %v2107 = vmul.f32 %v2100, 1.442695
          %v2108 = vpow.pop %v2107
          %v2109 = vsel %vm2084, %v2102, 0.0
          %2110 = vadd.xlane.f32.xlu0 %v2109
          %v2111 = vpop.xlane.xlu0 %2110
          %v2112 = vsel %vm2084, %v2104, 0.0
          %2113 = vadd.xlane.f32.xlu0 %v2112
          %v2114 = vpop.xlane.xlu0 %2113
          %v2115 = vsel %vm2084, %v2106, 0.0
          %2116 = vadd.xlane.f32.xlu0 %v2115
          %v2117 = vpop.xlane.xlu0 %2116
          %v2118 = vsel %vm2084, %v2108, 0.0
          %2119 = vadd.xlane.f32.xlu0 %v2118
          %v2120 = vpop.xlane.xlu0 %2119
          %v2121 = vrcp.pop %v2111
          %v2122 = vrcp.pop %v2114
          %v2123 = vrcp.pop %v2117
          %v2124 = vrcp.pop %v2120
          %v2126 = vsel %vm2084, %v2102, 0
          %v2129 = vsel %vm2084, %v2104, 0
          %2131 = vmatprep.subr.mxu0 0.0
          %2132 = vmatpush1.msra.mxu0 %v1878
          %2133 = vmatprep.subr.mxu0 0.0
          %2134 = vmatpush1.msra.mxu0 %v1928
          %2135 = vmatprep.subr.mxu0 0.0
          %2136 = vmatpush1.msra.mxu0 0.0
          %2137 = vmatprep.subr.mxu0 0.0
          %2138 = vmatpush1.msra.mxu0 0.0
          %2139 = vmatprep.subr.mxu0 0.0
          %2140 = vmatpush1.msra.mxu0 0.0
          %2141 = vmatprep.subr.mxu0 0.0
          %2142 = vmatpush1.msra.mxu0 0.0
          %2143 = vmatprep.subr.mxu0 0.0
          %2144 = vmatpush1.msra.mxu0 0.0
          %2145 = vmatprep.subr.mxu0 0.0
          %2146 = vmatpush1.msra.mxu0 0.0
          %2147 = vmatprep.subr.mxu0 0.0
          %2148 = vmatpush1.msra.mxu0 0.0
          %2149 = vmatprep.subr.mxu0 0.0
          %2150 = vmatpush1.msra.mxu0 0.0
          %2151 = vmatprep.subr.mxu0 0.0
          %2152 = vmatpush1.msra.mxu0 0.0
          %2153 = vmatprep.subr.mxu0 0.0
          %2154 = vmatpush1.msra.mxu0 0.0
          %2155 = vmatprep.subr.mxu0 0.0
          %2156 = vmatpush1.msra.mxu0 0.0
          %2157 = vmatprep.subr.mxu0 0.0
          %2158 = vmatpush1.msra.mxu0 0.0
          %2159 = vmatprep.subr.mxu0 0.0
          %2160 = vmatpush1.msra.mxu0 0.0
          %2161 = vmatprep.subr.mxu0 0.0
          %2162 = vmatpush1.msra.mxu0 0.0
          %2163 = vmatprep.subr.mxu0 0.0
          %2164 = vmatpush1.msra.mxu0 0.0
          %2165 = vmatprep.subr.mxu0 0.0
          %2166 = vmatpush1.msra.mxu0 0.0
          %2167 = vmatprep.subr.mxu0 0.0
          %2168 = vmatpush1.msra.mxu0 0.0
          %2169 = vmatprep.subr.mxu0 0.0
          %2170 = vmatpush1.msra.mxu0 0.0
          %2171 = vmatprep.subr.mxu0 0.0
          %2172 = vmatpush1.msra.mxu0 0.0
          %2173 = vmatprep.subr.mxu0 0.0
          %2174 = vmatpush1.msra.mxu0 0.0
          %2175 = vmatprep.subr.mxu0 0.0
          %2176 = vmatpush1.msra.mxu0 0.0
          %2177 = vmatprep.subr.mxu0 0.0
          %2178 = vmatpush1.msra.mxu0 0.0
          %2179 = vmatprep.subr.mxu0 0.0
          %2180 = vmatpush1.msra.mxu0 0.0
          %2181 = vmatprep.subr.mxu0 0.0
          %2182 = vmatpush1.msra.mxu0 0.0
          %2183 = vmatprep.subr.mxu0 0.0
          %2184 = vmatpush1.msra.mxu0 0.0
          %2185 = vmatprep.subr.mxu0 0.0
          %2186 = vmatpush1.msra.mxu0 0.0
          %2187 = vmatprep.subr.mxu0 0.0
          %2188 = vmatpush1.msra.mxu0 0.0
          %2189 = vmatprep.subr.mxu0 0.0
          %2190 = vmatpush1.msra.mxu0 0.0
          %2191 = vmatprep.subr.mxu0 0.0
          %2192 = vmatpush1.msra.mxu0 0.0
          %2193 = vmatprep.subr.mxu0 0.0
          %2194 = vmatpush1.msra.mxu0 0.0
          %2195 = vmatprep.mubr.f32.mxu0 0.0
          %2196 = vmatmul.mubr.f32.gmra.mrb[0].mxu0 %v2126
          %v2197 = vpop.f32.mrb[0].mxu0
          %v2198 = vadd.f32 0.0, %v2197
          %v2199 = vpop.f32.mrb[0].mxu0
          %2200 = vmatprep.mubr.f32.mxu0 0.0
          %2201 = vmatmul.mubr.f32.gmra.mrb[0].mxu0 %v2129
          %v2202 = vpop.f32.mrb[0].mxu0
          %v2203 = vadd.f32 0.0, %v2202
          %v2204 = vpop.f32.mrb[0].mxu0
          %2205 = vdwg.mxu0
          %v2207 = vsel %vm2084, %v2106, 0
          %v2210 = vsel %vm2084, %v2108, 0
          %2212 = vmatprep.subr.mxu0 0.0
          %2213 = vmatpush1.msra.mxu0 %v1879
          %2214 = vmatprep.subr.mxu0 0.0
          %2215 = vmatpush1.msra.mxu0 %v1929
          %2216 = vmatprep.subr.mxu0 0.0
          %2217 = vmatpush1.msra.mxu0 0.0
          %2218 = vmatprep.subr.mxu0 0.0
          %2219 = vmatpush1.msra.mxu0 0.0
          %2220 = vmatprep.subr.mxu0 0.0
          %2221 = vmatpush1.msra.mxu0 0.0
          %2222 = vmatprep.subr.mxu0 0.0
          %2223 = vmatpush1.msra.mxu0 0.0
          %2224 = vmatprep.subr.mxu0 0.0
          %2225 = vmatpush1.msra.mxu0 0.0
          %2226 = vmatprep.subr.mxu0 0.0
          %2227 = vmatpush1.msra.mxu0 0.0
          %2228 = vmatprep.subr.mxu0 0.0
          %2229 = vmatpush1.msra.mxu0 0.0
          %2230 = vmatprep.subr.mxu0 0.0
          %2231 = vmatpush1.msra.mxu0 0.0
          %2232 = vmatprep.subr.mxu0 0.0
          %2233 = vmatpush1.msra.mxu0 0.0
          %2234 = vmatprep.subr.mxu0 0.0
          %2235 = vmatpush1.msra.mxu0 0.0
          %2236 = vmatprep.subr.mxu0 0.0
          %2237 = vmatpush1.msra.mxu0 0.0
          %2238 = vmatprep.subr.mxu0 0.0
          %2239 = vmatpush1.msra.mxu0 0.0
          %2240 = vmatprep.subr.mxu0 0.0
          %2241 = vmatpush1.msra.mxu0 0.0
          %2242 = vmatprep.subr.mxu0 0.0
          %2243 = vmatpush1.msra.mxu0 0.0
          %2244 = vmatprep.subr.mxu0 0.0
          %2245 = vmatpush1.msra.mxu0 0.0
          %2246 = vmatprep.subr.mxu0 0.0
          %2247 = vmatpush1.msra.mxu0 0.0
          %2248 = vmatprep.subr.mxu0 0.0
          %2249 = vmatpush1.msra.mxu0 0.0
          %2250 = vmatprep.subr.mxu0 0.0
          %2251 = vmatpush1.msra.mxu0 0.0
          %2252 = vmatprep.subr.mxu0 0.0
          %2253 = vmatpush1.msra.mxu0 0.0
          %2254 = vmatprep.subr.mxu0 0.0
          %2255 = vmatpush1.msra.mxu0 0.0
          %2256 = vmatprep.subr.mxu0 0.0
          %2257 = vmatpush1.msra.mxu0 0.0
          %2258 = vmatprep.subr.mxu0 0.0
          %2259 = vmatpush1.msra.mxu0 0.0
          %2260 = vmatprep.subr.mxu0 0.0
          %2261 = vmatpush1.msra.mxu0 0.0
          %2262 = vmatprep.subr.mxu0 0.0
          %2263 = vmatpush1.msra.mxu0 0.0
          %2264 = vmatprep.subr.mxu0 0.0
          %2265 = vmatpush1.msra.mxu0 0.0
          %2266 = vmatprep.subr.mxu0 0.0
          %2267 = vmatpush1.msra.mxu0 0.0
          %2268 = vmatprep.subr.mxu0 0.0
          %2269 = vmatpush1.msra.mxu0 0.0
          %2270 = vmatprep.subr.mxu0 0.0
          %2271 = vmatpush1.msra.mxu0 0.0
          %2272 = vmatprep.subr.mxu0 0.0
          %2273 = vmatpush1.msra.mxu0 0.0
          %2274 = vmatprep.subr.mxu0 0.0
          %2275 = vmatpush1.msra.mxu0 0.0
          %2276 = vmatprep.mubr.f32.mxu0 0.0
          %2277 = vmatmul.mubr.f32.gmra.mrb[0].mxu0 %v2207
          %v2278 = vpop.f32.mrb[0].mxu0
          %v2279 = vadd.f32 0.0, %v2278
          %v2280 = vpop.f32.mrb[0].mxu0
          %2281 = vmatprep.mubr.f32.mxu0 0.0
          %2282 = vmatmul.mubr.f32.gmra.mrb[0].mxu0 %v2210
          %v2283 = vpop.f32.mrb[0].mxu0
          %v2284 = vadd.f32 0.0, %v2283
          %v2285 = vpop.f32.mrb[0].mxu0
          %2286 = vdwg.mxu0
          %v2287 = vmul.f32 %v2198, %v2121
          %v2288 = vmul.f32 %v2203, %v2122
          %v2289 = vmul.f32 %v2279, %v2123
          %v2290 = vmul.f32 %v2284, %v2124
          %v2291 = vld [vmem:[#allocation12] sm:$0x3]
          %v2293 = vlaneseq
          %v2294 = vshrl.u32 %v2293, 7
          %v2295 = vsub.s32 0, %v2294
          %v2296 = vrot.slane %v2291, %v2295
          %v2297 = vlaneseq
          %v2298 = vshrl.u32 %v2297, 7
          %v2299 = vsub.s32 1, %v2298
          %v2300 = vrot.slane %v2291, %v2299
          %v2303 = vadd.f32 %v2296, 0.0
          %v2304 = vadd.f32 %v2300, 0.0
          %v2305 = vld [vmem:[#allocation10] sm:$0xff]
          %v2306 = vld [vmem:[#allocation10 + $0x8] sm:$0xff]
          %v2307 = vld [vmem:[#allocation10 + $0x10] sm:$0xff]
          %v2308 = vld [vmem:[#allocation10 + $0x18] sm:$0xff]
          %v2309 = vld [vmem:[#allocation10 + $0x20] sm:$0xff]
          %v2310 = vld [vmem:[#allocation10 + $0x28] sm:$0xff]
          %v2311 = vld [vmem:[#allocation10 + $0x30] sm:$0xff]
          %v2312 = vld [vmem:[#allocation10 + $0x38] sm:$0xff]
          %v2313 = vld [vmem:[#allocation10 + $0x40] sm:$0xff]
          %v2314 = vld [vmem:[#allocation10 + $0x48] sm:$0xff]
          %v2315 = vld [vmem:[#allocation10 + $0x50] sm:$0xff]
          %v2316 = vld [vmem:[#allocation10 + $0x58] sm:$0xff]
          %v2317 = vld [vmem:[#allocation10 + $0x60] sm:$0xff]
          %v2318 = vld [vmem:[#allocation10 + $0x68] sm:$0xff]
          %v2319 = vld [vmem:[#allocation10 + $0x70] sm:$0xff]
          %v2320 = vld [vmem:[#allocation10 + $0x78] sm:$0xff]
          %v2321 = vld [vmem:[#allocation10 + $0x80] sm:$0xff]
          %v2322 = vld [vmem:[#allocation10 + $0x88] sm:$0xff]
          %v2323 = vld [vmem:[#allocation10 + $0x90] sm:$0xff]
          %v2324 = vld [vmem:[#allocation10 + $0x98] sm:$0xff]
          %v2325 = vld [vmem:[#allocation10 + $0xa0] sm:$0xff]
          %v2326 = vld [vmem:[#allocation10 + $0xa8] sm:$0xff]
          %v2327 = vld [vmem:[#allocation10 + $0xb0] sm:$0xff]
          %v2328 = vld [vmem:[#allocation10 + $0xb8] sm:$0xff]
          %v2329 = vld [vmem:[#allocation10 + $0xc0] sm:$0xff]
          %v2330 = vld [vmem:[#allocation10 + $0xc8] sm:$0xff]
          %v2331 = vld [vmem:[#allocation10 + $0xd0] sm:$0xff]
          %v2332 = vld [vmem:[#allocation10 + $0xd8] sm:$0xff]
          %v2333 = vld [vmem:[#allocation10 + $0xe0] sm:$0xff]
          %v2334 = vld [vmem:[#allocation10 + $0xe8] sm:$0xff]
          %v2335 = vld [vmem:[#allocation10 + $0xf0] sm:$0xff]
          %v2336 = vld [vmem:[#allocation10 + $0xf8] sm:$0xff]
          %2337 = vmatprep.subr.mxu0 %v2306
          %2338 = vmatpush1.msra.mxu0 %v2305
          %2339 = vmatprep.subr.mxu0 %v2308
          %2340 = vmatpush1.msra.mxu0 %v2307
          %2341 = vmatprep.subr.mxu0 %v2310
          %2342 = vmatpush1.msra.mxu0 %v2309
          %2343 = vmatprep.subr.mxu0 %v2312
          %2344 = vmatpush1.msra.mxu0 %v2311
          %2345 = vmatprep.subr.mxu0 %v2314
          %2346 = vmatpush1.msra.mxu0 %v2313
          %2347 = vmatprep.subr.mxu0 %v2316
          %2348 = vmatpush1.msra.mxu0 %v2315
          %2349 = vmatprep.subr.mxu0 %v2318
          %2350 = vmatpush1.msra.mxu0 %v2317
          %2351 = vmatprep.subr.mxu0 %v2320
          %2352 = vmatpush1.msra.mxu0 %v2319
          %2353 = vmatprep.subr.mxu0 %v2322
          %2354 = vmatpush1.msra.mxu0 %v2321
          %2355 = vmatprep.subr.mxu0 %v2324
          %2356 = vmatpush1.msra.mxu0 %v2323
          %2357 = vmatprep.subr.mxu0 %v2326
          %2358 = vmatpush1.msra.mxu0 %v2325
          %2359 = vmatprep.subr.mxu0 %v2328
          %2360 = vmatpush1.msra.mxu0 %v2327
          %2361 = vmatprep.subr.mxu0 %v2330
          %2362 = vmatpush1.msra.mxu0 %v2329
          %2363 = vmatprep.subr.mxu0 %v2332
          %2364 = vmatpush1.msra.mxu0 %v2331
          %2365 = vmatprep.subr.mxu0 %v2334
          %2366 = vmatpush1.msra.mxu0 %v2333
          %2367 = vmatprep.subr.mxu0 %v2336
          %2368 = vmatpush1.msra.mxu0 %v2335
          %2369 = vmatprep.subr.mxu0 0.0
          %2370 = vmatpush1.msra.mxu0 0.0
          %2371 = vmatprep.subr.mxu0 0.0
          %2372 = vmatpush1.msra.mxu0 0.0
          %2373 = vmatprep.subr.mxu0 0.0
          %2374 = vmatpush1.msra.mxu0 0.0
          %2375 = vmatprep.subr.mxu0 0.0
          %2376 = vmatpush1.msra.mxu0 0.0
          %2377 = vmatprep.subr.mxu0 0.0
          %2378 = vmatpush1.msra.mxu0 0.0
          %2379 = vmatprep.subr.mxu0 0.0
          %2380 = vmatpush1.msra.mxu0 0.0
          %2381 = vmatprep.subr.mxu0 0.0
          %2382 = vmatpush1.msra.mxu0 0.0
          %2383 = vmatprep.subr.mxu0 0.0
          %2384 = vmatpush1.msra.mxu0 0.0
          %2385 = vmatprep.subr.mxu0 0.0
          %2386 = vmatpush1.msra.mxu0 0.0
          %2387 = vmatprep.subr.mxu0 0.0
          %2388 = vmatpush1.msra.mxu0 0.0
          %2389 = vmatprep.subr.mxu0 0.0
          %2390 = vmatpush1.msra.mxu0 0.0
          %2391 = vmatprep.subr.mxu0 0.0
          %2392 = vmatpush1.msra.mxu0 0.0
          %2393 = vmatprep.subr.mxu0 0.0
          %2394 = vmatpush1.msra.mxu0 0.0
          %2395 = vmatprep.subr.mxu0 0.0
          %2396 = vmatpush1.msra.mxu0 0.0
          %2397 = vmatprep.subr.mxu0 0.0
          %2398 = vmatpush1.msra.mxu0 0.0
          %2399 = vmatprep.subr.mxu0 0.0
          %2400 = vmatpush1.msra.mxu0 0.0
          %2401 = vmatprep.mubr.f32.mxu0 0.0
          %2402 = vmatmul.mubr.f32.gmra.mrb[0].mxu0 %v2287
          %v2403 = vpop.f32.mrb[0].mxu0
          %v2404 = vadd.f32 0.0, %v2403
          %v2405 = vpop.f32.mrb[0].mxu0
          %v2406 = vadd.f32 0.0, %v2405
          %2407 = vmatprep.mubr.f32.mxu0 0.0
          %2408 = vmatmul.mubr.f32.gmra.mrb[0].mxu0 %v2288
          %v2409 = vpop.f32.mrb[0].mxu0
          %v2410 = vadd.f32 0.0, %v2409
          %v2411 = vpop.f32.mrb[0].mxu0
          %v2412 = vadd.f32 0.0, %v2411
          %2413 = vdwg.mxu0
          %v2414 = vadd.f32 %v2303, %v2404
          %v2415 = vadd.f32 %v2304, %v2406
          %v2416 = vadd.f32 %v2303, %v2410
          %v2417 = vadd.f32 %v2304, %v2412
          %s2418 = scalar_lea.vmem [#allocation10], 256
          %v2419 = vld [vmem:[%s2418] sm:$0xff]
          %v2420 = vld [vmem:[%s2418 + $0x8] sm:$0xff]
          %v2421 = vld [vmem:[%s2418 + $0x10] sm:$0xff]
          %v2422 = vld [vmem:[%s2418 + $0x18] sm:$0xff]
          %v2423 = vld [vmem:[%s2418 + $0x20] sm:$0xff]
          %v2424 = vld [vmem:[%s2418 + $0x28] sm:$0xff]
          %v2425 = vld [vmem:[%s2418 + $0x30] sm:$0xff]
          %v2426 = vld [vmem:[%s2418 + $0x38] sm:$0xff]
          %v2427 = vld [vmem:[%s2418 + $0x40] sm:$0xff]
          %v2428 = vld [vmem:[%s2418 + $0x48] sm:$0xff]
          %v2429 = vld [vmem:[%s2418 + $0x50] sm:$0xff]
          %v2430 = vld [vmem:[%s2418 + $0x58] sm:$0xff]
          %v2431 = vld [vmem:[%s2418 + $0x60] sm:$0xff]
          %v2432 = vld [vmem:[%s2418 + $0x68] sm:$0xff]
          %v2433 = vld [vmem:[%s2418 + $0x70] sm:$0xff]
          %v2434 = vld [vmem:[%s2418 + $0x78] sm:$0xff]
          %v2435 = vld [vmem:[%s2418 + $0x80] sm:$0xff]
          %v2436 = vld [vmem:[%s2418 + $0x88] sm:$0xff]
          %v2437 = vld [vmem:[%s2418 + $0x90] sm:$0xff]
          %v2438 = vld [vmem:[%s2418 + $0x98] sm:$0xff]
          %v2439 = vld [vmem:[%s2418 + $0xa0] sm:$0xff]
          %v2440 = vld [vmem:[%s2418 + $0xa8] sm:$0xff]
          %v2441 = vld [vmem:[%s2418 + $0xb0] sm:$0xff]
          %v2442 = vld [vmem:[%s2418 + $0xb8] sm:$0xff]
          %v2443 = vld [vmem:[%s2418 + $0xc0] sm:$0xff]
          %v2444 = vld [vmem:[%s2418 + $0xc8] sm:$0xff]
          %v2445 = vld [vmem:[%s2418 + $0xd0] sm:$0xff]
          %v2446 = vld [vmem:[%s2418 + $0xd8] sm:$0xff]
          %v2447 = vld [vmem:[%s2418 + $0xe0] sm:$0xff]
          %v2448 = vld [vmem:[%s2418 + $0xe8] sm:$0xff]
          %v2449 = vld [vmem:[%s2418 + $0xf0] sm:$0xff]
          %v2450 = vld [vmem:[%s2418 + $0xf8] sm:$0xff]
          %2451 = vmatprep.subr.mxu0 %v2420
          %2452 = vmatpush1.msra.mxu0 %v2419
          %2453 = vmatprep.subr.mxu0 %v2422
          %2454 = vmatpush1.msra.mxu0 %v2421
          %2455 = vmatprep.subr.mxu0 %v2424
          %2456 = vmatpush1.msra.mxu0 %v2423
          %2457 = vmatprep.subr.mxu0 %v2426
          %2458 = vmatpush1.msra.mxu0 %v2425
          %2459 = vmatprep.subr.mxu0 %v2428
          %2460 = vmatpush1.msra.mxu0 %v2427
          %2461 = vmatprep.subr.mxu0 %v2430
          %2462 = vmatpush1.msra.mxu0 %v2429
          %2463 = vmatprep.subr.mxu0 %v2432
          %2464 = vmatpush1.msra.mxu0 %v2431
          %2465 = vmatprep.subr.mxu0 %v2434
          %2466 = vmatpush1.msra.mxu0 %v2433
          %2467 = vmatprep.subr.mxu0 %v2436
          %2468 = vmatpush1.msra.mxu0 %v2435
          %2469 = vmatprep.subr.mxu0 %v2438
          %2470 = vmatpush1.msra.mxu0 %v2437
          %2471 = vmatprep.subr.mxu0 %v2440
          %2472 = vmatpush1.msra.mxu0 %v2439
          %2473 = vmatprep.subr.mxu0 %v2442
          %2474 = vmatpush1.msra.mxu0 %v2441
          %2475 = vmatprep.subr.mxu0 %v2444
          %2476 = vmatpush1.msra.mxu0 %v2443
          %2477 = vmatprep.subr.mxu0 %v2446
          %2478 = vmatpush1.msra.mxu0 %v2445
          %2479 = vmatprep.subr.mxu0 %v2448
          %2480 = vmatpush1.msra.mxu0 %v2447
          %2481 = vmatprep.subr.mxu0 %v2450
          %2482 = vmatpush1.msra.mxu0 %v2449
          %2483 = vmatprep.subr.mxu0 0.0
          %2484 = vmatpush1.msra.mxu0 0.0
          %2485 = vmatprep.subr.mxu0 0.0
          %2486 = vmatpush1.msra.mxu0 0.0
          %2487 = vmatprep.subr.mxu0 0.0
          %2488 = vmatpush1.msra.mxu0 0.0
          %2489 = vmatprep.subr.mxu0 0.0
          %2490 = vmatpush1.msra.mxu0 0.0
          %2491 = vmatprep.subr.mxu0 0.0
          %2492 = vmatpush1.msra.mxu0 0.0
          %2493 = vmatprep.subr.mxu0 0.0
          %2494 = vmatpush1.msra.mxu0 0.0
          %2495 = vmatprep.subr.mxu0 0.0
          %2496 = vmatpush1.msra.mxu0 0.0
          %2497 = vmatprep.subr.mxu0 0.0
          %2498 = vmatpush1.msra.mxu0 0.0
          %2499 = vmatprep.subr.mxu0 0.0
          %2500 = vmatpush1.msra.mxu0 0.0
          %2501 = vmatprep.subr.mxu0 0.0
          %2502 = vmatpush1.msra.mxu0 0.0
          %2503 = vmatprep.subr.mxu0 0.0
          %2504 = vmatpush1.msra.mxu0 0.0
          %2505 = vmatprep.subr.mxu0 0.0
          %2506 = vmatpush1.msra.mxu0 0.0
          %2507 = vmatprep.subr.mxu0 0.0
          %2508 = vmatpush1.msra.mxu0 0.0
          %2509 = vmatprep.subr.mxu0 0.0
          %2510 = vmatpush1.msra.mxu0 0.0
          %2511 = vmatprep.subr.mxu0 0.0
          %2512 = vmatpush1.msra.mxu0 0.0
          %2513 = vmatprep.subr.mxu0 0.0
          %2514 = vmatpush1.msra.mxu0 0.0
          %2515 = vmatprep.mubr.f32.mxu0 0.0
          %2516 = vmatmul.mubr.f32.gmra.mrb[0].mxu0 %v2289
          %v2517 = vpop.f32.mrb[0].mxu0
          %v2518 = vadd.f32 0.0, %v2517
          %v2519 = vpop.f32.mrb[0].mxu0
          %v2520 = vadd.f32 0.0, %v2519
          %2521 = vmatprep.mubr.f32.mxu0 0.0
          %2522 = vmatmul.mubr.f32.gmra.mrb[0].mxu0 %v2290
          %v2523 = vpop.f32.mrb[0].mxu0
          %v2524 = vadd.f32 0.0, %v2523
          %v2525 = vpop.f32.mrb[0].mxu0
          %v2526 = vadd.f32 0.0, %v2525
          %2527 = vdwg.mxu0
          %v2528 = vadd.f32 %v2414, %v2518
          %v2529 = vadd.f32 %v2415, %v2520
          %v2530 = vadd.f32 %v2416, %v2524
          %v2531 = vadd.f32 %v2417, %v2526
          %v2532 = vadd.f32 %v710, %v2528
          %v2533 = vadd.f32 %v711, %v2529
          %v2534 = vadd.f32 %v712, %v2530
          %v2535 = vadd.f32 %v713, %v2531
          %v2536 = vld [vmem:[#allocation16] sm:$0x3]
          %v2537 = vld [vmem:[#allocation18] sm:$0x3]
          %v2538 = vadd.f32 %v2532, %v2533
          %2539 = vadd.xlane.f32.xlu0 %v2538
          %v2540 = vpop.xlane.xlu0 %2539
          %v2541 = vadd.f32 %v2534, %v2535
          %2542 = vadd.xlane.f32.xlu0 %v2541
          %v2543 = vpop.xlane.xlu0 %2542
          %v2544 = vmul.f32 %v2540, %v722
          %v2545 = vmul.f32 %v2543, %v722
          %v2546 = vsub.f32 %v2532, %v2544
          %v2547 = vsub.f32 %v2533, %v2544
          %v2548 = vsub.f32 %v2534, %v2545
          %v2549 = vsub.f32 %v2535, %v2545
          %v2550 = vmul.f32 %v2546, %v2546
          %v2551 = vmul.f32 %v2547, %v2547
          %v2552 = vmul.f32 %v2548, %v2548
          %v2553 = vmul.f32 %v2549, %v2549
          %v2554 = vadd.f32 %v2550, %v2551
          %2555 = vadd.xlane.f32.xlu0 %v2554
          %v2556 = vpop.xlane.xlu0 %2555
          %v2557 = vadd.f32 %v2552, %v2553
          %2558 = vadd.xlane.f32.xlu0 %v2557
          %v2559 = vpop.xlane.xlu0 %2558
          %v2560 = vmul.f32 %v2556, %v722
          %v2561 = vmul.f32 %v2559, %v722
          %v2562 = vadd.f32 %v2560, 1e-05
          %v2563 = vadd.f32 %v2561, 1e-05
          %v2564 = vrsqrt.pop %v2562
          %v2565 = vrsqrt.pop %v2563
          %v2566 = vmul.f32 %v2546, %v2564
          %v2567 = vmul.f32 %v2547, %v2564
          %v2568 = vmul.f32 %v2548, %v2565
          %v2569 = vmul.f32 %v2549, %v2565
          %v2571 = vlaneseq
          %v2572 = vshrl.u32 %v2571, 7
          %v2573 = vsub.s32 0, %v2572
          %v2574 = vrot.slane %v2536, %v2573
          %v2575 = vlaneseq
          %v2576 = vshrl.u32 %v2575, 7
          %v2577 = vsub.s32 1, %v2576
          %v2578 = vrot.slane %v2536, %v2577
          %v2581 = vmul.f32 %v2566, %v2574
          %v2582 = vmul.f32 %v2567, %v2578
          %v2583 = vmul.f32 %v2568, %v2574
          %v2584 = vmul.f32 %v2569, %v2578
          %v2586 = vlaneseq
          %v2587 = vshrl.u32 %v2586, 7
          %v2588 = vsub.s32 0, %v2587
          %v2589 = vrot.slane %v2537, %v2588
          %v2590 = vlaneseq
          %v2591 = vshrl.u32 %v2590, 7
          %v2592 = vsub.s32 1, %v2591
          %v2593 = vrot.slane %v2537, %v2592
          %v2596 = vadd.f32 %v2581, %v2589
          %v2597 = vadd.f32 %v2582, %v2593
          %v2598 = vadd.f32 %v2583, %v2589
          %v2599 = vadd.f32 %v2584, %v2593
          %2600 = vst [vmem:[#allocation2] sm:$0xff] %v2596
          %2601 = vst [vmem:[#allocation2 + $0x8] sm:$0xff] %v2597
          %2602 = vst [vmem:[#allocation2 + $0x10] sm:$0xff] %v2598
          %2603 = vst [vmem:[#allocation2 + $0x18] sm:$0xff] %v2599
          %v2604 = vld [vmem:[#allocation24] sm:$0x3]
          %v2606 = vlaneseq
          %v2607 = vshrl.u32 %v2606, 7
          %v2608 = vsub.s32 0, %v2607
          %v2609 = vrot.slane %v2604, %v2608
          %v2610 = vlaneseq
          %v2611 = vshrl.u32 %v2610, 7
          %v2612 = vsub.s32 1, %v2611
          %v2613 = vrot.slane %v2604, %v2612
          %v2616 = vadd.f32 %v2532, %v2609
          %v2617 = vadd.f32 %v2533, %v2613
          %v2618 = vadd.f32 %v2534, %v2609
          %v2619 = vadd.f32 %v2535, %v2613
          %2620 = vst [vmem:[#allocation3] sm:$0xff] %v2616
          %2621 = vst [vmem:[#allocation3 + $0x8] sm:$0xff] %v2617
          %2622 = vst [vmem:[#allocation3 + $0x10] sm:$0xff] %v2618
          %2623 = vst [vmem:[#allocation3 + $0x18] sm:$0xff] %v2619
        $region128: #{tpu_custom_call.1} parent=71 // pred_fallthru
          _
        %v2624 = vld [vmem:[#allocation2] sm:$0xff]
        %v2625 = vld [vmem:[#allocation2 + $0x8] sm:$0xff]
        %v2626 = vld [vmem:[#allocation2 + $0x10] sm:$0xff]
        %v2627 = vld [vmem:[#allocation2 + $0x18] sm:$0xff]
        %v2628 = vld [vmem:[%s623] sm:$0xff]
        %v2629 = vld [vmem:[%s623 + $0x8] sm:$0xff]
        %v2630 = vld [vmem:[%s623 + $0x10] sm:$0xff]
        %v2631 = vld [vmem:[%s623 + $0x18] sm:$0xff]
        %v2632 = vld [vmem:[%s623 + $0x20] sm:$0xff]
        %v2633 = vld [vmem:[%s623 + $0x28] sm:$0xff]
        %v2634 = vld [vmem:[%s623 + $0x30] sm:$0xff]
        %v2635 = vld [vmem:[%s623 + $0x38] sm:$0xff]
        %v2636 = vld [vmem:[%s623 + $0x40] sm:$0xff]
        %v2637 = vld [vmem:[%s623 + $0x48] sm:$0xff]
        %v2638 = vld [vmem:[%s623 + $0x50] sm:$0xff]
        %v2639 = vld [vmem:[%s623 + $0x58] sm:$0xff]
        %v2640 = vld [vmem:[%s623 + $0x60] sm:$0xff]
        %v2641 = vld [vmem:[%s623 + $0x68] sm:$0xff]
        %v2642 = vld [vmem:[%s623 + $0x70] sm:$0xff]
        %v2643 = vld [vmem:[%s623 + $0x78] sm:$0xff]
        %v2644 = vld [vmem:[%s623 + $0x80] sm:$0xff]
        %v2645 = vld [vmem:[%s623 + $0x88] sm:$0xff]
        %v2646 = vld [vmem:[%s623 + $0x90] sm:$0xff]
        %v2647 = vld [vmem:[%s623 + $0x98] sm:$0xff]
        %v2648 = vld [vmem:[%s623 + $0xa0] sm:$0xff]
        %v2649 = vld [vmem:[%s623 + $0xa8] sm:$0xff]
        %v2650 = vld [vmem:[%s623 + $0xb0] sm:$0xff]
        %v2651 = vld [vmem:[%s623 + $0xb8] sm:$0xff]
        %v2652 = vld [vmem:[%s623 + $0xc0] sm:$0xff]
        %v2653 = vld [vmem:[%s623 + $0xc8] sm:$0xff]
        %v2654 = vld [vmem:[%s623 + $0xd0] sm:$0xff]
        %v2655 = vld [vmem:[%s623 + $0xd8] sm:$0xff]
        %v2656 = vld [vmem:[%s623 + $0xe0] sm:$0xff]
        %v2657 = vld [vmem:[%s623 + $0xe8] sm:$0xff]
        %v2658 = vld [vmem:[%s623 + $0xf0] sm:$0xff]
        %v2659 = vld [vmem:[%s623 + $0xf8] sm:$0xff]
        %v2660 = vld [vmem:[%s623 + $0x100] sm:$0xff]
        %v2661 = vld [vmem:[%s623 + $0x108] sm:$0xff]
        %v2662 = vld [vmem:[%s623 + $0x110] sm:$0xff]
        %v2663 = vld [vmem:[%s623 + $0x118] sm:$0xff]
        %v2664 = vld [vmem:[%s623 + $0x120] sm:$0xff]
        %v2665 = vld [vmem:[%s623 + $0x128] sm:$0xff]
        %v2666 = vld [vmem:[%s623 + $0x130] sm:$0xff]
        %v2667 = vld [vmem:[%s623 + $0x138] sm:$0xff]
        %v2668 = vld [vmem:[%s623 + $0x140] sm:$0xff]
        %v2669 = vld [vmem:[%s623 + $0x148] sm:$0xff]
        %v2670 = vld [vmem:[%s623 + $0x150] sm:$0xff]
        %v2671 = vld [vmem:[%s623 + $0x158] sm:$0xff]
        %v2672 = vld [vmem:[%s623 + $0x160] sm:$0xff]
        %v2673 = vld [vmem:[%s623 + $0x168] sm:$0xff]
        %v2674 = vld [vmem:[%s623 + $0x170] sm:$0xff]
        %v2675 = vld [vmem:[%s623 + $0x178] sm:$0xff]
        %v2676 = vld [vmem:[%s623 + $0x180] sm:$0xff]
        %v2677 = vld [vmem:[%s623 + $0x188] sm:$0xff]
        %v2678 = vld [vmem:[%s623 + $0x190] sm:$0xff]
        %v2679 = vld [vmem:[%s623 + $0x198] sm:$0xff]
        %v2680 = vld [vmem:[%s623 + $0x1a0] sm:$0xff]
        %v2681 = vld [vmem:[%s623 + $0x1a8] sm:$0xff]
        %v2682 = vld [vmem:[%s623 + $0x1b0] sm:$0xff]
        %v2683 = vld [vmem:[%s623 + $0x1b8] sm:$0xff]
        %v2684 = vld [vmem:[%s623 + $0x1c0] sm:$0xff]
        %v2685 = vld [vmem:[%s623 + $0x1c8] sm:$0xff]
        %v2686 = vld [vmem:[%s623 + $0x1d0] sm:$0xff]
        %v2687 = vld [vmem:[%s623 + $0x1d8] sm:$0xff]
        %v2688 = vld [vmem:[%s623 + $0x1e0] sm:$0xff]
        %v2689 = vld [vmem:[%s623 + $0x1e8] sm:$0xff]
        %v2690 = vld [vmem:[%s623 + $0x1f0] sm:$0xff]
        %v2691 = vld [vmem:[%s623 + $0x1f8] sm:$0xff]
        %v2692 = vld [vmem:[%s632] sm:$0x3]
        %v2694 = vlaneseq
        %v2695 = vshrl.u32 %v2694, 7
        %v2696 = vsub.s32 0, %v2695
        %v2697 = vrot.slane %v2692, %v2696
        %v2698 = vlaneseq
        %v2699 = vshrl.u32 %v2698, 7
        %v2700 = vsub.s32 1, %v2699
        %v2701 = vrot.slane %v2692, %v2700
        %2704 = vmatprep.subr.mxu0 %v2629
        %2705 = vmatpush1.msra.mxu0 %v2628
        %2706 = vmatprep.subr.mxu0 %v2631
        %2707 = vmatpush1.msra.mxu0 %v2630
        %2708 = vmatprep.subr.mxu0 %v2633
        %2709 = vmatpush1.msra.mxu0 %v2632
        %2710 = vmatprep.subr.mxu0 %v2635
        %2711 = vmatpush1.msra.mxu0 %v2634
        %2712 = vmatprep.subr.mxu0 %v2637
        %2713 = vmatpush1.msra.mxu0 %v2636
        %2714 = vmatprep.subr.mxu0 %v2639
        %2715 = vmatpush1.msra.mxu0 %v2638
        %2716 = vmatprep.subr.mxu0 %v2641
        %2717 = vmatpush1.msra.mxu0 %v2640
        %2718 = vmatprep.subr.mxu0 %v2643
        %2719 = vmatpush1.msra.mxu0 %v2642
        %2720 = vmatprep.subr.mxu0 %v2645
        %2721 = vmatpush1.msra.mxu0 %v2644
        %2722 = vmatprep.subr.mxu0 %v2647
        %2723 = vmatpush1.msra.mxu0 %v2646
        %2724 = vmatprep.subr.mxu0 %v2649
        %2725 = vmatpush1.msra.mxu0 %v2648
        %2726 = vmatprep.subr.mxu0 %v2651
        %2727 = vmatpush1.msra.mxu0 %v2650
        %2728 = vmatprep.subr.mxu0 %v2653
        %2729 = vmatpush1.msra.mxu0 %v2652
        %2730 = vmatprep.subr.mxu0 %v2655
        %2731 = vmatpush1.msra.mxu0 %v2654
        %2732 = vmatprep.subr.mxu0 %v2657
        %2733 = vmatpush1.msra.mxu0 %v2656
        %2734 = vmatprep.subr.mxu0 %v2659
        %2735 = vmatpush1.msra.mxu0 %v2658
        %2736 = vmatprep.subr.mxu0 %v2661
        %2737 = vmatpush1.msra.mxu0 %v2660
        %2738 = vmatprep.subr.mxu0 %v2663
        %2739 = vmatpush1.msra.mxu0 %v2662
        %2740 = vmatprep.subr.mxu0 %v2665
        %2741 = vmatpush1.msra.mxu0 %v2664
        %2742 = vmatprep.subr.mxu0 %v2667
        %2743 = vmatpush1.msra.mxu0 %v2666
        %2744 = vmatprep.subr.mxu0 %v2669
        %2745 = vmatpush1.msra.mxu0 %v2668
        %2746 = vmatprep.subr.mxu0 %v2671
        %2747 = vmatpush1.msra.mxu0 %v2670
        %2748 = vmatprep.subr.mxu0 %v2673
        %2749 = vmatpush1.msra.mxu0 %v2672
        %2750 = vmatprep.subr.mxu0 %v2675
        %2751 = vmatpush1.msra.mxu0 %v2674
        %2752 = vmatprep.subr.mxu0 %v2677
        %2753 = vmatpush1.msra.mxu0 %v2676
        %2754 = vmatprep.subr.mxu0 %v2679
        %2755 = vmatpush1.msra.mxu0 %v2678
        %2756 = vmatprep.subr.mxu0 %v2681
        %2757 = vmatpush1.msra.mxu0 %v2680
        %2758 = vmatprep.subr.mxu0 %v2683
        %2759 = vmatpush1.msra.mxu0 %v2682
        %2760 = vmatprep.subr.mxu0 %v2685
        %2761 = vmatpush1.msra.mxu0 %v2684
        %2762 = vmatprep.subr.mxu0 %v2687
        %2763 = vmatpush1.msra.mxu0 %v2686
        %2764 = vmatprep.subr.mxu0 %v2689
        %2765 = vmatpush1.msra.mxu0 %v2688
        %2766 = vmatprep.subr.mxu0 %v2691
        %2767 = vmatpush1.msra.mxu0 %v2690
        %2768 = vmatprep.mubr.f32.mxu0 %v2625
        %2769 = vmatmul.mubr.f32.gmra.mrb[0].mxu0 %v2624
        %v2770 = vpop.f32.mrb[0].mxu0
        %v2771 = vadd.f32 %v2697, %v2770
        %v2772 = vpop.f32.mrb[0].mxu0
        %v2773 = vadd.f32 %v2701, %v2772
        %2774 = vmatprep.mubr.f32.mxu0 %v2627
        %2775 = vmatmul.mubr.f32.gmra.mrb[0].mxu0 %v2626
        %v2776 = vpop.f32.mrb[0].mxu0
        %v2777 = vadd.f32 %v2697, %v2776
        %v2778 = vpop.f32.mrb[0].mxu0
        %v2779 = vadd.f32 %v2701, %v2778
        %2780 = vdwg.mxu0
        %v2781 = vmax.f32 %v2771, 0.0
        %v2782 = vmax.f32 %v2773, 0.0
        %v2783 = vmax.f32 %v2777, 0.0
        %v2784 = vmax.f32 %v2779, 0.0
        %v2785 = vld [vmem:[#allocation3] sm:$0xff]
        %v2786 = vld [vmem:[#allocation3 + $0x8] sm:$0xff]
        %v2787 = vld [vmem:[#allocation3 + $0x10] sm:$0xff]
        %v2788 = vld [vmem:[#allocation3 + $0x18] sm:$0xff]
        %v2789 = vld [vmem:[%s641] sm:$0xff]
        %v2790 = vld [vmem:[%s641 + $0x8] sm:$0xff]
        %v2791 = vld [vmem:[%s641 + $0x10] sm:$0xff]
        %v2792 = vld [vmem:[%s641 + $0x18] sm:$0xff]
        %v2793 = vld [vmem:[%s641 + $0x20] sm:$0xff]
        %v2794 = vld [vmem:[%s641 + $0x28] sm:$0xff]
        %v2795 = vld [vmem:[%s641 + $0x30] sm:$0xff]
        %v2796 = vld [vmem:[%s641 + $0x38] sm:$0xff]
        %v2797 = vld [vmem:[%s641 + $0x40] sm:$0xff]
        %v2798 = vld [vmem:[%s641 + $0x48] sm:$0xff]
        %v2799 = vld [vmem:[%s641 + $0x50] sm:$0xff]
        %v2800 = vld [vmem:[%s641 + $0x58] sm:$0xff]
        %v2801 = vld [vmem:[%s641 + $0x60] sm:$0xff]
        %v2802 = vld [vmem:[%s641 + $0x68] sm:$0xff]
        %v2803 = vld [vmem:[%s641 + $0x70] sm:$0xff]
        %v2804 = vld [vmem:[%s641 + $0x78] sm:$0xff]
        %v2805 = vld [vmem:[%s641 + $0x80] sm:$0xff]
        %v2806 = vld [vmem:[%s641 + $0x88] sm:$0xff]
        %v2807 = vld [vmem:[%s641 + $0x90] sm:$0xff]
        %v2808 = vld [vmem:[%s641 + $0x98] sm:$0xff]
        %v2809 = vld [vmem:[%s641 + $0xa0] sm:$0xff]
        %v2810 = vld [vmem:[%s641 + $0xa8] sm:$0xff]
        %v2811 = vld [vmem:[%s641 + $0xb0] sm:$0xff]
        %v2812 = vld [vmem:[%s641 + $0xb8] sm:$0xff]
        %v2813 = vld [vmem:[%s641 + $0xc0] sm:$0xff]
        %v2814 = vld [vmem:[%s641 + $0xc8] sm:$0xff]
        %v2815 = vld [vmem:[%s641 + $0xd0] sm:$0xff]
        %v2816 = vld [vmem:[%s641 + $0xd8] sm:$0xff]
        %v2817 = vld [vmem:[%s641 + $0xe0] sm:$0xff]
        %v2818 = vld [vmem:[%s641 + $0xe8] sm:$0xff]
        %v2819 = vld [vmem:[%s641 + $0xf0] sm:$0xff]
        %v2820 = vld [vmem:[%s641 + $0xf8] sm:$0xff]
        %v2821 = vld [vmem:[%s641 + $0x100] sm:$0xff]
        %v2822 = vld [vmem:[%s641 + $0x108] sm:$0xff]
        %v2823 = vld [vmem:[%s641 + $0x110] sm:$0xff]
        %v2824 = vld [vmem:[%s641 + $0x118] sm:$0xff]
        %v2825 = vld [vmem:[%s641 + $0x120] sm:$0xff]
        %v2826 = vld [vmem:[%s641 + $0x128] sm:$0xff]
        %v2827 = vld [vmem:[%s641 + $0x130] sm:$0xff]
        %v2828 = vld [vmem:[%s641 + $0x138] sm:$0xff]
        %v2829 = vld [vmem:[%s641 + $0x140] sm:$0xff]
        %v2830 = vld [vmem:[%s641 + $0x148] sm:$0xff]
        %v2831 = vld [vmem:[%s641 + $0x150] sm:$0xff]
        %v2832 = vld [vmem:[%s641 + $0x158] sm:$0xff]
        %v2833 = vld [vmem:[%s641 + $0x160] sm:$0xff]
        %v2834 = vld [vmem:[%s641 + $0x168] sm:$0xff]
        %v2835 = vld [vmem:[%s641 + $0x170] sm:$0xff]
        %v2836 = vld [vmem:[%s641 + $0x178] sm:$0xff]
        %v2837 = vld [vmem:[%s641 + $0x180] sm:$0xff]
        %v2838 = vld [vmem:[%s641 + $0x188] sm:$0xff]
        %v2839 = vld [vmem:[%s641 + $0x190] sm:$0xff]
        %v2840 = vld [vmem:[%s641 + $0x198] sm:$0xff]
        %v2841 = vld [vmem:[%s641 + $0x1a0] sm:$0xff]
        %v2842 = vld [vmem:[%s641 + $0x1a8] sm:$0xff]
        %v2843 = vld [vmem:[%s641 + $0x1b0] sm:$0xff]
        %v2844 = vld [vmem:[%s641 + $0x1b8] sm:$0xff]
        %v2845 = vld [vmem:[%s641 + $0x1c0] sm:$0xff]
        %v2846 = vld [vmem:[%s641 + $0x1c8] sm:$0xff]
        %v2847 = vld [vmem:[%s641 + $0x1d0] sm:$0xff]
        %v2848 = vld [vmem:[%s641 + $0x1d8] sm:$0xff]
        %v2849 = vld [vmem:[%s641 + $0x1e0] sm:$0xff]
        %v2850 = vld [vmem:[%s641 + $0x1e8] sm:$0xff]
        %v2851 = vld [vmem:[%s641 + $0x1f0] sm:$0xff]
        %v2852 = vld [vmem:[%s641 + $0x1f8] sm:$0xff]
        %2853 = vmatprep.subr.mxu0 %v2790
        %2854 = vmatpush1.msra.mxu0 %v2789
        %2855 = vmatprep.subr.mxu0 %v2792
        %2856 = vmatpush1.msra.mxu0 %v2791
        %2857 = vmatprep.subr.mxu0 %v2794
        %2858 = vmatpush1.msra.mxu0 %v2793
        %2859 = vmatprep.subr.mxu0 %v2796
        %2860 = vmatpush1.msra.mxu0 %v2795
        %2861 = vmatprep.subr.mxu0 %v2798
        %2862 = vmatpush1.msra.mxu0 %v2797
        %2863 = vmatprep.subr.mxu0 %v2800
        %2864 = vmatpush1.msra.mxu0 %v2799
        %2865 = vmatprep.subr.mxu0 %v2802
        %2866 = vmatpush1.msra.mxu0 %v2801
        %2867 = vmatprep.subr.mxu0 %v2804
        %2868 = vmatpush1.msra.mxu0 %v2803
        %2869 = vmatprep.subr.mxu0 %v2806
        %2870 = vmatpush1.msra.mxu0 %v2805
        %2871 = vmatprep.subr.mxu0 %v2808
        %2872 = vmatpush1.msra.mxu0 %v2807
        %2873 = vmatprep.subr.mxu0 %v2810
        %2874 = vmatpush1.msra.mxu0 %v2809
        %2875 = vmatprep.subr.mxu0 %v2812
        %2876 = vmatpush1.msra.mxu0 %v2811
        %2877 = vmatprep.subr.mxu0 %v2814
        %2878 = vmatpush1.msra.mxu0 %v2813
        %2879 = vmatprep.subr.mxu0 %v2816
        %2880 = vmatpush1.msra.mxu0 %v2815
        %2881 = vmatprep.subr.mxu0 %v2818
        %2882 = vmatpush1.msra.mxu0 %v2817
        %2883 = vmatprep.subr.mxu0 %v2820
        %2884 = vmatpush1.msra.mxu0 %v2819
        %2885 = vmatprep.subr.mxu0 %v2822
        %2886 = vmatpush1.msra.mxu0 %v2821
        %2887 = vmatprep.subr.mxu0 %v2824
        %2888 = vmatpush1.msra.mxu0 %v2823
        %2889 = vmatprep.subr.mxu0 %v2826
        %2890 = vmatpush1.msra.mxu0 %v2825
        %2891 = vmatprep.subr.mxu0 %v2828
        %2892 = vmatpush1.msra.mxu0 %v2827
        %2893 = vmatprep.subr.mxu0 %v2830
        %2894 = vmatpush1.msra.mxu0 %v2829
        %2895 = vmatprep.subr.mxu0 %v2832
        %2896 = vmatpush1.msra.mxu0 %v2831
        %2897 = vmatprep.subr.mxu0 %v2834
        %2898 = vmatpush1.msra.mxu0 %v2833
        %2899 = vmatprep.subr.mxu0 %v2836
        %2900 = vmatpush1.msra.mxu0 %v2835
        %2901 = vmatprep.subr.mxu0 %v2838
        %2902 = vmatpush1.msra.mxu0 %v2837
        %2903 = vmatprep.subr.mxu0 %v2840
        %2904 = vmatpush1.msra.mxu0 %v2839
        %2905 = vmatprep.subr.mxu0 %v2842
        %2906 = vmatpush1.msra.mxu0 %v2841
        %2907 = vmatprep.subr.mxu0 %v2844
        %2908 = vmatpush1.msra.mxu0 %v2843
        %2909 = vmatprep.subr.mxu0 %v2846
        %2910 = vmatpush1.msra.mxu0 %v2845
        %2911 = vmatprep.subr.mxu0 %v2848
        %2912 = vmatpush1.msra.mxu0 %v2847
        %2913 = vmatprep.subr.mxu0 %v2850
        %2914 = vmatpush1.msra.mxu0 %v2849
        %2915 = vmatprep.subr.mxu0 %v2852
        %2916 = vmatpush1.msra.mxu0 %v2851
        %2917 = vmatprep.mubr.f32.mxu0 %v2782
        %2918 = vmatmul.mubr.f32.gmra.mrb[0].mxu0 %v2781
        %v2919 = vpop.f32.mrb[0].mxu0
        %v2920 = vadd.f32 0.0, %v2919
        %v2921 = vpop.f32.mrb[0].mxu0
        %v2922 = vadd.f32 0.0, %v2921
        %2923 = vmatprep.mubr.f32.mxu0 %v2784
        %2924 = vmatmul.mubr.f32.gmra.mrb[0].mxu0 %v2783
        %v2925 = vpop.f32.mrb[0].mxu0
        %v2926 = vadd.f32 0.0, %v2925
        %v2927 = vpop.f32.mrb[0].mxu0
        %v2928 = vadd.f32 0.0, %v2927
        %2929 = vdwg.mxu0
        %v2930 = vadd.f32 %v2785, %v2920
        %v2931 = vadd.f32 %v2786, %v2922
        %v2932 = vadd.f32 %v2787, %v2926
        %v2933 = vadd.f32 %v2788, %v2928
        %2934 = vst [vmem:[#allocation3] sm:$0xff] %v2930
        %2935 = vst [vmem:[#allocation3 + $0x8] sm:$0xff] %v2931
        %2936 = vst [vmem:[#allocation3 + $0x10] sm:$0xff] %v2932
        %2937 = vst [vmem:[#allocation3 + $0x18] sm:$0xff] %v2933
        %p2938 = scmp.eq.s32.totalorder %s45, 1
        // Predicated region
        $region129: #{tpu_custom_call.1} parent=71 // pred_check
          %p2939 = pneg %p2938
        $region130: #{tpu_custom_call.1} parent=71 // pred_check_branch
          %2941 = sbr.rel (%p2939) target = $region132
        $region131: #{tpu_custom_call.1} parent=71 // pred_region
          %v2942 = vld [vmem:[#allocation3] sm:$0xff]
          %v2943 = vld [vmem:[#allocation3 + $0x8] sm:$0xff]
          %v2944 = vld [vmem:[#allocation3 + $0x10] sm:$0xff]
          %v2945 = vld [vmem:[#allocation3 + $0x18] sm:$0xff]
          %2946 = vst [vmem:[%s702] sm:$0xff] %v2942
          %2947 = vst [vmem:[%s702 + $0x8] sm:$0xff] %v2943
          %2948 = vst [vmem:[%s702 + $0x10] sm:$0xff] %v2944
          %2949 = vst [vmem:[%s702 + $0x18] sm:$0xff] %v2945
        $region132: #{tpu_custom_call.1} parent=71 // pred_fallthru
          _
        %s2950 = sand.u32 %s353, 1
        %s2951 = scalar_lea.sflag [#allocation6], %s2950
        %s2952 = sand.u32 %s353, 1
        %s2953 = smul.addr %s2952, 32
        %s2954 = scalar_lea.vmem [#allocation25], %s2953
        // Predicated region
        $region133: #{tpu_custom_call.1} parent=71 // pred_check
          %p2955 = pneg %p363
        $region134: #{tpu_custom_call.1} parent=71 // pred_check_branch
          %2957 = sbr.rel (%p2955) target = $region136
        $region135: #{tpu_custom_call.1} parent=71 // pred_region
          %s2959 = ssub.s32 512, 512
          %2960 = vsyncadd %s2951, %s2959
          %s2961 = smul.addr %s44, 4
          %s2962 = smul.addr %s2961, 128
          %s2963 = scalar_lea.hbm %s13, %s2962
          %s2964 = sshll.u32 %s2954, 4
          %s2965 = int_to_ptr.vmem [resolvable:$true] %s2964
          %2970 = dma.vmem_to_hbm [thread:$0]  %s2965, 512, %s2963, %s2951, 256, 256, 16
        $region136: #{tpu_custom_call.1} parent=71 // pred_fallthru
          _
      $region72: #{tpu_custom_call.1} parent=5 // pred_fallthru
        _
      %p2971 = scmp.le.s32.totalorder 2, %s35
      // Predicated region
      $region137: #{tpu_custom_call.1} parent=5 // pred_check
        %p2972 = pneg %p2971
      $region138: #{tpu_custom_call.1} parent=5 // pred_check_branch
        %2974 = sbr.rel (%p2972) target = $region140
      $region139: #{tpu_custom_call.1} parent=5 // pred_region
        %s2975 = ssub.s32 %s35, 2
        // Predicated region
        $region141: #{tpu_custom_call.1} parent=139 // pred_check
          %p2976 = pneg %p369
        $region142: #{tpu_custom_call.1} parent=139 // pred_check_branch
          %2978 = sbr.rel (%p2976) target = $region144
        $region143: #{tpu_custom_call.1} parent=139 // pred_region
          %s2979 = sand.u32 %s354, 1
          %s2980 = scalar_lea.sflag [#allocation6], %s2979
          %s2981 = sand.u32 %s354, 1
          %s2982 = smul.addr %s2981, 32
          %s2983 = scalar_lea.vmem [#allocation25], %s2982
          %2984 = dma.done %s2980, 512
        $region144: #{tpu_custom_call.1} parent=139 // pred_fallthru
          _
      $region140: #{tpu_custom_call.1} parent=5 // pred_fallthru
        _
    $region6: #{tpu_custom_call.1} parent=1 // loop_footer
      %s39 = sadd.s32 1, %s35
    $region7: #{tpu_custom_call.1} parent=1 // loop_footer_branch
      %34 = sbr.rel target = $region3
    $region8: #{tpu_custom_call.1} parent=1 // loop_exit
      _
    %2985 = vsyncpa [#allocation5], 1
    %s2986 = scalar_lea.sflag [#allocation5], 1
    %2987 = vsyncpa %s2986, 1
    %2988 = vsyncpa [#allocation8], 1
    %2989 = vsyncpa [#allocation11], 1
    %2990 = vsyncpa [#allocation14], 1
    %2991 = vsyncpa [#allocation17], 1
    %2992 = vsyncpa [#allocation20], 1
    %s2993 = scalar_lea.sflag [#allocation20], 1
    %2994 = vsyncpa %s2993, 1
    %2995 = vsyncpa [#allocation23], 1
    %s2996 = scalar_lea.sflag [#allocation23], 1
    %2997 = vsyncpa %s2996, 1
    %2998 = vsyncpa [#allocation6], 1
    %s2999 = scalar_lea.sflag [#allocation6], 1
    %3000 = vsyncpa %s2999, 1

</llo_original>
